<compile_context>
chip_gen: v7x
topology: tpu7x:2x2x1
jax: 0.10.0
libtpu: 0.0.40
codegen_flags: <defaults>
</compile_context>

<pallas_src>
import functools
import math

import jax
import jax.numpy as jnp
from jax.experimental import pallas as pl
from jax.experimental.pallas import tpu as pltpu

EPS = 1e-6          # nn.LayerNorm(eps=1e-6)
NEG_INF = -1e18     # OpenNMT MultiHeadedAttention masked_fill value


# ----------------------------------------------------------------------------
# In-kernel helpers
# ----------------------------------------------------------------------------
def _layer_norm(x, g, b):
    """LayerNorm over the last dim, float32 statistics."""
    mean = jnp.mean(x, axis=-1, keepdims=True)
    var = jnp.mean(jnp.square(x - mean), axis=-1, keepdims=True)
    return (x - mean) * jax.lax.rsqrt(var + EPS) * g + b


def _mha_core(q, k, v, masked, wo_ref, bo_ref, heads):
    """Head-batched scaled-dot-product attention + output projection.

    q: (Lq, D) bf16 (query scale already folded into the projection weights)
    k, v: (Lk, D) bf16;  masked: (1, Lk) bool (True = position masked out).
    Returns (Lq, D) float32 (pre-residual).
    """
    Lq, D = q.shape
    Lk = k.shape[0]
    dh = D // heads

    # (L, D) -> (heads, L, dh): one relayout per tensor instead of `heads`
    # lane slices at non-128 offsets.
    qh = q.reshape(Lq, heads, dh).swapaxes(0, 1)
    kh = k.reshape(Lk, heads, dh).swapaxes(0, 1)
    vh = v.reshape(Lk, heads, dh).swapaxes(0, 1)

    # One batched MXU matmul over all heads (canonical batch-leading form,
    # f32 accumulation).
    scores = jnp.einsum('hqd,hkd->hqk', qh, kh,
                        preferred_element_type=jnp.float32)
    scores = jnp.where(masked[None], NEG_INF, scores)   # masked_fill(mask, -1e18)

    m = jnp.max(scores, axis=-1, keepdims=True)
    e = jnp.exp(scores - m)
    p = e * pl.reciprocal(jnp.sum(e, axis=-1, keepdims=True), approx=True)

    ctx = jnp.einsum('hqk,hkd->hqd', p.astype(jnp.bfloat16), vh,
                     preferred_element_type=jnp.float32)

    # (heads, Lq, dh) -> (Lq, D): single repack, then ONE full-width output
    # projection instead of `heads` narrow ones.
    ctx = ctx.swapaxes(0, 1).reshape(Lq, D).astype(jnp.bfloat16)
    return jnp.dot(ctx, wo_ref[...], preferred_element_type=jnp.float32) + bo_ref[...]


def _self_attention(x, masked, w_qkv, b_qkv, w_o, b_o, heads):
    """Self-attention with a fused (D, 3D) Q/K/V projection."""
    D = x.shape[-1]
    qkv = (jnp.dot(x, w_qkv[...], preferred_element_type=jnp.float32)
           + b_qkv[...]).astype(jnp.bfloat16)
    return _mha_core(qkv[:, :D], qkv[:, D:2 * D], qkv[:, 2 * D:],
                     masked, w_o, b_o, heads)


def _cross_attention(q_src, kv_src, masked, w_q, b_q, w_kv, b_kv, w_o, b_o, heads):
    """Cross-attention: separate Q projection, fused (D, 2D) K/V projection."""
    D = q_src.shape[-1]
    q = (jnp.dot(q_src, w_q[...], preferred_element_type=jnp.float32)
         + b_q[...]).astype(jnp.bfloat16)
    kv = (jnp.dot(kv_src, w_kv[...], preferred_element_type=jnp.float32)
          + b_kv[...]).astype(jnp.bfloat16)
    return _mha_core(q, kv[:, :D], kv[:, D:], masked, w_o, b_o, heads)


# ----------------------------------------------------------------------------
# Fused layer kernel (one batch element per grid step)
# ----------------------------------------------------------------------------
def _encoder_layer_kernel(x_ref, knl_ref, his_ref,
                          src_m_ref, knl_m_ref, his_m_ref,
                          ln1_g, ln1_b, ln2_g, ln2_b, ln3_g, ln3_b,
                          sa_wqkv, sa_bqkv, sa_wo, sa_bo,
                          ka_wq, ka_bq, ka_wkv, ka_bkv, ka_wo, ka_bo,
                          ca_wq, ca_bq, ca_wkv, ca_bkv, ca_wo, ca_bo,
                          ff_g, ff_b, ff_w1, ff_b1, ff_w2, ff_b2,
                          o_ref, *, heads, has_his):
    bf16 = jnp.bfloat16
    x = x_ref[0]                                          # (S, D) f32

    # --- layer_norm_1 + self attention + residual (dropout = identity) ------
    xn = _layer_norm(x, ln1_g[...], ln1_b[...]).astype(bf16)
    query = _self_attention(xn, src_m_ref[0] > 0.5,
                            sa_wqkv, sa_bqkv, sa_wo, sa_bo, heads) + x

    # --- layer_norm_2 + knowledge attention + residual -----------------------
    qn = _layer_norm(query, ln2_g[...], ln2_b[...]).astype(bf16)
    knl_out = _cross_attention(qn, knl_ref[0], knl_m_ref[0] > 0.5,
                               ka_wq, ka_bq, ka_wkv, ka_bkv, ka_wo, ka_bo,
                               heads) + query

    # --- layer_norm_3 + context attention + residual (only if his_bank) ------
    if has_his:
        kn = _layer_norm(knl_out, ln3_g[...], ln3_b[...]).astype(bf16)
        out = _cross_attention(kn, his_ref[0], his_m_ref[0] > 0.5,
                               ca_wq, ca_bq, ca_wkv, ca_bkv, ca_wo, ca_bo,
                               heads) + knl_out
    else:
        out = knl_out

    # --- PositionwiseFeedForward: w2(relu(w1(LN(out)))) + out -----------------
    on = _layer_norm(out, ff_g[...], ff_b[...]).astype(bf16)
    inter = jnp.dot(on, ff_w1[...], preferred_element_type=jnp.float32) + ff_b1[...]
    inter = jnp.maximum(inter, 0.0).astype(bf16)
    ffn = jnp.dot(inter, ff_w2[...], preferred_element_type=jnp.float32) + ff_b2[...]
    o_ref[0] = ffn + out


# ----------------------------------------------------------------------------
# VMEM budget per chip generation
# ----------------------------------------------------------------------------
def _vmem_limit_bytes():
    """Scoped-VMEM cap sized from the chip (v7x: 64 MiB, v5e/v6e: 128 MiB)."""
    try:
        cap = pltpu.get_tpu_info().vmem_capacity_bytes
        return int(cap * 0.85)
    except Exception:
        return 48 * 1024 * 1024       # conservative fallback, fits every chip


# ----------------------------------------------------------------------------
# Wrapper
# ----------------------------------------------------------------------------
def a_transformer_encoder_layer(inputs, src_mask, knl_bank, knl_mask,
                                his_bank, his_mask, params, heads):
    """Forward pass of ATransformerEncoderLayer (eval mode).

    inputs:   (B, S, D) float32
    src_mask: (B, 1, S)  bool/float, True/1.0 = masked
    knl_bank: (B, Lk, D) float32, knl_mask: (B, 1, Lk)
    his_bank: (Lh, B, D) float32 or None, his_mask: (B, 1, Lh)
    """
    f32 = jnp.float32
    bf16 = jnp.bfloat16
    B, S, D = inputs.shape
    Lk = knl_bank.shape[1]

    sa = params["self_attn"]     # (w_qkv, b_qkv, w_o, b_o)
    ka = params["knl_attn"]      # (w_q, b_q, w_kv, b_kv, w_o, b_o)
    ca = params["ctx_attn"]      # (w_q, b_q, w_kv, b_kv, w_o, b_o)
    ff_g, ff_b, w1, b1, w2, b2 = params["ffn"]

    has_his = his_bank is not None
    if has_his:
        # his_bank.transpose(0, 1); fused with the bf16 cast (single XLA pass).
        his_b = jnp.transpose(his_bank, (1, 0, 2)).astype(bf16)
        his_m = his_mask.astype(f32)
    else:
        his_b = jnp.zeros((B, 1, D), bf16)                # dummy, never read
        his_m = jnp.zeros((B, 1, 1), f32)
    Lh = his_b.shape[1]

    # K/V-only banks travel as bf16 (halves HBM->VMEM DMA + VMEM blocks).
    knl_b = knl_bank.astype(bf16)
    src_m = src_mask.astype(f32)
    knl_m = knl_mask.astype(f32)

    act_specs = [
        pl.BlockSpec((1, S, D), lambda b: (b, 0, 0)),      # inputs (f32)
        pl.BlockSpec((1, Lk, D), lambda b: (b, 0, 0)),     # knl_bank (bf16)
        pl.BlockSpec((1, Lh, D), lambda b: (b, 0, 0)),     # his_bank (bf16)
        pl.BlockSpec((1, 1, S), lambda b: (b, 0, 0)),      # src_mask
        pl.BlockSpec((1, 1, Lk), lambda b: (b, 0, 0)),     # knl_mask
        pl.BlockSpec((1, 1, Lh), lambda b: (b, 0, 0)),     # his_mask
    ]
    # Weights / biases / LN params: whole-array resident in VMEM, single
    # buffered (no per-step DMA, no double-buffer VMEM cost).
    const_spec = pl.BlockSpec(memory_space=pltpu.MemorySpace.VMEM)
    in_specs = act_specs + [const_spec] * 28

    kernel = functools.partial(_encoder_layer_kernel, heads=heads,
                               has_his=has_his)

    return pl.pallas_call(
        kernel,
        out_shape=jax.ShapeDtypeStruct((B, S, D), f32),
        grid=(B,),
        in_specs=in_specs,
        out_specs=pl.BlockSpec((1, S, D), lambda b: (b, 0, 0)),
        compiler_params=pltpu.CompilerParams(
            dimension_semantics=("parallel",),
            vmem_limit_bytes=_vmem_limit_bytes(),
        ),
    )(inputs, knl_b, his_b,
      src_m, knl_m, his_m,
      params["ln1_g"], params["ln1_b"],
      params["ln2_g"], params["ln2_b"],
      params["ln3_g"], params["ln3_b"],
      *sa, *ka, *ca,
      ff_g, ff_b, w1, b1, w2, b2)


# ----------------------------------------------------------------------------
# Deterministic parameter init (synthetic; shapes follow the module __init__).
# Linear weights are stored as (in, out) bf16 (x @ W + b  ==  x @ W_pt.T + b),
# Q/K/V weights are fused and the 1/sqrt(dh) query scale is folded into Wq/bq.
# ----------------------------------------------------------------------------
def init_params(key, d_model, d_ff, heads):
    bf16 = jnp.bfloat16
    scale = 1.0 / math.sqrt(d_model // heads)

    def lin(k, fan_in, fan_out):
        kw, kb = jax.random.split(k)
        w = jax.random.normal(kw, (fan_in, fan_out), jnp.float32) * 0.05
        b = jax.random.normal(kb, (1, fan_out), jnp.float32) * 0.05
        return w, b

    def self_attn_params(k):
        ks = jax.random.split(k, 4)
        wq, bq = lin(ks[0], d_model, d_model)
        wk, bk = lin(ks[1], d_model, d_model)
        wv, bv = lin(ks[2], d_model, d_model)
        wo, bo = lin(ks[3], d_model, d_model)
        w_qkv = jnp.concatenate([wq * scale, wk, wv], axis=1).astype(bf16)
        b_qkv = jnp.concatenate([bq * scale, bk, bv], axis=1)
        return (w_qkv, b_qkv, wo.astype(bf16), bo)

    def cross_attn_params(k):
        ks = jax.random.split(k, 4)
        wq, bq = lin(ks[0], d_model, d_model)
        wk, bk = lin(ks[1], d_model, d_model)
        wv, bv = lin(ks[2], d_model, d_model)
        wo, bo = lin(ks[3], d_model, d_model)
        w_kv = jnp.concatenate([wk, wv], axis=1).astype(bf16)
        b_kv = jnp.concatenate([bk, bv], axis=1)
        return ((wq * scale).astype(bf16), bq * scale, w_kv, b_kv,
                wo.astype(bf16), bo)

    keys = jax.random.split(key, 6)
    w1, b1 = lin(keys[3], d_model, d_ff)
    w2, b2 = lin(keys[4], d_ff, d_model)
    ones = jnp.ones((1, d_model), jnp.float32)
    zeros = jnp.zeros((1, d_model), jnp.float32)
    # TODO(synk): on v7x the FFN weights could additionally be quantized to fp8
    #             (f32 accumulation) if the accuracy budget allows.
    return {
        "self_attn": self_attn_params(keys[0]),
        "knl_attn": cross_attn_params(keys[1]),
        "ctx_attn": cross_attn_params(keys[2]),
        "ffn": (ones, zeros, w1.astype(bf16), b1, w2.astype(bf16), b2),
        "ln1_g": ones, "ln1_b": zeros,
        "ln2_g": ones, "ln2_b": zeros,
        "ln3_g": ones, "ln3_b": zeros,
    }


# ----------------------------------------------------------------------------
if __name__ == "__main__":
    B, S, D, H, F = 2, 8, 32, 4, 64
    KNL, HIS = 16, 8

    key = jax.random.PRNGKey(0)
    k_inp, k_knl, k_his, k_par = jax.random.split(key, 4)

    inputs = jax.random.normal(k_inp, (B, S, D), jnp.float32)
    knl_bank = jax.random.normal(k_knl, (B, KNL, D), jnp.float32)
    his_bank = jax.random.normal(k_his, (HIS, B, D), jnp.float32)  # [his_len, batch, dim]

    # Padding masks (True = position masked out), shape [batch, 1, key_len]
    src_mask = jnp.zeros((B, 1, S), dtype=bool).at[1, 0, S - 2:].set(True)
    knl_mask = jnp.zeros((B, 1, KNL), dtype=bool).at[0, 0, KNL - 4:].set(True)
    his_mask = jnp.zeros((B, 1, HIS), dtype=bool).at[1, 0, HIS - 3:].set(True)

    params = init_params(k_par, D, F, H)

    out = a_transformer_encoder_layer(inputs, src_mask, knl_bank, knl_mask,
                                      his_bank, his_mask, params, H)
    out = jax.block_until_ready(out)
    assert out.shape == (B, S, D) and out.dtype == jnp.float32
    assert bool(jnp.all(jnp.isfinite(out)))
    print("KERNEL_OK")
</pallas_src>

<mosaic_0001>
module attributes {stable_mosaic.version = 11 : i64} {
  func.func @_encoder_layer_kernel(%arg0: i32, %arg1: memref<1x8x32xf32, #tpu.memory_space<vmem>>, %arg2: memref<1x16x32xbf16, #tpu.memory_space<vmem>>, %arg3: memref<1x8x32xbf16, #tpu.memory_space<vmem>>, %arg4: memref<1x1x8xf32, #tpu.memory_space<vmem>>, %arg5: memref<1x1x16xf32, #tpu.memory_space<vmem>>, %arg6: memref<1x1x8xf32, #tpu.memory_space<vmem>>, %arg7: memref<1x32xf32, #tpu.memory_space<vmem>>, %arg8: memref<1x32xf32, #tpu.memory_space<vmem>>, %arg9: memref<1x32xf32, #tpu.memory_space<vmem>>, %arg10: memref<1x32xf32, #tpu.memory_space<vmem>>, %arg11: memref<1x32xf32, #tpu.memory_space<vmem>>, %arg12: memref<1x32xf32, #tpu.memory_space<vmem>>, %arg13: memref<32x96xbf16, #tpu.memory_space<vmem>>, %arg14: memref<1x96xf32, #tpu.memory_space<vmem>>, %arg15: memref<32x32xbf16, #tpu.memory_space<vmem>>, %arg16: memref<1x32xf32, #tpu.memory_space<vmem>>, %arg17: memref<32x32xbf16, #tpu.memory_space<vmem>>, %arg18: memref<1x32xf32, #tpu.memory_space<vmem>>, %arg19: memref<32x64xbf16, #tpu.memory_space<vmem>>, %arg20: memref<1x64xf32, #tpu.memory_space<vmem>>, %arg21: memref<32x32xbf16, #tpu.memory_space<vmem>>, %arg22: memref<1x32xf32, #tpu.memory_space<vmem>>, %arg23: memref<32x32xbf16, #tpu.memory_space<vmem>>, %arg24: memref<1x32xf32, #tpu.memory_space<vmem>>, %arg25: memref<32x64xbf16, #tpu.memory_space<vmem>>, %arg26: memref<1x64xf32, #tpu.memory_space<vmem>>, %arg27: memref<32x32xbf16, #tpu.memory_space<vmem>>, %arg28: memref<1x32xf32, #tpu.memory_space<vmem>>, %arg29: memref<1x32xf32, #tpu.memory_space<vmem>>, %arg30: memref<1x32xf32, #tpu.memory_space<vmem>>, %arg31: memref<32x64xbf16, #tpu.memory_space<vmem>>, %arg32: memref<1x64xf32, #tpu.memory_space<vmem>>, %arg33: memref<64x32xbf16, #tpu.memory_space<vmem>>, %arg34: memref<1x32xf32, #tpu.memory_space<vmem>>, %arg35: memref<1x8x32xf32, #tpu.memory_space<vmem>>) attributes {dimension_semantics = [#tpu.dimension_semantics<parallel>], iteration_bounds = array<i64: 2>, scalar_prefetch = 0 : i64, scratch_operands = 0 : i64, tpu.core_type = #tpu.core_type<tc>, window_params = [{transform_indices = @transform_0, window_bounds = array<i64: 1, 8, 32>}, {transform_indices = @transform_1, window_bounds = array<i64: 1, 16, 32>}, {transform_indices = @transform_2, window_bounds = array<i64: 1, 8, 32>}, {transform_indices = @transform_3, window_bounds = array<i64: 1, 1, 8>}, {transform_indices = @transform_4, window_bounds = array<i64: 1, 1, 16>}, {transform_indices = @transform_5, window_bounds = array<i64: 1, 1, 8>}, {pipeline_mode = #tpu.pipeline_mode<synchronous>, transform_indices = @transform_6, window_bounds = array<i64: 1, 32>}, {pipeline_mode = #tpu.pipeline_mode<synchronous>, transform_indices = @transform_7, window_bounds = array<i64: 1, 32>}, {pipeline_mode = #tpu.pipeline_mode<synchronous>, transform_indices = @transform_8, window_bounds = array<i64: 1, 32>}, {pipeline_mode = #tpu.pipeline_mode<synchronous>, transform_indices = @transform_9, window_bounds = array<i64: 1, 32>}, {pipeline_mode = #tpu.pipeline_mode<synchronous>, transform_indices = @transform_10, window_bounds = array<i64: 1, 32>}, {pipeline_mode = #tpu.pipeline_mode<synchronous>, transform_indices = @transform_11, window_bounds = array<i64: 1, 32>}, {pipeline_mode = #tpu.pipeline_mode<synchronous>, transform_indices = @transform_12, window_bounds = array<i64: 32, 96>}, {pipeline_mode = #tpu.pipeline_mode<synchronous>, transform_indices = @transform_13, window_bounds = array<i64: 1, 96>}, {pipeline_mode = #tpu.pipeline_mode<synchronous>, transform_indices = @transform_14, window_bounds = array<i64: 32, 32>}, {pipeline_mode = #tpu.pipeline_mode<synchronous>, transform_indices = @transform_15, window_bounds = array<i64: 1, 32>}, {pipeline_mode = #tpu.pipeline_mode<synchronous>, transform_indices = @transform_16, window_bounds = array<i64: 32, 32>}, {pipeline_mode = #tpu.pipeline_mode<synchronous>, transform_indices = @transform_17, window_bounds = array<i64: 1, 32>}, {pipeline_mode = #tpu.pipeline_mode<synchronous>, transform_indices = @transform_18, window_bounds = array<i64: 32, 64>}, {pipeline_mode = #tpu.pipeline_mode<synchronous>, transform_indices = @transform_19, window_bounds = array<i64: 1, 64>}, {pipeline_mode = #tpu.pipeline_mode<synchronous>, transform_indices = @transform_20, window_bounds = array<i64: 32, 32>}, {pipeline_mode = #tpu.pipeline_mode<synchronous>, transform_indices = @transform_21, window_bounds = array<i64: 1, 32>}, {pipeline_mode = #tpu.pipeline_mode<synchronous>, transform_indices = @transform_22, window_bounds = array<i64: 32, 32>}, {pipeline_mode = #tpu.pipeline_mode<synchronous>, transform_indices = @transform_23, window_bounds = array<i64: 1, 32>}, {pipeline_mode = #tpu.pipeline_mode<synchronous>, transform_indices = @transform_24, window_bounds = array<i64: 32, 64>}, {pipeline_mode = #tpu.pipeline_mode<synchronous>, transform_indices = @transform_25, window_bounds = array<i64: 1, 64>}, {pipeline_mode = #tpu.pipeline_mode<synchronous>, transform_indices = @transform_26, window_bounds = array<i64: 32, 32>}, {pipeline_mode = #tpu.pipeline_mode<synchronous>, transform_indices = @transform_27, window_bounds = array<i64: 1, 32>}, {pipeline_mode = #tpu.pipeline_mode<synchronous>, transform_indices = @transform_28, window_bounds = array<i64: 1, 32>}, {pipeline_mode = #tpu.pipeline_mode<synchronous>, transform_indices = @transform_29, window_bounds = array<i64: 1, 32>}, {pipeline_mode = #tpu.pipeline_mode<synchronous>, transform_indices = @transform_30, window_bounds = array<i64: 32, 64>}, {pipeline_mode = #tpu.pipeline_mode<synchronous>, transform_indices = @transform_31, window_bounds = array<i64: 1, 64>}, {pipeline_mode = #tpu.pipeline_mode<synchronous>, transform_indices = @transform_32, window_bounds = array<i64: 64, 32>}, {pipeline_mode = #tpu.pipeline_mode<synchronous>, transform_indices = @transform_33, window_bounds = array<i64: 1, 32>}, {transform_indices = @transform_34, window_bounds = array<i64: 1, 8, 32>}]} {
    %c0 = arith.constant 0 : index
    %c0_0 = arith.constant 0 : index
    %c0_1 = arith.constant 0 : index
    %0 = vector.load %arg1[%c0, %c0_0, %c0_1] : memref<1x8x32xf32, #tpu.memory_space<vmem>>, vector<1x8x32xf32>
    %1 = vector.shape_cast %0 : vector<1x8x32xf32> to vector<8x32xf32>
    %c0_2 = arith.constant 0 : index
    %c0_3 = arith.constant 0 : index
    %2 = vector.load %arg7[%c0_2, %c0_3] : memref<1x32xf32, #tpu.memory_space<vmem>>, vector<1x32xf32>
    %c0_4 = arith.constant 0 : index
    %c0_5 = arith.constant 0 : index
    %3 = vector.load %arg8[%c0_4, %c0_5] : memref<1x32xf32, #tpu.memory_space<vmem>>, vector<1x32xf32>
    %cst = arith.constant dense<0.000000e+00> : vector<8xf32>
    %4 = vector.multi_reduction <add>, %1, %cst [1] : vector<8x32xf32> to vector<8xf32>
    %5 = vector.shape_cast %4 : vector<8xf32> to vector<8x1xf32>
    %cst_6 = arith.constant 3.200000e+01 : f32
    %6 = vector.broadcast %cst_6 : f32 to vector<8x1xf32>
    %7 = arith.divf %5, %6 : vector<8x1xf32>
    %8 = vector.broadcast %7 : vector<8x1xf32> to vector<8x32xf32>
    %9 = arith.subf %1, %8 : vector<8x32xf32>
    %10 = arith.mulf %9, %9 : vector<8x32xf32>
    %cst_7 = arith.constant dense<0.000000e+00> : vector<8xf32>
    %11 = vector.multi_reduction <add>, %10, %cst_7 [1] : vector<8x32xf32> to vector<8xf32>
    %12 = vector.shape_cast %11 : vector<8xf32> to vector<8x1xf32>
    %cst_8 = arith.constant 3.200000e+01 : f32
    %13 = vector.broadcast %cst_8 : f32 to vector<8x1xf32>
    %14 = arith.divf %12, %13 : vector<8x1xf32>
    %15 = vector.broadcast %7 : vector<8x1xf32> to vector<8x32xf32>
    %16 = arith.subf %1, %15 : vector<8x32xf32>
    %cst_9 = arith.constant 9.99999997E-7 : f32
    %17 = vector.broadcast %cst_9 : f32 to vector<8x1xf32>
    %18 = arith.addf %14, %17 : vector<8x1xf32>
    %19 = math.rsqrt %18 : vector<8x1xf32>
    %20 = vector.broadcast %19 : vector<8x1xf32> to vector<8x32xf32>
    %21 = arith.mulf %16, %20 : vector<8x32xf32>
    %22 = vector.broadcast %2 : vector<1x32xf32> to vector<8x32xf32>
    %23 = arith.mulf %21, %22 : vector<8x32xf32>
    %24 = vector.broadcast %3 : vector<1x32xf32> to vector<8x32xf32>
    %25 = arith.addf %23, %24 : vector<8x32xf32>
    %26 = arith.truncf %25 : vector<8x32xf32> to vector<8x32xbf16>
    %c0_10 = arith.constant 0 : index
    %c0_11 = arith.constant 0 : index
    %c0_12 = arith.constant 0 : index
    %27 = vector.load %arg4[%c0_10, %c0_11, %c0_12] : memref<1x1x8xf32, #tpu.memory_space<vmem>>, vector<1x1x8xf32>
    %28 = vector.shape_cast %27 : vector<1x1x8xf32> to vector<1x8xf32>
    %cst_13 = arith.constant 5.000000e-01 : f32
    %29 = vector.broadcast %cst_13 : f32 to vector<1x8xf32>
    %30 = arith.cmpf ogt, %28, %29 : vector<1x8xf32>
    %c0_14 = arith.constant 0 : index
    %c0_15 = arith.constant 0 : index
    %31 = vector.load %arg13[%c0_14, %c0_15] : memref<32x96xbf16, #tpu.memory_space<vmem>>, vector<32x96xbf16>
    %cst_16 = arith.constant dense<0.000000e+00> : vector<8x96xf32>
    %32 = tpu.matmul %26, %31, %cst_16 {dimension_numbers = #tpu.dot_dimension_numbers<[1], [0], [0], [1], [0, 0, 1, 1], [], []>} : vector<8x32xbf16>, vector<32x96xbf16>, vector<8x96xf32> -> vector<8x96xf32>
    %c0_17 = arith.constant 0 : index
    %c0_18 = arith.constant 0 : index
    %33 = vector.load %arg14[%c0_17, %c0_18] : memref<1x96xf32, #tpu.memory_space<vmem>>, vector<1x96xf32>
    %34 = vector.broadcast %33 : vector<1x96xf32> to vector<8x96xf32>
    %35 = arith.addf %32, %34 : vector<8x96xf32>
    %36 = arith.truncf %35 : vector<8x96xf32> to vector<8x96xbf16>
    %37 = vector.extract_strided_slice %36 {offsets = [0, 0], sizes = [8, 32], strides = [1, 1]} : vector<8x96xbf16> to vector<8x32xbf16>
    %38 = vector.extract_strided_slice %36 {offsets = [0, 32], sizes = [8, 32], strides = [1, 1]} : vector<8x96xbf16> to vector<8x32xbf16>
    %39 = vector.extract_strided_slice %36 {offsets = [0, 64], sizes = [8, 32], strides = [1, 1]} : vector<8x96xbf16> to vector<8x32xbf16>
    %40 = vector.shape_cast %37 : vector<8x32xbf16> to vector<8x4x8xbf16>
    %41 = tpu.transpose %40, [1, 0, 2] : vector<8x4x8xbf16> -> vector<4x8x8xbf16>
    %42 = vector.shape_cast %38 : vector<8x32xbf16> to vector<8x4x8xbf16>
    %43 = tpu.transpose %42, [1, 0, 2] : vector<8x4x8xbf16> -> vector<4x8x8xbf16>
    %44 = vector.shape_cast %39 : vector<8x32xbf16> to vector<8x4x8xbf16>
    %45 = tpu.transpose %44, [1, 0, 2] : vector<8x4x8xbf16> -> vector<4x8x8xbf16>
    "tpu.trace_start"() <{level = 10 : i32, message = "hqd,hkd->hqk"}> : () -> ()
    %cst_19 = arith.constant dense<0.000000e+00> : vector<4x8x8xf32>
    %46 = tpu.matmul %41, %43, %cst_19 {dimension_numbers = #tpu.dot_dimension_numbers<[2], [2], [1], [1], [0, 0, 0, 1, 1, 1], [0], [0]>} : vector<4x8x8xbf16>, vector<4x8x8xbf16>, vector<4x8x8xf32> -> vector<4x8x8xf32>
    "tpu.trace_stop"() : () -> ()
    %47 = vector.shape_cast %30 : vector<1x8xi1> to vector<1x1x8xi1>
    %cst_20 = arith.constant -9.99999984E+17 : f32
    %48 = vector.shape_cast %47 : vector<1x1x8xi1> to vector<1x1x8xi1>
    %49 = vector.broadcast %48 : vector<1x1x8xi1> to vector<4x8x8xi1>
    %50 = vector.broadcast %cst_20 : f32 to vector<4x8x8xf32>
    %51 = arith.select %49, %50, %46 : vector<4x8x8xi1>, vector<4x8x8xf32>
    %cst_21 = arith.constant dense<0xFF800000> : vector<4x8xf32>
    %52 = vector.multi_reduction <maximumf>, %51, %cst_21 [2] : vector<4x8x8xf32> to vector<4x8xf32>
    %53 = vector.shape_cast %52 : vector<4x8xf32> to vector<4x8x1xf32>
    %54 = vector.broadcast %53 : vector<4x8x1xf32> to vector<4x8x8xf32>
    %55 = arith.subf %51, %54 : vector<4x8x8xf32>
    %56 = math.exp %55 : vector<4x8x8xf32>
    %cst_22 = arith.constant dense<0.000000e+00> : vector<4x8xf32>
    %57 = vector.multi_reduction <add>, %56, %cst_22 [2] : vector<4x8x8xf32> to vector<4x8xf32>
    %58 = vector.shape_cast %57 : vector<4x8xf32> to vector<4x8x1xf32>
    %59 = tpu.reciprocal %58 {approx = true} : vector<4x8x1xf32> -> vector<4x8x1xf32>
    %60 = vector.broadcast %59 : vector<4x8x1xf32> to vector<4x8x8xf32>
    %61 = arith.mulf %56, %60 : vector<4x8x8xf32>
    %62 = arith.truncf %61 : vector<4x8x8xf32> to vector<4x8x8xbf16>
    "tpu.trace_start"() <{level = 10 : i32, message = "hqk,hkd->hqd"}> : () -> ()
    %cst_23 = arith.constant dense<0.000000e+00> : vector<4x8x8xf32>
    %63 = tpu.matmul %62, %45, %cst_23 {dimension_numbers = #tpu.dot_dimension_numbers<[2], [1], [1], [2], [0, 0, 0, 1, 1, 2], [0], [0]>} : vector<4x8x8xbf16>, vector<4x8x8xbf16>, vector<4x8x8xf32> -> vector<4x8x8xf32>
    "tpu.trace_stop"() : () -> ()
    %64 = tpu.transpose %63, [1, 0, 2] : vector<4x8x8xf32> -> vector<8x4x8xf32>
    %65 = vector.shape_cast %64 : vector<8x4x8xf32> to vector<8x32xf32>
    %66 = arith.truncf %65 : vector<8x32xf32> to vector<8x32xbf16>
    %c0_24 = arith.constant 0 : index
    %c0_25 = arith.constant 0 : index
    %67 = vector.load %arg15[%c0_24, %c0_25] : memref<32x32xbf16, #tpu.memory_space<vmem>>, vector<32x32xbf16>
    %cst_26 = arith.constant dense<0.000000e+00> : vector<8x32xf32>
    %68 = tpu.matmul %66, %67, %cst_26 {dimension_numbers = #tpu.dot_dimension_numbers<[1], [0], [0], [1], [0, 0, 1, 1], [], []>} : vector<8x32xbf16>, vector<32x32xbf16>, vector<8x32xf32> -> vector<8x32xf32>
    %c0_27 = arith.constant 0 : index
    %c0_28 = arith.constant 0 : index
    %69 = vector.load %arg16[%c0_27, %c0_28] : memref<1x32xf32, #tpu.memory_space<vmem>>, vector<1x32xf32>
    %70 = vector.broadcast %69 : vector<1x32xf32> to vector<8x32xf32>
    %71 = arith.addf %68, %70 : vector<8x32xf32>
    %72 = arith.addf %71, %1 : vector<8x32xf32>
    %c0_29 = arith.constant 0 : index
    %c0_30 = arith.constant 0 : index
    %73 = vector.load %arg9[%c0_29, %c0_30] : memref<1x32xf32, #tpu.memory_space<vmem>>, vector<1x32xf32>
    %c0_31 = arith.constant 0 : index
    %c0_32 = arith.constant 0 : index
    %74 = vector.load %arg10[%c0_31, %c0_32] : memref<1x32xf32, #tpu.memory_space<vmem>>, vector<1x32xf32>
    %cst_33 = arith.constant dense<0.000000e+00> : vector<8xf32>
    %75 = vector.multi_reduction <add>, %72, %cst_33 [1] : vector<8x32xf32> to vector<8xf32>
    %76 = vector.shape_cast %75 : vector<8xf32> to vector<8x1xf32>
    %cst_34 = arith.constant 3.200000e+01 : f32
    %77 = vector.broadcast %cst_34 : f32 to vector<8x1xf32>
    %78 = arith.divf %76, %77 : vector<8x1xf32>
    %79 = vector.broadcast %78 : vector<8x1xf32> to vector<8x32xf32>
    %80 = arith.subf %72, %79 : vector<8x32xf32>
    %81 = arith.mulf %80, %80 : vector<8x32xf32>
    %cst_35 = arith.constant dense<0.000000e+00> : vector<8xf32>
    %82 = vector.multi_reduction <add>, %81, %cst_35 [1] : vector<8x32xf32> to vector<8xf32>
    %83 = vector.shape_cast %82 : vector<8xf32> to vector<8x1xf32>
    %cst_36 = arith.constant 3.200000e+01 : f32
    %84 = vector.broadcast %cst_36 : f32 to vector<8x1xf32>
    %85 = arith.divf %83, %84 : vector<8x1xf32>
    %86 = vector.broadcast %78 : vector<8x1xf32> to vector<8x32xf32>
    %87 = arith.subf %72, %86 : vector<8x32xf32>
    %cst_37 = arith.constant 9.99999997E-7 : f32
    %88 = vector.broadcast %cst_37 : f32 to vector<8x1xf32>
    %89 = arith.addf %85, %88 : vector<8x1xf32>
    %90 = math.rsqrt %89 : vector<8x1xf32>
    %91 = vector.broadcast %90 : vector<8x1xf32> to vector<8x32xf32>
    %92 = arith.mulf %87, %91 : vector<8x32xf32>
    %93 = vector.broadcast %73 : vector<1x32xf32> to vector<8x32xf32>
    %94 = arith.mulf %92, %93 : vector<8x32xf32>
    %95 = vector.broadcast %74 : vector<1x32xf32> to vector<8x32xf32>
    %96 = arith.addf %94, %95 : vector<8x32xf32>
    %97 = arith.truncf %96 : vector<8x32xf32> to vector<8x32xbf16>
    %c0_38 = arith.constant 0 : index
    %c0_39 = arith.constant 0 : index
    %c0_40 = arith.constant 0 : index
    %98 = vector.load %arg2[%c0_38, %c0_39, %c0_40] : memref<1x16x32xbf16, #tpu.memory_space<vmem>>, vector<1x16x32xbf16>
    %99 = vector.shape_cast %98 : vector<1x16x32xbf16> to vector<16x32xbf16>
    %c0_41 = arith.constant 0 : index
    %c0_42 = arith.constant 0 : index
    %c0_43 = arith.constant 0 : index
    %100 = vector.load %arg5[%c0_41, %c0_42, %c0_43] : memref<1x1x16xf32, #tpu.memory_space<vmem>>, vector<1x1x16xf32>
    %101 = vector.shape_cast %100 : vector<1x1x16xf32> to vector<1x16xf32>
    %cst_44 = arith.constant 5.000000e-01 : f32
    %102 = vector.broadcast %cst_44 : f32 to vector<1x16xf32>
    %103 = arith.cmpf ogt, %101, %102 : vector<1x16xf32>
    %c0_45 = arith.constant 0 : index
    %c0_46 = arith.constant 0 : index
    %104 = vector.load %arg17[%c0_45, %c0_46] : memref<32x32xbf16, #tpu.memory_space<vmem>>, vector<32x32xbf16>
    %cst_47 = arith.constant dense<0.000000e+00> : vector<8x32xf32>
    %105 = tpu.matmul %97, %104, %cst_47 {dimension_numbers = #tpu.dot_dimension_numbers<[1], [0], [0], [1], [0, 0, 1, 1], [], []>} : vector<8x32xbf16>, vector<32x32xbf16>, vector<8x32xf32> -> vector<8x32xf32>
    %c0_48 = arith.constant 0 : index
    %c0_49 = arith.constant 0 : index
    %106 = vector.load %arg18[%c0_48, %c0_49] : memref<1x32xf32, #tpu.memory_space<vmem>>, vector<1x32xf32>
    %107 = vector.broadcast %106 : vector<1x32xf32> to vector<8x32xf32>
    %108 = arith.addf %105, %107 : vector<8x32xf32>
    %109 = arith.truncf %108 : vector<8x32xf32> to vector<8x32xbf16>
    %c0_50 = arith.constant 0 : index
    %c0_51 = arith.constant 0 : index
    %110 = vector.load %arg19[%c0_50, %c0_51] : memref<32x64xbf16, #tpu.memory_space<vmem>>, vector<32x64xbf16>
    %cst_52 = arith.constant dense<0.000000e+00> : vector<16x64xf32>
    %111 = tpu.matmul %99, %110, %cst_52 {dimension_numbers = #tpu.dot_dimension_numbers<[1], [0], [0], [1], [0, 0, 1, 1], [], []>} : vector<16x32xbf16>, vector<32x64xbf16>, vector<16x64xf32> -> vector<16x64xf32>
    %c0_53 = arith.constant 0 : index
    %c0_54 = arith.constant 0 : index
    %112 = vector.load %arg20[%c0_53, %c0_54] : memref<1x64xf32, #tpu.memory_space<vmem>>, vector<1x64xf32>
    %113 = vector.broadcast %112 : vector<1x64xf32> to vector<16x64xf32>
    %114 = arith.addf %111, %113 : vector<16x64xf32>
    %115 = arith.truncf %114 : vector<16x64xf32> to vector<16x64xbf16>
    %116 = vector.extract_strided_slice %115 {offsets = [0, 0], sizes = [16, 32], strides = [1, 1]} : vector<16x64xbf16> to vector<16x32xbf16>
    %117 = vector.extract_strided_slice %115 {offsets = [0, 32], sizes = [16, 32], strides = [1, 1]} : vector<16x64xbf16> to vector<16x32xbf16>
    %118 = vector.shape_cast %109 : vector<8x32xbf16> to vector<8x4x8xbf16>
    %119 = tpu.transpose %118, [1, 0, 2] : vector<8x4x8xbf16> -> vector<4x8x8xbf16>
    %120 = vector.shape_cast %116 : vector<16x32xbf16> to vector<16x4x8xbf16>
    %121 = tpu.transpose %120, [1, 0, 2] : vector<16x4x8xbf16> -> vector<4x16x8xbf16>
    %122 = vector.shape_cast %117 : vector<16x32xbf16> to vector<16x4x8xbf16>
    %123 = tpu.transpose %122, [1, 0, 2] : vector<16x4x8xbf16> -> vector<4x16x8xbf16>
    "tpu.trace_start"() <{level = 10 : i32, message = "hqd,hkd->hqk"}> : () -> ()
    %cst_55 = arith.constant dense<0.000000e+00> : vector<4x8x16xf32>
    %124 = tpu.matmul %119, %121, %cst_55 {dimension_numbers = #tpu.dot_dimension_numbers<[2], [2], [1], [1], [0, 0, 0, 1, 1, 1], [0], [0]>} : vector<4x8x8xbf16>, vector<4x16x8xbf16>, vector<4x8x16xf32> -> vector<4x8x16xf32>
    "tpu.trace_stop"() : () -> ()
    %125 = vector.shape_cast %103 : vector<1x16xi1> to vector<1x1x16xi1>
    %cst_56 = arith.constant -9.99999984E+17 : f32
    %126 = vector.shape_cast %125 : vector<1x1x16xi1> to vector<1x1x16xi1>
    %127 = vector.broadcast %126 : vector<1x1x16xi1> to vector<4x8x16xi1>
    %128 = vector.broadcast %cst_56 : f32 to vector<4x8x16xf32>
    %129 = arith.select %127, %128, %124 : vector<4x8x16xi1>, vector<4x8x16xf32>
    %cst_57 = arith.constant dense<0xFF800000> : vector<4x8xf32>
    %130 = vector.multi_reduction <maximumf>, %129, %cst_57 [2] : vector<4x8x16xf32> to vector<4x8xf32>
    %131 = vector.shape_cast %130 : vector<4x8xf32> to vector<4x8x1xf32>
    %132 = vector.broadcast %131 : vector<4x8x1xf32> to vector<4x8x16xf32>
    %133 = arith.subf %129, %132 : vector<4x8x16xf32>
    %134 = math.exp %133 : vector<4x8x16xf32>
    %cst_58 = arith.constant dense<0.000000e+00> : vector<4x8xf32>
    %135 = vector.multi_reduction <add>, %134, %cst_58 [2] : vector<4x8x16xf32> to vector<4x8xf32>
    %136 = vector.shape_cast %135 : vector<4x8xf32> to vector<4x8x1xf32>
    %137 = tpu.reciprocal %136 {approx = true} : vector<4x8x1xf32> -> vector<4x8x1xf32>
    %138 = vector.broadcast %137 : vector<4x8x1xf32> to vector<4x8x16xf32>
    %139 = arith.mulf %134, %138 : vector<4x8x16xf32>
    %140 = arith.truncf %139 : vector<4x8x16xf32> to vector<4x8x16xbf16>
    "tpu.trace_start"() <{level = 10 : i32, message = "hqk,hkd->hqd"}> : () -> ()
    %cst_59 = arith.constant dense<0.000000e+00> : vector<4x8x8xf32>
    %141 = tpu.matmul %140, %123, %cst_59 {dimension_numbers = #tpu.dot_dimension_numbers<[2], [1], [1], [2], [0, 0, 0, 1, 1, 2], [0], [0]>} : vector<4x8x16xbf16>, vector<4x16x8xbf16>, vector<4x8x8xf32> -> vector<4x8x8xf32>
    "tpu.trace_stop"() : () -> ()
    %142 = tpu.transpose %141, [1, 0, 2] : vector<4x8x8xf32> -> vector<8x4x8xf32>
    %143 = vector.shape_cast %142 : vector<8x4x8xf32> to vector<8x32xf32>
    %144 = arith.truncf %143 : vector<8x32xf32> to vector<8x32xbf16>
    %c0_60 = arith.constant 0 : index
    %c0_61 = arith.constant 0 : index
    %145 = vector.load %arg21[%c0_60, %c0_61] : memref<32x32xbf16, #tpu.memory_space<vmem>>, vector<32x32xbf16>
    %cst_62 = arith.constant dense<0.000000e+00> : vector<8x32xf32>
    %146 = tpu.matmul %144, %145, %cst_62 {dimension_numbers = #tpu.dot_dimension_numbers<[1], [0], [0], [1], [0, 0, 1, 1], [], []>} : vector<8x32xbf16>, vector<32x32xbf16>, vector<8x32xf32> -> vector<8x32xf32>
    %c0_63 = arith.constant 0 : index
    %c0_64 = arith.constant 0 : index
    %147 = vector.load %arg22[%c0_63, %c0_64] : memref<1x32xf32, #tpu.memory_space<vmem>>, vector<1x32xf32>
    %148 = vector.broadcast %147 : vector<1x32xf32> to vector<8x32xf32>
    %149 = arith.addf %146, %148 : vector<8x32xf32>
    %150 = arith.addf %149, %72 : vector<8x32xf32>
    %c0_65 = arith.constant 0 : index
    %c0_66 = arith.constant 0 : index
    %151 = vector.load %arg11[%c0_65, %c0_66] : memref<1x32xf32, #tpu.memory_space<vmem>>, vector<1x32xf32>
    %c0_67 = arith.constant 0 : index
    %c0_68 = arith.constant 0 : index
    %152 = vector.load %arg12[%c0_67, %c0_68] : memref<1x32xf32, #tpu.memory_space<vmem>>, vector<1x32xf32>
    %cst_69 = arith.constant dense<0.000000e+00> : vector<8xf32>
    %153 = vector.multi_reduction <add>, %150, %cst_69 [1] : vector<8x32xf32> to vector<8xf32>
    %154 = vector.shape_cast %153 : vector<8xf32> to vector<8x1xf32>
    %cst_70 = arith.constant 3.200000e+01 : f32
    %155 = vector.broadcast %cst_70 : f32 to vector<8x1xf32>
    %156 = arith.divf %154, %155 : vector<8x1xf32>
    %157 = vector.broadcast %156 : vector<8x1xf32> to vector<8x32xf32>
    %158 = arith.subf %150, %157 : vector<8x32xf32>
    %159 = arith.mulf %158, %158 : vector<8x32xf32>
    %cst_71 = arith.constant dense<0.000000e+00> : vector<8xf32>
    %160 = vector.multi_reduction <add>, %159, %cst_71 [1] : vector<8x32xf32> to vector<8xf32>
    %161 = vector.shape_cast %160 : vector<8xf32> to vector<8x1xf32>
    %cst_72 = arith.constant 3.200000e+01 : f32
    %162 = vector.broadcast %cst_72 : f32 to vector<8x1xf32>
    %163 = arith.divf %161, %162 : vector<8x1xf32>
    %164 = vector.broadcast %156 : vector<8x1xf32> to vector<8x32xf32>
    %165 = arith.subf %150, %164 : vector<8x32xf32>
    %cst_73 = arith.constant 9.99999997E-7 : f32
    %166 = vector.broadcast %cst_73 : f32 to vector<8x1xf32>
    %167 = arith.addf %163, %166 : vector<8x1xf32>
    %168 = math.rsqrt %167 : vector<8x1xf32>
    %169 = vector.broadcast %168 : vector<8x1xf32> to vector<8x32xf32>
    %170 = arith.mulf %165, %169 : vector<8x32xf32>
    %171 = vector.broadcast %151 : vector<1x32xf32> to vector<8x32xf32>
    %172 = arith.mulf %170, %171 : vector<8x32xf32>
    %173 = vector.broadcast %152 : vector<1x32xf32> to vector<8x32xf32>
    %174 = arith.addf %172, %173 : vector<8x32xf32>
    %175 = arith.truncf %174 : vector<8x32xf32> to vector<8x32xbf16>
    %c0_74 = arith.constant 0 : index
    %c0_75 = arith.constant 0 : index
    %c0_76 = arith.constant 0 : index
    %176 = vector.load %arg3[%c0_74, %c0_75, %c0_76] : memref<1x8x32xbf16, #tpu.memory_space<vmem>>, vector<1x8x32xbf16>
    %177 = vector.shape_cast %176 : vector<1x8x32xbf16> to vector<8x32xbf16>
    %c0_77 = arith.constant 0 : index
    %c0_78 = arith.constant 0 : index
    %c0_79 = arith.constant 0 : index
    %178 = vector.load %arg6[%c0_77, %c0_78, %c0_79] : memref<1x1x8xf32, #tpu.memory_space<vmem>>, vector<1x1x8xf32>
    %179 = vector.shape_cast %178 : vector<1x1x8xf32> to vector<1x8xf32>
    %cst_80 = arith.constant 5.000000e-01 : f32
    %180 = vector.broadcast %cst_80 : f32 to vector<1x8xf32>
    %181 = arith.cmpf ogt, %179, %180 : vector<1x8xf32>
    %c0_81 = arith.constant 0 : index
    %c0_82 = arith.constant 0 : index
    %182 = vector.load %arg23[%c0_81, %c0_82] : memref<32x32xbf16, #tpu.memory_space<vmem>>, vector<32x32xbf16>
    %cst_83 = arith.constant dense<0.000000e+00> : vector<8x32xf32>
    %183 = tpu.matmul %175, %182, %cst_83 {dimension_numbers = #tpu.dot_dimension_numbers<[1], [0], [0], [1], [0, 0, 1, 1], [], []>} : vector<8x32xbf16>, vector<32x32xbf16>, vector<8x32xf32> -> vector<8x32xf32>
    %c0_84 = arith.constant 0 : index
    %c0_85 = arith.constant 0 : index
    %184 = vector.load %arg24[%c0_84, %c0_85] : memref<1x32xf32, #tpu.memory_space<vmem>>, vector<1x32xf32>
    %185 = vector.broadcast %184 : vector<1x32xf32> to vector<8x32xf32>
    %186 = arith.addf %183, %185 : vector<8x32xf32>
    %187 = arith.truncf %186 : vector<8x32xf32> to vector<8x32xbf16>
    %c0_86 = arith.constant 0 : index
    %c0_87 = arith.constant 0 : index
    %188 = vector.load %arg25[%c0_86, %c0_87] : memref<32x64xbf16, #tpu.memory_space<vmem>>, vector<32x64xbf16>
    %cst_88 = arith.constant dense<0.000000e+00> : vector<8x64xf32>
    %189 = tpu.matmul %177, %188, %cst_88 {dimension_numbers = #tpu.dot_dimension_numbers<[1], [0], [0], [1], [0, 0, 1, 1], [], []>} : vector<8x32xbf16>, vector<32x64xbf16>, vector<8x64xf32> -> vector<8x64xf32>
    %c0_89 = arith.constant 0 : index
    %c0_90 = arith.constant 0 : index
    %190 = vector.load %arg26[%c0_89, %c0_90] : memref<1x64xf32, #tpu.memory_space<vmem>>, vector<1x64xf32>
    %191 = vector.broadcast %190 : vector<1x64xf32> to vector<8x64xf32>
    %192 = arith.addf %189, %191 : vector<8x64xf32>
    %193 = arith.truncf %192 : vector<8x64xf32> to vector<8x64xbf16>
    %194 = vector.extract_strided_slice %193 {offsets = [0, 0], sizes = [8, 32], strides = [1, 1]} : vector<8x64xbf16> to vector<8x32xbf16>
    %195 = vector.extract_strided_slice %193 {offsets = [0, 32], sizes = [8, 32], strides = [1, 1]} : vector<8x64xbf16> to vector<8x32xbf16>
    %196 = vector.shape_cast %187 : vector<8x32xbf16> to vector<8x4x8xbf16>
    %197 = tpu.transpose %196, [1, 0, 2] : vector<8x4x8xbf16> -> vector<4x8x8xbf16>
    %198 = vector.shape_cast %194 : vector<8x32xbf16> to vector<8x4x8xbf16>
    %199 = tpu.transpose %198, [1, 0, 2] : vector<8x4x8xbf16> -> vector<4x8x8xbf16>
    %200 = vector.shape_cast %195 : vector<8x32xbf16> to vector<8x4x8xbf16>
    %201 = tpu.transpose %200, [1, 0, 2] : vector<8x4x8xbf16> -> vector<4x8x8xbf16>
    "tpu.trace_start"() <{level = 10 : i32, message = "hqd,hkd->hqk"}> : () -> ()
    %cst_91 = arith.constant dense<0.000000e+00> : vector<4x8x8xf32>
    %202 = tpu.matmul %197, %199, %cst_91 {dimension_numbers = #tpu.dot_dimension_numbers<[2], [2], [1], [1], [0, 0, 0, 1, 1, 1], [0], [0]>} : vector<4x8x8xbf16>, vector<4x8x8xbf16>, vector<4x8x8xf32> -> vector<4x8x8xf32>
    "tpu.trace_stop"() : () -> ()
    %203 = vector.shape_cast %181 : vector<1x8xi1> to vector<1x1x8xi1>
    %cst_92 = arith.constant -9.99999984E+17 : f32
    %204 = vector.shape_cast %203 : vector<1x1x8xi1> to vector<1x1x8xi1>
    %205 = vector.broadcast %204 : vector<1x1x8xi1> to vector<4x8x8xi1>
    %206 = vector.broadcast %cst_92 : f32 to vector<4x8x8xf32>
    %207 = arith.select %205, %206, %202 : vector<4x8x8xi1>, vector<4x8x8xf32>
    %cst_93 = arith.constant dense<0xFF800000> : vector<4x8xf32>
    %208 = vector.multi_reduction <maximumf>, %207, %cst_93 [2] : vector<4x8x8xf32> to vector<4x8xf32>
    %209 = vector.shape_cast %208 : vector<4x8xf32> to vector<4x8x1xf32>
    %210 = vector.broadcast %209 : vector<4x8x1xf32> to vector<4x8x8xf32>
    %211 = arith.subf %207, %210 : vector<4x8x8xf32>
    %212 = math.exp %211 : vector<4x8x8xf32>
    %cst_94 = arith.constant dense<0.000000e+00> : vector<4x8xf32>
    %213 = vector.multi_reduction <add>, %212, %cst_94 [2] : vector<4x8x8xf32> to vector<4x8xf32>
    %214 = vector.shape_cast %213 : vector<4x8xf32> to vector<4x8x1xf32>
    %215 = tpu.reciprocal %214 {approx = true} : vector<4x8x1xf32> -> vector<4x8x1xf32>
    %216 = vector.broadcast %215 : vector<4x8x1xf32> to vector<4x8x8xf32>
    %217 = arith.mulf %212, %216 : vector<4x8x8xf32>
    %218 = arith.truncf %217 : vector<4x8x8xf32> to vector<4x8x8xbf16>
    "tpu.trace_start"() <{level = 10 : i32, message = "hqk,hkd->hqd"}> : () -> ()
    %cst_95 = arith.constant dense<0.000000e+00> : vector<4x8x8xf32>
    %219 = tpu.matmul %218, %201, %cst_95 {dimension_numbers = #tpu.dot_dimension_numbers<[2], [1], [1], [2], [0, 0, 0, 1, 1, 2], [0], [0]>} : vector<4x8x8xbf16>, vector<4x8x8xbf16>, vector<4x8x8xf32> -> vector<4x8x8xf32>
    "tpu.trace_stop"() : () -> ()
    %220 = tpu.transpose %219, [1, 0, 2] : vector<4x8x8xf32> -> vector<8x4x8xf32>
    %221 = vector.shape_cast %220 : vector<8x4x8xf32> to vector<8x32xf32>
    %222 = arith.truncf %221 : vector<8x32xf32> to vector<8x32xbf16>
    %c0_96 = arith.constant 0 : index
    %c0_97 = arith.constant 0 : index
    %223 = vector.load %arg27[%c0_96, %c0_97] : memref<32x32xbf16, #tpu.memory_space<vmem>>, vector<32x32xbf16>
    %cst_98 = arith.constant dense<0.000000e+00> : vector<8x32xf32>
    %224 = tpu.matmul %222, %223, %cst_98 {dimension_numbers = #tpu.dot_dimension_numbers<[1], [0], [0], [1], [0, 0, 1, 1], [], []>} : vector<8x32xbf16>, vector<32x32xbf16>, vector<8x32xf32> -> vector<8x32xf32>
    %c0_99 = arith.constant 0 : index
    %c0_100 = arith.constant 0 : index
    %225 = vector.load %arg28[%c0_99, %c0_100] : memref<1x32xf32, #tpu.memory_space<vmem>>, vector<1x32xf32>
    %226 = vector.broadcast %225 : vector<1x32xf32> to vector<8x32xf32>
    %227 = arith.addf %224, %226 : vector<8x32xf32>
    %228 = arith.addf %227, %150 : vector<8x32xf32>
    %c0_101 = arith.constant 0 : index
    %c0_102 = arith.constant 0 : index
    %229 = vector.load %arg29[%c0_101, %c0_102] : memref<1x32xf32, #tpu.memory_space<vmem>>, vector<1x32xf32>
    %c0_103 = arith.constant 0 : index
    %c0_104 = arith.constant 0 : index
    %230 = vector.load %arg30[%c0_103, %c0_104] : memref<1x32xf32, #tpu.memory_space<vmem>>, vector<1x32xf32>
    %cst_105 = arith.constant dense<0.000000e+00> : vector<8xf32>
    %231 = vector.multi_reduction <add>, %228, %cst_105 [1] : vector<8x32xf32> to vector<8xf32>
    %232 = vector.shape_cast %231 : vector<8xf32> to vector<8x1xf32>
    %cst_106 = arith.constant 3.200000e+01 : f32
    %233 = vector.broadcast %cst_106 : f32 to vector<8x1xf32>
    %234 = arith.divf %232, %233 : vector<8x1xf32>
    %235 = vector.broadcast %234 : vector<8x1xf32> to vector<8x32xf32>
    %236 = arith.subf %228, %235 : vector<8x32xf32>
    %237 = arith.mulf %236, %236 : vector<8x32xf32>
    %cst_107 = arith.constant dense<0.000000e+00> : vector<8xf32>
    %238 = vector.multi_reduction <add>, %237, %cst_107 [1] : vector<8x32xf32> to vector<8xf32>
    %239 = vector.shape_cast %238 : vector<8xf32> to vector<8x1xf32>
    %cst_108 = arith.constant 3.200000e+01 : f32
    %240 = vector.broadcast %cst_108 : f32 to vector<8x1xf32>
    %241 = arith.divf %239, %240 : vector<8x1xf32>
    %242 = vector.broadcast %234 : vector<8x1xf32> to vector<8x32xf32>
    %243 = arith.subf %228, %242 : vector<8x32xf32>
    %cst_109 = arith.constant 9.99999997E-7 : f32
    %244 = vector.broadcast %cst_109 : f32 to vector<8x1xf32>
    %245 = arith.addf %241, %244 : vector<8x1xf32>
    %246 = math.rsqrt %245 : vector<8x1xf32>
    %247 = vector.broadcast %246 : vector<8x1xf32> to vector<8x32xf32>
    %248 = arith.mulf %243, %247 : vector<8x32xf32>
    %249 = vector.broadcast %229 : vector<1x32xf32> to vector<8x32xf32>
    %250 = arith.mulf %248, %249 : vector<8x32xf32>
    %251 = vector.broadcast %230 : vector<1x32xf32> to vector<8x32xf32>
    %252 = arith.addf %250, %251 : vector<8x32xf32>
    %253 = arith.truncf %252 : vector<8x32xf32> to vector<8x32xbf16>
    %c0_110 = arith.constant 0 : index
    %c0_111 = arith.constant 0 : index
    %254 = vector.load %arg31[%c0_110, %c0_111] : memref<32x64xbf16, #tpu.memory_space<vmem>>, vector<32x64xbf16>
    %cst_112 = arith.constant dense<0.000000e+00> : vector<8x64xf32>
    %255 = tpu.matmul %253, %254, %cst_112 {dimension_numbers = #tpu.dot_dimension_numbers<[1], [0], [0], [1], [0, 0, 1, 1], [], []>} : vector<8x32xbf16>, vector<32x64xbf16>, vector<8x64xf32> -> vector<8x64xf32>
    %c0_113 = arith.constant 0 : index
    %c0_114 = arith.constant 0 : index
    %256 = vector.load %arg32[%c0_113, %c0_114] : memref<1x64xf32, #tpu.memory_space<vmem>>, vector<1x64xf32>
    %257 = vector.broadcast %256 : vector<1x64xf32> to vector<8x64xf32>
    %258 = arith.addf %255, %257 : vector<8x64xf32>
    %cst_115 = arith.constant 0.000000e+00 : f32
    %259 = vector.broadcast %cst_115 : f32 to vector<8x64xf32>
    %260 = arith.maximumf %258, %259 : vector<8x64xf32>
    %261 = arith.truncf %260 : vector<8x64xf32> to vector<8x64xbf16>
    %c0_116 = arith.constant 0 : index
    %c0_117 = arith.constant 0 : index
    %262 = vector.load %arg33[%c0_116, %c0_117] : memref<64x32xbf16, #tpu.memory_space<vmem>>, vector<64x32xbf16>
    %cst_118 = arith.constant dense<0.000000e+00> : vector<8x32xf32>
    %263 = tpu.matmul %261, %262, %cst_118 {dimension_numbers = #tpu.dot_dimension_numbers<[1], [0], [0], [1], [0, 0, 1, 1], [], []>} : vector<8x64xbf16>, vector<64x32xbf16>, vector<8x32xf32> -> vector<8x32xf32>
    %c0_119 = arith.constant 0 : index
    %c0_120 = arith.constant 0 : index
    %264 = vector.load %arg34[%c0_119, %c0_120] : memref<1x32xf32, #tpu.memory_space<vmem>>, vector<1x32xf32>
    %265 = vector.broadcast %264 : vector<1x32xf32> to vector<8x32xf32>
    %266 = arith.addf %263, %265 : vector<8x32xf32>
    %267 = arith.addf %266, %228 : vector<8x32xf32>
    %c0_121 = arith.constant 0 : index
    %c0_122 = arith.constant 0 : index
    %c0_123 = arith.constant 0 : index
    %268 = vector.load %arg35[%c0_121, %c0_122, %c0_123] : memref<1x8x32xf32, #tpu.memory_space<vmem>>, vector<1x8x32xf32>
    %269 = vector.shape_cast %268 : vector<1x8x32xf32> to vector<8x32xf32>
    %270 = vector.shape_cast %267 : vector<8x32xf32> to vector<1x8x32xf32>
    tpu.vector_store %arg35[%c0_121, %c0_122, %c0_123], %270 {strides = array<i32>} : memref<1x8x32xf32, #tpu.memory_space<vmem>>, vector<1x8x32xf32>,
    return
  }
  func.func @transform_0(%arg0: i32) -> (i32, i32, i32) {
    %c0_i32 = arith.constant 0 : i32
    %c0_i32_0 = arith.constant 0 : i32
    %c0_i32_1 = arith.constant 0 : i32
    return %arg0, %c0_i32, %c0_i32_0 : i32, i32, i32
  }
  func.func @transform_1(%arg0: i32) -> (i32, i32, i32) {
    %c0_i32 = arith.constant 0 : i32
    %c0_i32_0 = arith.constant 0 : i32
    %c0_i32_1 = arith.constant 0 : i32
    return %arg0, %c0_i32, %c0_i32_0 : i32, i32, i32
  }
  func.func @transform_2(%arg0: i32) -> (i32, i32, i32) {
    %c0_i32 = arith.constant 0 : i32
    %c0_i32_0 = arith.constant 0 : i32
    %c0_i32_1 = arith.constant 0 : i32
    return %arg0, %c0_i32, %c0_i32_0 : i32, i32, i32
  }
  func.func @transform_3(%arg0: i32) -> (i32, i32, i32) {
    %c0_i32 = arith.constant 0 : i32
    %c0_i32_0 = arith.constant 0 : i32
    %c0_i32_1 = arith.constant 0 : i32
    return %arg0, %c0_i32, %c0_i32_0 : i32, i32, i32
  }
  func.func @transform_4(%arg0: i32) -> (i32, i32, i32) {
    %c0_i32 = arith.constant 0 : i32
    %c0_i32_0 = arith.constant 0 : i32
    %c0_i32_1 = arith.constant 0 : i32
    return %arg0, %c0_i32, %c0_i32_0 : i32, i32, i32
  }
  func.func @transform_5(%arg0: i32) -> (i32, i32, i32) {
    %c0_i32 = arith.constant 0 : i32
    %c0_i32_0 = arith.constant 0 : i32
    %c0_i32_1 = arith.constant 0 : i32
    return %arg0, %c0_i32, %c0_i32_0 : i32, i32, i32
  }
  func.func @transform_6(%arg0: i32) -> (i32, i32) {
    %c0_i32 = arith.constant 0 : i32
    %c0_i32_0 = arith.constant 0 : i32
    %c0_i32_1 = arith.constant 0 : i32
    return %c0_i32, %c0_i32_0 : i32, i32
  }
  func.func @transform_7(%arg0: i32) -> (i32, i32) {
    %c0_i32 = arith.constant 0 : i32
    %c0_i32_0 = arith.constant 0 : i32
    %c0_i32_1 = arith.constant 0 : i32
    return %c0_i32, %c0_i32_0 : i32, i32
  }
  func.func @transform_8(%arg0: i32) -> (i32, i32) {
    %c0_i32 = arith.constant 0 : i32
    %c0_i32_0 = arith.constant 0 : i32
    %c0_i32_1 = arith.constant 0 : i32
    return %c0_i32, %c0_i32_0 : i32, i32
  }
  func.func @transform_9(%arg0: i32) -> (i32, i32) {
    %c0_i32 = arith.constant 0 : i32
    %c0_i32_0 = arith.constant 0 : i32
    %c0_i32_1 = arith.constant 0 : i32
    return %c0_i32, %c0_i32_0 : i32, i32
  }
  func.func @transform_10(%arg0: i32) -> (i32, i32) {
    %c0_i32 = arith.constant 0 : i32
    %c0_i32_0 = arith.constant 0 : i32
    %c0_i32_1 = arith.constant 0 : i32
    return %c0_i32, %c0_i32_0 : i32, i32
  }
  func.func @transform_11(%arg0: i32) -> (i32, i32) {
    %c0_i32 = arith.constant 0 : i32
    %c0_i32_0 = arith.constant 0 : i32
    %c0_i32_1 = arith.constant 0 : i32
    return %c0_i32, %c0_i32_0 : i32, i32
  }
  func.func @transform_12(%arg0: i32) -> (i32, i32) {
    %c0_i32 = arith.constant 0 : i32
    %c0_i32_0 = arith.constant 0 : i32
    %c0_i32_1 = arith.constant 0 : i32
    return %c0_i32, %c0_i32_0 : i32, i32
  }
  func.func @transform_13(%arg0: i32) -> (i32, i32) {
    %c0_i32 = arith.constant 0 : i32
    %c0_i32_0 = arith.constant 0 : i32
    %c0_i32_1 = arith.constant 0 : i32
    return %c0_i32, %c0_i32_0 : i32, i32
  }
  func.func @transform_14(%arg0: i32) -> (i32, i32) {
    %c0_i32 = arith.constant 0 : i32
    %c0_i32_0 = arith.constant 0 : i32
    %c0_i32_1 = arith.constant 0 : i32
    return %c0_i32, %c0_i32_0 : i32, i32
  }
  func.func @transform_15(%arg0: i32) -> (i32, i32) {
    %c0_i32 = arith.constant 0 : i32
    %c0_i32_0 = arith.constant 0 : i32
    %c0_i32_1 = arith.constant 0 : i32
    return %c0_i32, %c0_i32_0 : i32, i32
  }
  func.func @transform_16(%arg0: i32) -> (i32, i32) {
    %c0_i32 = arith.constant 0 : i32
    %c0_i32_0 = arith.constant 0 : i32
    %c0_i32_1 = arith.constant 0 : i32
    return %c0_i32, %c0_i32_0 : i32, i32
  }
  func.func @transform_17(%arg0: i32) -> (i32, i32) {
    %c0_i32 = arith.constant 0 : i32
    %c0_i32_0 = arith.constant 0 : i32
    %c0_i32_1 = arith.constant 0 : i32
    return %c0_i32, %c0_i32_0 : i32, i32
  }
  func.func @transform_18(%arg0: i32) -> (i32, i32) {
    %c0_i32 = arith.constant 0 : i32
    %c0_i32_0 = arith.constant 0 : i32
    %c0_i32_1 = arith.constant 0 : i32
    return %c0_i32, %c0_i32_0 : i32, i32
  }
  func.func @transform_19(%arg0: i32) -> (i32, i32) {
    %c0_i32 = arith.constant 0 : i32
    %c0_i32_0 = arith.constant 0 : i32
    %c0_i32_1 = arith.constant 0 : i32
    return %c0_i32, %c0_i32_0 : i32, i32
  }
  func.func @transform_20(%arg0: i32) -> (i32, i32) {
    %c0_i32 = arith.constant 0 : i32
    %c0_i32_0 = arith.constant 0 : i32
    %c0_i32_1 = arith.constant 0 : i32
    return %c0_i32, %c0_i32_0 : i32, i32
  }
  func.func @transform_21(%arg0: i32) -> (i32, i32) {
    %c0_i32 = arith.constant 0 : i32
    %c0_i32_0 = arith.constant 0 : i32
    %c0_i32_1 = arith.constant 0 : i32
    return %c0_i32, %c0_i32_0 : i32, i32
  }
  func.func @transform_22(%arg0: i32) -> (i32, i32) {
    %c0_i32 = arith.constant 0 : i32
    %c0_i32_0 = arith.constant 0 : i32
    %c0_i32_1 = arith.constant 0 : i32
    return %c0_i32, %c0_i32_0 : i32, i32
  }
  func.func @transform_23(%arg0: i32) -> (i32, i32) {
    %c0_i32 = arith.constant 0 : i32
    %c0_i32_0 = arith.constant 0 : i32
    %c0_i32_1 = arith.constant 0 : i32
    return %c0_i32, %c0_i32_0 : i32, i32
  }
  func.func @transform_24(%arg0: i32) -> (i32, i32) {
    %c0_i32 = arith.constant 0 : i32
    %c0_i32_0 = arith.constant 0 : i32
    %c0_i32_1 = arith.constant 0 : i32
    return %c0_i32, %c0_i32_0 : i32, i32
  }
  func.func @transform_25(%arg0: i32) -> (i32, i32) {
    %c0_i32 = arith.constant 0 : i32
    %c0_i32_0 = arith.constant 0 : i32
    %c0_i32_1 = arith.constant 0 : i32
    return %c0_i32, %c0_i32_0 : i32, i32
  }
  func.func @transform_26(%arg0: i32) -> (i32, i32) {
    %c0_i32 = arith.constant 0 : i32
    %c0_i32_0 = arith.constant 0 : i32
    %c0_i32_1 = arith.constant 0 : i32
    return %c0_i32, %c0_i32_0 : i32, i32
  }
  func.func @transform_27(%arg0: i32) -> (i32, i32) {
    %c0_i32 = arith.constant 0 : i32
    %c0_i32_0 = arith.constant 0 : i32
    %c0_i32_1 = arith.constant 0 : i32
    return %c0_i32, %c0_i32_0 : i32, i32
  }
  func.func @transform_28(%arg0: i32) -> (i32, i32) {
    %c0_i32 = arith.constant 0 : i32
    %c0_i32_0 = arith.constant 0 : i32
    %c0_i32_1 = arith.constant 0 : i32
    return %c0_i32, %c0_i32_0 : i32, i32
  }
  func.func @transform_29(%arg0: i32) -> (i32, i32) {
    %c0_i32 = arith.constant 0 : i32
    %c0_i32_0 = arith.constant 0 : i32
    %c0_i32_1 = arith.constant 0 : i32
    return %c0_i32, %c0_i32_0 : i32, i32
  }
  func.func @transform_30(%arg0: i32) -> (i32, i32) {
    %c0_i32 = arith.constant 0 : i32
    %c0_i32_0 = arith.constant 0 : i32
    %c0_i32_1 = arith.constant 0 : i32
    return %c0_i32, %c0_i32_0 : i32, i32
  }
  func.func @transform_31(%arg0: i32) -> (i32, i32) {
    %c0_i32 = arith.constant 0 : i32
    %c0_i32_0 = arith.constant 0 : i32
    %c0_i32_1 = arith.constant 0 : i32
    return %c0_i32, %c0_i32_0 : i32, i32
  }
  func.func @transform_32(%arg0: i32) -> (i32, i32) {
    %c0_i32 = arith.constant 0 : i32
    %c0_i32_0 = arith.constant 0 : i32
    %c0_i32_1 = arith.constant 0 : i32
    return %c0_i32, %c0_i32_0 : i32, i32
  }
  func.func @transform_33(%arg0: i32) -> (i32, i32) {
    %c0_i32 = arith.constant 0 : i32
    %c0_i32_0 = arith.constant 0 : i32
    %c0_i32_1 = arith.constant 0 : i32
    return %c0_i32, %c0_i32_0 : i32, i32
  }
  func.func @transform_34(%arg0: i32) -> (i32, i32, i32) {
    %c0_i32 = arith.constant 0 : i32
    %c0_i32_0 = arith.constant 0 : i32
    %c0_i32_1 = arith.constant 0 : i32
    return %arg0, %c0_i32, %c0_i32_0 : i32, i32, i32
  }
}

</mosaic_0001>

<llo_original>
// kernel: tpu_custom_call.1
$region0: #{tpu_custom_call.1}
  #allocation0 [shape = 'u32[]', space=smem, size = 0x4, offset = 0x4, fixed_abs, tag = 'smem constant byte address 0x4 - core index']
  #allocation1 [shape = 'u32[144,128]{1,0:T(1,128)}', space=vmem, size = 0x12000, scoped, tag = 'internal scratch']
  %s0 = inlined_call_operand.smem [shape: u32[35], index: -1, kind: input, shape index: {}]
  %s1 = sld [smem:[%s0]]
  %s2 = scalar_lea.smem %s0, 1
  %s3 = sld [smem:[%s2]]
  %s4 = scalar_lea.smem %s0, 2
  %s5 = sld [smem:[%s4]]
  %s6 = scalar_lea.smem %s0, 3
  %s7 = sld [smem:[%s6]]
  %s8 = scalar_lea.smem %s0, 4
  %s9 = sld [smem:[%s8]]
  %s10 = scalar_lea.smem %s0, 5
  %s11 = sld [smem:[%s10]]
  %s12 = scalar_lea.smem %s0, 6
  %s13 = sld [smem:[%s12]]
  %s14 = scalar_lea.smem %s0, 7
  %s15 = sld [smem:[%s14]]
  %s16 = scalar_lea.smem %s0, 8
  %s17 = sld [smem:[%s16]]
  %s18 = scalar_lea.smem %s0, 9
  %s19 = sld [smem:[%s18]]
  %s20 = scalar_lea.smem %s0, 10
  %s21 = sld [smem:[%s20]]
  %s22 = scalar_lea.smem %s0, 11
  %s23 = sld [smem:[%s22]]
  %s24 = scalar_lea.smem %s0, 12
  %s25 = sld [smem:[%s24]]
  %s26 = scalar_lea.smem %s0, 13
  %s27 = sld [smem:[%s26]]
  %s28 = scalar_lea.smem %s0, 14
  %s29 = sld [smem:[%s28]]
  %s30 = scalar_lea.smem %s0, 15
  %s31 = sld [smem:[%s30]]
  %s32 = scalar_lea.smem %s0, 16
  %s33 = sld [smem:[%s32]]
  %s34 = scalar_lea.smem %s0, 17
  %s35 = sld [smem:[%s34]]
  %s36 = scalar_lea.smem %s0, 18
  %s37 = sld [smem:[%s36]]
  %s38 = scalar_lea.smem %s0, 19
  %s39 = sld [smem:[%s38]]
  %s40 = scalar_lea.smem %s0, 20
  %s41 = sld [smem:[%s40]]
  %s42 = scalar_lea.smem %s0, 21
  %s43 = sld [smem:[%s42]]
  %s44 = scalar_lea.smem %s0, 22
  %s45 = sld [smem:[%s44]]
  %s46 = scalar_lea.smem %s0, 23
  %s47 = sld [smem:[%s46]]
  %s48 = scalar_lea.smem %s0, 24
  %s49 = sld [smem:[%s48]]
  %s50 = scalar_lea.smem %s0, 25
  %s51 = sld [smem:[%s50]]
  %s52 = scalar_lea.smem %s0, 26
  %s53 = sld [smem:[%s52]]
  %s54 = scalar_lea.smem %s0, 27
  %s55 = sld [smem:[%s54]]
  %s56 = scalar_lea.smem %s0, 28
  %s57 = sld [smem:[%s56]]
  %s58 = scalar_lea.smem %s0, 29
  %s59 = sld [smem:[%s58]]
  %s60 = scalar_lea.smem %s0, 30
  %s61 = sld [smem:[%s60]]
  %s62 = scalar_lea.smem %s0, 31
  %s63 = sld [smem:[%s62]]
  %s64 = scalar_lea.smem %s0, 32
  %s65 = sld [smem:[%s64]]
  %s66 = scalar_lea.smem %s0, 33
  %s67 = sld [smem:[%s66]]
  %s68 = scalar_lea.smem %s0, 34
  %s69 = sld [smem:[%s68]]
  %s70 = sld [smem:[#allocation0]]
  $region253: #{tpu_custom_call.1} parent=0
    _
  %s72 = ssub.s32 1, %s70
  %s73 = scalar_select 0, %s72, %s70
  $region1: #{tpu_custom_call.1} parent=0
    #allocation2 [shape = 'u8[4096]{0}', space=vmem, size = 0x1000, scoped, tag = 'input window, operand 2']
    #allocation3 [shape = 's32[2]{0}', space=sflag, size = 0x8, scoped, tag = 'scoped memory for tpu_custom_call.1']
    #allocation4 [shape = 's32[2]{0}', space=sflag, size = 0x8, scoped, tag = 'scoped memory for tpu_custom_call.1']
    #allocation5 [shape = 'u8[1024]{0}', space=vmem, size = 0x400, scoped, tag = 'input window, operand 3']
    #allocation6 [shape = 's32[2]{0}', space=sflag, size = 0x8, scoped, tag = 'scoped memory for tpu_custom_call.1']
    #allocation7 [shape = 'u8[1024]{0}', space=vmem, size = 0x400, scoped, tag = 'input window, operand 4']
    #allocation8 [shape = 'u8[1024]{0}', space=vmem, size = 0x400, scoped, tag = 'input window, operand 5']
    #allocation9 [shape = 's32[2]{0}', space=sflag, size = 0x8, scoped, tag = 'scoped memory for tpu_custom_call.1']
    #allocation10 [shape = 'u8[512]{0}', space=vmem, size = 0x400, scoped, tag = 'input window, operand 6, single buffered']
    #allocation11 [shape = 'u8[512]{0}', space=vmem, size = 0x400, scoped, tag = 'input window, operand 7, single buffered']
    #allocation12 [shape = 's32[1]{0}', space=sflag, size = 0x4, scoped, tag = 'scoped memory for tpu_custom_call.1']
    #allocation13 [shape = 'u8[512]{0}', space=vmem, size = 0x400, scoped, tag = 'input window, operand 8, single buffered']
    #allocation14 [shape = 'u8[512]{0}', space=vmem, size = 0x400, scoped, tag = 'input window, operand 9, single buffered']
    #allocation15 [shape = 's32[1]{0}', space=sflag, size = 0x4, scoped, tag = 'scoped memory for tpu_custom_call.1']
    #allocation16 [shape = 'u8[512]{0}', space=vmem, size = 0x400, scoped, tag = 'input window, operand 10, single buffered']
    #allocation17 [shape = 'u8[512]{0}', space=vmem, size = 0x400, scoped, tag = 'input window, operand 11, single buffered']
    #allocation18 [shape = 's32[1]{0}', space=sflag, size = 0x4, scoped, tag = 'scoped memory for tpu_custom_call.1']
    #allocation19 [shape = 'u8[512]{0}', space=vmem, size = 0x400, scoped, tag = 'input window, operand 13, single buffered']
    #allocation20 [shape = 'u8[512]{0}', space=vmem, size = 0x400, scoped, tag = 'input window, operand 15, single buffered']
    #allocation21 [shape = 's32[1]{0}', space=sflag, size = 0x4, scoped, tag = 'scoped memory for tpu_custom_call.1']
    #allocation22 [shape = 'u8[512]{0}', space=vmem, size = 0x400, scoped, tag = 'input window, operand 17, single buffered']
    #allocation23 [shape = 'u8[8192]{0}', space=vmem, size = 0x2000, scoped, tag = 'input window, operand 20, single buffered']
    #allocation24 [shape = 's32[1]{0}', space=sflag, size = 0x4, scoped, tag = 'scoped memory for tpu_custom_call.1']
    #allocation25 [shape = 'u8[512]{0}', space=vmem, size = 0x400, scoped, tag = 'input window, operand 21, single buffered']
    #allocation26 [shape = 'u8[512]{0}', space=vmem, size = 0x400, scoped, tag = 'input window, operand 23, single buffered']
    #allocation27 [shape = 's32[1]{0}', space=sflag, size = 0x4, scoped, tag = 'scoped memory for tpu_custom_call.1']
    #allocation28 [shape = 'u8[8192]{0}', space=vmem, size = 0x2000, scoped, tag = 'input window, operand 24, single buffered']
    #allocation29 [shape = 'u8[512]{0}', space=vmem, size = 0x400, scoped, tag = 'input window, operand 25, single buffered']
    #allocation30 [shape = 's32[1]{0}', space=sflag, size = 0x4, scoped, tag = 'scoped memory for tpu_custom_call.1']
    #allocation31 [shape = 'u8[512]{0}', space=vmem, size = 0x400, scoped, tag = 'input window, operand 27, single buffered']
    #allocation32 [shape = 'u8[512]{0}', space=vmem, size = 0x400, scoped, tag = 'input window, operand 28, single buffered']
    #allocation33 [shape = 's32[1]{0}', space=sflag, size = 0x4, scoped, tag = 'scoped memory for tpu_custom_call.1']
    #allocation34 [shape = 'u8[512]{0}', space=vmem, size = 0x400, scoped, tag = 'input window, operand 29, single buffered']
    #allocation35 [shape = 'u8[8192]{0}', space=vmem, size = 0x2000, scoped, tag = 'output window, operand 0']
    %74 = vsyncpa [#allocation3], 0
    %s75 = scalar_lea.sflag [#allocation3], 1
    %76 = vsyncpa %s75, 0
    %77 = vsyncpa [#allocation6], 0
    %s78 = scalar_lea.sflag [#allocation6], 1
    %79 = vsyncpa %s78, 0
    %80 = vsyncpa [#allocation9], 0
    %s81 = scalar_lea.sflag [#allocation9], 1
    %82 = vsyncpa %s81, 0
    %83 = vsyncpa [#allocation12], 0
    %84 = vsyncpa [#allocation15], 0
    %85 = vsyncpa [#allocation18], 0
    %86 = vsyncpa [#allocation21], 0
    %87 = vsyncpa [#allocation24], 0
    %88 = vsyncpa [#allocation27], 0
    %89 = vsyncpa [#allocation30], 0
    %90 = vsyncpa [#allocation33], 0
    %91 = vsyncpa [#allocation4], 0
    %s92 = scalar_lea.sflag [#allocation4], 1
    %93 = vsyncpa %s92, 0
    loop: start=0, step=1, limit=4
    $region2: #{tpu_custom_call.1} parent=1 // loop_pre_header
      _
    $region3: #{tpu_custom_call.1} parent=1 // loop_header
      %s95 = sphi 0, %s99
      %p96 = scmp.ge.s32.totalorder %s95, 4
      %s105 = sphi 0, %s107
      %s108 = sphi 0, %s105
      %s109 = sphi 0, %s108
      %s125 = sphi 0, %s109
      %s131 = sphi 0, %s133
      %s134 = sphi 0, %s131
      %s135 = sphi 0, %s134
      %s151 = sphi 0, %s135
      %s157 = sphi 0, %s159
      %s160 = sphi 0, %s157
      %s161 = sphi 0, %s160
      %s177 = sphi 0, %s161
      %s183 = sphi 0, %s185
      %s186 = sphi 0, %s183
      %s187 = sphi 0, %s186
      %s203 = sphi 0, %s187
      %s209 = sphi 0, %s211
      %s212 = sphi 0, %s209
      %s213 = sphi 0, %s212
      %s229 = sphi 0, %s213
      %s235 = sphi 0, %s237
      %s238 = sphi 0, %s235
      %s239 = sphi 0, %s238
      %s255 = sphi 0, %s239
      %s259 = sphi 0, %s259
      %s261 = sphi 0, %s259
      %s262 = sphi 0, %s261
      %s276 = sphi 0, %s262
      %s280 = sphi 0, %s280
      %s282 = sphi 0, %s280
      %s283 = sphi 0, %s282
      %s297 = sphi 0, %s283
      %s301 = sphi 0, %s301
      %s303 = sphi 0, %s301
      %s304 = sphi 0, %s303
      %s318 = sphi 0, %s304
      %s322 = sphi 0, %s322
      %s324 = sphi 0, %s322
      %s325 = sphi 0, %s324
      %s339 = sphi 0, %s325
      %s343 = sphi 0, %s343
      %s345 = sphi 0, %s343
      %s346 = sphi 0, %s345
      %s360 = sphi 0, %s346
      %s364 = sphi 0, %s364
      %s366 = sphi 0, %s364
      %s367 = sphi 0, %s366
      %s381 = sphi 0, %s367
      %s385 = sphi 0, %s385
      %s387 = sphi 0, %s385
      %s388 = sphi 0, %s387
      %s402 = sphi 0, %s388
      %s406 = sphi 0, %s406
      %s408 = sphi 0, %s406
      %s409 = sphi 0, %s408
      %s423 = sphi 0, %s409
      %s427 = sphi 0, %s427
      %s429 = sphi 0, %s427
      %s430 = sphi 0, %s429
      %s444 = sphi 0, %s430
      %s448 = sphi 0, %s448
      %s450 = sphi 0, %s448
      %s451 = sphi 0, %s450
      %s465 = sphi 0, %s451
      %s469 = sphi 0, %s469
      %s471 = sphi 0, %s469
      %s472 = sphi 0, %s471
      %s486 = sphi 0, %s472
      %s490 = sphi 0, %s490
      %s492 = sphi 0, %s490
      %s493 = sphi 0, %s492
      %s507 = sphi 0, %s493
      %s511 = sphi 0, %s511
      %s513 = sphi 0, %s511
      %s514 = sphi 0, %s513
      %s528 = sphi 0, %s514
      %s532 = sphi 0, %s532
      %s534 = sphi 0, %s532
      %s535 = sphi 0, %s534
      %s549 = sphi 0, %s535
      %s553 = sphi 0, %s553
      %s555 = sphi 0, %s553
      %s556 = sphi 0, %s555
      %s570 = sphi 0, %s556
      %s574 = sphi 0, %s574
      %s576 = sphi 0, %s574
      %s577 = sphi 0, %s576
      %s591 = sphi 0, %s577
      %s595 = sphi 0, %s595
      %s597 = sphi 0, %s595
      %s598 = sphi 0, %s597
      %s612 = sphi 0, %s598
      %s616 = sphi 0, %s616
      %s618 = sphi 0, %s616
      %s619 = sphi 0, %s618
      %s633 = sphi 0, %s619
      %s637 = sphi 0, %s637
      %s639 = sphi 0, %s637
      %s640 = sphi 0, %s639
      %s654 = sphi 0, %s640
      %s658 = sphi 0, %s658
      %s660 = sphi 0, %s658
      %s661 = sphi 0, %s660
      %s675 = sphi 0, %s661
      %s679 = sphi 0, %s679
      %s681 = sphi 0, %s679
      %s682 = sphi 0, %s681
      %s696 = sphi 0, %s682
      %s700 = sphi 0, %s700
      %s702 = sphi 0, %s700
      %s703 = sphi 0, %s702
      %s717 = sphi 0, %s703
      %s721 = sphi 0, %s721
      %s723 = sphi 0, %s721
      %s724 = sphi 0, %s723
      %s738 = sphi 0, %s724
      %s742 = sphi 0, %s742
      %s744 = sphi 0, %s742
      %s745 = sphi 0, %s744
      %s759 = sphi 0, %s745
      %s763 = sphi 0, %s763
      %s765 = sphi 0, %s763
      %s766 = sphi 0, %s765
      %s780 = sphi 0, %s766
      %s784 = sphi 0, %s784
      %s786 = sphi 0, %s784
      %s787 = sphi 0, %s786
      %s801 = sphi 0, %s787
      %s805 = sphi 0, %s805
      %s807 = sphi 0, %s805
      %s808 = sphi 0, %s807
      %s822 = sphi 0, %s808
      %s826 = sphi 0, %s826
      %s828 = sphi 0, %s826
      %s829 = sphi 0, %s828
      %s843 = sphi 0, %s829
      %s849 = sphi 0, %s851
      %s852 = sphi 0, %s849
      %s853 = sphi 0, %s852
      %s869 = sphi 0, %s853
    $region4: #{tpu_custom_call.1} parent=1 // loop_header_branch
      %98 = sbr.rel (%p96) target = $region8
    $region5: #{tpu_custom_call.1} parent=1 // loop_body
      %s100 = ssub.s32 %s95, 1
      %s101 = ssub.s32 %s95, 2
      %s102 = sadd.s32 %s95, 1
      %s103 = ssub.s32 %s95, %s102
      %p104 = scmp.eq.s32.totalorder %s103, 0
      %s106 = sadd.s32 %s105, 1
      %s107 = scalar_select %p104, %s105, %s106
      %p110 = pneg %p104
      %p111 = scmp.eq.s32.totalorder %s95, 1
      %p112 = por %p110, %p111
      %p113 = scmp.ne.s32.totalorder %s105, %s108
      %p114 = scmp.eq.s32.totalorder %s95, 0
      %p115 = por %p113, %p114
      %p116 = scmp.ne.s32.totalorder %s105, %s108
      %p117 = scmp.eq.s32.totalorder %s100, 1
      %p118 = por %p116, %p117
      %p119 = scmp.ne.s32.totalorder %s108, %s109
      %p120 = scmp.eq.s32.totalorder %s100, 0
      %p121 = por %p119, %p120
      %p122 = scmp.ne.s32.totalorder %s108, %s109
      %p123 = scmp.eq.s32.totalorder %s101, 1
      %p124 = por %p122, %p123
      %p126 = scmp.ne.s32.totalorder %s109, %s125
      %p127 = scmp.eq.s32.totalorder %s101, 0
      %p128 = por %p126, %p127
      %s129 = ssub.s32 %s95, %s102
      %p130 = scmp.eq.s32.totalorder %s129, 0
      %s132 = sadd.s32 %s131, 1
      %s133 = scalar_select %p130, %s131, %s132
      %p136 = pneg %p130
      %p137 = scmp.eq.s32.totalorder %s95, 1
      %p138 = por %p136, %p137
      %p139 = scmp.ne.s32.totalorder %s131, %s134
      %p140 = scmp.eq.s32.totalorder %s95, 0
      %p141 = por %p139, %p140
      %p142 = scmp.ne.s32.totalorder %s131, %s134
      %p143 = scmp.eq.s32.totalorder %s100, 1
      %p144 = por %p142, %p143
      %p145 = scmp.ne.s32.totalorder %s134, %s135
      %p146 = scmp.eq.s32.totalorder %s100, 0
      %p147 = por %p145, %p146
      %p148 = scmp.ne.s32.totalorder %s134, %s135
      %p149 = scmp.eq.s32.totalorder %s101, 1
      %p150 = por %p148, %p149
      %p152 = scmp.ne.s32.totalorder %s135, %s151
      %p153 = scmp.eq.s32.totalorder %s101, 0
      %p154 = por %p152, %p153
      %s155 = ssub.s32 %s95, %s102
      %p156 = scmp.eq.s32.totalorder %s155, 0
      %s158 = sadd.s32 %s157, 1
      %s159 = scalar_select %p156, %s157, %s158
      %p162 = pneg %p156
      %p163 = scmp.eq.s32.totalorder %s95, 1
      %p164 = por %p162, %p163
      %p165 = scmp.ne.s32.totalorder %s157, %s160
      %p166 = scmp.eq.s32.totalorder %s95, 0
      %p167 = por %p165, %p166
      %p168 = scmp.ne.s32.totalorder %s157, %s160
      %p169 = scmp.eq.s32.totalorder %s100, 1
      %p170 = por %p168, %p169
      %p171 = scmp.ne.s32.totalorder %s160, %s161
      %p172 = scmp.eq.s32.totalorder %s100, 0
      %p173 = por %p171, %p172
      %p174 = scmp.ne.s32.totalorder %s160, %s161
      %p175 = scmp.eq.s32.totalorder %s101, 1
      %p176 = por %p174, %p175
      %p178 = scmp.ne.s32.totalorder %s161, %s177
      %p179 = scmp.eq.s32.totalorder %s101, 0
      %p180 = por %p178, %p179
      %s181 = ssub.s32 %s95, %s102
      %p182 = scmp.eq.s32.totalorder %s181, 0
      %s184 = sadd.s32 %s183, 1
      %s185 = scalar_select %p182, %s183, %s184
      %p188 = pneg %p182
      %p189 = scmp.eq.s32.totalorder %s95, 1
      %p190 = por %p188, %p189
      %p191 = scmp.ne.s32.totalorder %s183, %s186
      %p192 = scmp.eq.s32.totalorder %s95, 0
      %p193 = por %p191, %p192
      %p194 = scmp.ne.s32.totalorder %s183, %s186
      %p195 = scmp.eq.s32.totalorder %s100, 1
      %p196 = por %p194, %p195
      %p197 = scmp.ne.s32.totalorder %s186, %s187
      %p198 = scmp.eq.s32.totalorder %s100, 0
      %p199 = por %p197, %p198
      %p200 = scmp.ne.s32.totalorder %s186, %s187
      %p201 = scmp.eq.s32.totalorder %s101, 1
      %p202 = por %p200, %p201
      %p204 = scmp.ne.s32.totalorder %s187, %s203
      %p205 = scmp.eq.s32.totalorder %s101, 0
      %p206 = por %p204, %p205
      %s207 = ssub.s32 %s95, %s102
      %p208 = scmp.eq.s32.totalorder %s207, 0
      %s210 = sadd.s32 %s209, 1
      %s211 = scalar_select %p208, %s209, %s210
      %p214 = pneg %p208
      %p215 = scmp.eq.s32.totalorder %s95, 1
      %p216 = por %p214, %p215
      %p217 = scmp.ne.s32.totalorder %s209, %s212
      %p218 = scmp.eq.s32.totalorder %s95, 0
      %p219 = por %p217, %p218
      %p220 = scmp.ne.s32.totalorder %s209, %s212
      %p221 = scmp.eq.s32.totalorder %s100, 1
      %p222 = por %p220, %p221
      %p223 = scmp.ne.s32.totalorder %s212, %s213
      %p224 = scmp.eq.s32.totalorder %s100, 0
      %p225 = por %p223, %p224
      %p226 = scmp.ne.s32.totalorder %s212, %s213
      %p227 = scmp.eq.s32.totalorder %s101, 1
      %p228 = por %p226, %p227
      %p230 = scmp.ne.s32.totalorder %s213, %s229
      %p231 = scmp.eq.s32.totalorder %s101, 0
      %p232 = por %p230, %p231
      %s233 = ssub.s32 %s95, %s102
      %p234 = scmp.eq.s32.totalorder %s233, 0
      %s236 = sadd.s32 %s235, 1
      %s237 = scalar_select %p234, %s235, %s236
      %p240 = pneg %p234
      %p241 = scmp.eq.s32.totalorder %s95, 1
      %p242 = por %p240, %p241
      %p243 = scmp.ne.s32.totalorder %s235, %s238
      %p244 = scmp.eq.s32.totalorder %s95, 0
      %p245 = por %p243, %p244
      %p246 = scmp.ne.s32.totalorder %s235, %s238
      %p247 = scmp.eq.s32.totalorder %s100, 1
      %p248 = por %p246, %p247
      %p249 = scmp.ne.s32.totalorder %s238, %s239
      %p250 = scmp.eq.s32.totalorder %s100, 0
      %p251 = por %p249, %p250
      %p252 = scmp.ne.s32.totalorder %s238, %s239
      %p253 = scmp.eq.s32.totalorder %s101, 1
      %p254 = por %p252, %p253
      %p256 = scmp.ne.s32.totalorder %s239, %s255
      %p257 = scmp.eq.s32.totalorder %s101, 0
      %p258 = por %p256, %p257
      %s260 = sadd.s32 %s259, 1
      %p263 = scmp.eq.s32.totalorder %s95, 1
      %p264 = scmp.ne.s32.totalorder %s259, %s261
      %p265 = scmp.eq.s32.totalorder %s95, 0
      %p266 = por %p264, %p265
      %p267 = scmp.ne.s32.totalorder %s259, %s261
      %p268 = scmp.eq.s32.totalorder %s100, 1
      %p269 = por %p267, %p268
      %p270 = scmp.ne.s32.totalorder %s261, %s262
      %p271 = scmp.eq.s32.totalorder %s100, 0
      %p272 = por %p270, %p271
      %p273 = scmp.ne.s32.totalorder %s261, %s262
      %p274 = scmp.eq.s32.totalorder %s101, 1
      %p275 = por %p273, %p274
      %p277 = scmp.ne.s32.totalorder %s262, %s276
      %p278 = scmp.eq.s32.totalorder %s101, 0
      %p279 = por %p277, %p278
      %s281 = sadd.s32 %s280, 1
      %p284 = scmp.eq.s32.totalorder %s95, 1
      %p285 = scmp.ne.s32.totalorder %s280, %s282
      %p286 = scmp.eq.s32.totalorder %s95, 0
      %p287 = por %p285, %p286
      %p288 = scmp.ne.s32.totalorder %s280, %s282
      %p289 = scmp.eq.s32.totalorder %s100, 1
      %p290 = por %p288, %p289
      %p291 = scmp.ne.s32.totalorder %s282, %s283
      %p292 = scmp.eq.s32.totalorder %s100, 0
      %p293 = por %p291, %p292
      %p294 = scmp.ne.s32.totalorder %s282, %s283
      %p295 = scmp.eq.s32.totalorder %s101, 1
      %p296 = por %p294, %p295
      %p298 = scmp.ne.s32.totalorder %s283, %s297
      %p299 = scmp.eq.s32.totalorder %s101, 0
      %p300 = por %p298, %p299
      %s302 = sadd.s32 %s301, 1
      %p305 = scmp.eq.s32.totalorder %s95, 1
      %p306 = scmp.ne.s32.totalorder %s301, %s303
      %p307 = scmp.eq.s32.totalorder %s95, 0
      %p308 = por %p306, %p307
      %p309 = scmp.ne.s32.totalorder %s301, %s303
      %p310 = scmp.eq.s32.totalorder %s100, 1
      %p311 = por %p309, %p310
      %p312 = scmp.ne.s32.totalorder %s303, %s304
      %p313 = scmp.eq.s32.totalorder %s100, 0
      %p314 = por %p312, %p313
      %p315 = scmp.ne.s32.totalorder %s303, %s304
      %p316 = scmp.eq.s32.totalorder %s101, 1
      %p317 = por %p315, %p316
      %p319 = scmp.ne.s32.totalorder %s304, %s318
      %p320 = scmp.eq.s32.totalorder %s101, 0
      %p321 = por %p319, %p320
      %s323 = sadd.s32 %s322, 1
      %p326 = scmp.eq.s32.totalorder %s95, 1
      %p327 = scmp.ne.s32.totalorder %s322, %s324
      %p328 = scmp.eq.s32.totalorder %s95, 0
      %p329 = por %p327, %p328
      %p330 = scmp.ne.s32.totalorder %s322, %s324
      %p331 = scmp.eq.s32.totalorder %s100, 1
      %p332 = por %p330, %p331
      %p333 = scmp.ne.s32.totalorder %s324, %s325
      %p334 = scmp.eq.s32.totalorder %s100, 0
      %p335 = por %p333, %p334
      %p336 = scmp.ne.s32.totalorder %s324, %s325
      %p337 = scmp.eq.s32.totalorder %s101, 1
      %p338 = por %p336, %p337
      %p340 = scmp.ne.s32.totalorder %s325, %s339
      %p341 = scmp.eq.s32.totalorder %s101, 0
      %p342 = por %p340, %p341
      %s344 = sadd.s32 %s343, 1
      %p347 = scmp.eq.s32.totalorder %s95, 1
      %p348 = scmp.ne.s32.totalorder %s343, %s345
      %p349 = scmp.eq.s32.totalorder %s95, 0
      %p350 = por %p348, %p349
      %p351 = scmp.ne.s32.totalorder %s343, %s345
      %p352 = scmp.eq.s32.totalorder %s100, 1
      %p353 = por %p351, %p352
      %p354 = scmp.ne.s32.totalorder %s345, %s346
      %p355 = scmp.eq.s32.totalorder %s100, 0
      %p356 = por %p354, %p355
      %p357 = scmp.ne.s32.totalorder %s345, %s346
      %p358 = scmp.eq.s32.totalorder %s101, 1
      %p359 = por %p357, %p358
      %p361 = scmp.ne.s32.totalorder %s346, %s360
      %p362 = scmp.eq.s32.totalorder %s101, 0
      %p363 = por %p361, %p362
      %s365 = sadd.s32 %s364, 1
      %p368 = scmp.eq.s32.totalorder %s95, 1
      %p369 = scmp.ne.s32.totalorder %s364, %s366
      %p370 = scmp.eq.s32.totalorder %s95, 0
      %p371 = por %p369, %p370
      %p372 = scmp.ne.s32.totalorder %s364, %s366
      %p373 = scmp.eq.s32.totalorder %s100, 1
      %p374 = por %p372, %p373
      %p375 = scmp.ne.s32.totalorder %s366, %s367
      %p376 = scmp.eq.s32.totalorder %s100, 0
      %p377 = por %p375, %p376
      %p378 = scmp.ne.s32.totalorder %s366, %s367
      %p379 = scmp.eq.s32.totalorder %s101, 1
      %p380 = por %p378, %p379
      %p382 = scmp.ne.s32.totalorder %s367, %s381
      %p383 = scmp.eq.s32.totalorder %s101, 0
      %p384 = por %p382, %p383
      %s386 = sadd.s32 %s385, 1
      %p389 = scmp.eq.s32.totalorder %s95, 1
      %p390 = scmp.ne.s32.totalorder %s385, %s387
      %p391 = scmp.eq.s32.totalorder %s95, 0
      %p392 = por %p390, %p391
      %p393 = scmp.ne.s32.totalorder %s385, %s387
      %p394 = scmp.eq.s32.totalorder %s100, 1
      %p395 = por %p393, %p394
      %p396 = scmp.ne.s32.totalorder %s387, %s388
      %p397 = scmp.eq.s32.totalorder %s100, 0
      %p398 = por %p396, %p397
      %p399 = scmp.ne.s32.totalorder %s387, %s388
      %p400 = scmp.eq.s32.totalorder %s101, 1
      %p401 = por %p399, %p400
      %p403 = scmp.ne.s32.totalorder %s388, %s402
      %p404 = scmp.eq.s32.totalorder %s101, 0
      %p405 = por %p403, %p404
      %s407 = sadd.s32 %s406, 1
      %p410 = scmp.eq.s32.totalorder %s95, 1
      %p411 = scmp.ne.s32.totalorder %s406, %s408
      %p412 = scmp.eq.s32.totalorder %s95, 0
      %p413 = por %p411, %p412
      %p414 = scmp.ne.s32.totalorder %s406, %s408
      %p415 = scmp.eq.s32.totalorder %s100, 1
      %p416 = por %p414, %p415
      %p417 = scmp.ne.s32.totalorder %s408, %s409
      %p418 = scmp.eq.s32.totalorder %s100, 0
      %p419 = por %p417, %p418
      %p420 = scmp.ne.s32.totalorder %s408, %s409
      %p421 = scmp.eq.s32.totalorder %s101, 1
      %p422 = por %p420, %p421
      %p424 = scmp.ne.s32.totalorder %s409, %s423
      %p425 = scmp.eq.s32.totalorder %s101, 0
      %p426 = por %p424, %p425
      %s428 = sadd.s32 %s427, 1
      %p431 = scmp.eq.s32.totalorder %s95, 1
      %p432 = scmp.ne.s32.totalorder %s427, %s429
      %p433 = scmp.eq.s32.totalorder %s95, 0
      %p434 = por %p432, %p433
      %p435 = scmp.ne.s32.totalorder %s427, %s429
      %p436 = scmp.eq.s32.totalorder %s100, 1
      %p437 = por %p435, %p436
      %p438 = scmp.ne.s32.totalorder %s429, %s430
      %p439 = scmp.eq.s32.totalorder %s100, 0
      %p440 = por %p438, %p439
      %p441 = scmp.ne.s32.totalorder %s429, %s430
      %p442 = scmp.eq.s32.totalorder %s101, 1
      %p443 = por %p441, %p442
      %p445 = scmp.ne.s32.totalorder %s430, %s444
      %p446 = scmp.eq.s32.totalorder %s101, 0
      %p447 = por %p445, %p446
      %s449 = sadd.s32 %s448, 1
      %p452 = scmp.eq.s32.totalorder %s95, 1
      %p453 = scmp.ne.s32.totalorder %s448, %s450
      %p454 = scmp.eq.s32.totalorder %s95, 0
      %p455 = por %p453, %p454
      %p456 = scmp.ne.s32.totalorder %s448, %s450
      %p457 = scmp.eq.s32.totalorder %s100, 1
      %p458 = por %p456, %p457
      %p459 = scmp.ne.s32.totalorder %s450, %s451
      %p460 = scmp.eq.s32.totalorder %s100, 0
      %p461 = por %p459, %p460
      %p462 = scmp.ne.s32.totalorder %s450, %s451
      %p463 = scmp.eq.s32.totalorder %s101, 1
      %p464 = por %p462, %p463
      %p466 = scmp.ne.s32.totalorder %s451, %s465
      %p467 = scmp.eq.s32.totalorder %s101, 0
      %p468 = por %p466, %p467
      %s470 = sadd.s32 %s469, 1
      %p473 = scmp.eq.s32.totalorder %s95, 1
      %p474 = scmp.ne.s32.totalorder %s469, %s471
      %p475 = scmp.eq.s32.totalorder %s95, 0
      %p476 = por %p474, %p475
      %p477 = scmp.ne.s32.totalorder %s469, %s471
      %p478 = scmp.eq.s32.totalorder %s100, 1
      %p479 = por %p477, %p478
      %p480 = scmp.ne.s32.totalorder %s471, %s472
      %p481 = scmp.eq.s32.totalorder %s100, 0
      %p482 = por %p480, %p481
      %p483 = scmp.ne.s32.totalorder %s471, %s472
      %p484 = scmp.eq.s32.totalorder %s101, 1
      %p485 = por %p483, %p484
      %p487 = scmp.ne.s32.totalorder %s472, %s486
      %p488 = scmp.eq.s32.totalorder %s101, 0
      %p489 = por %p487, %p488
      %s491 = sadd.s32 %s490, 1
      %p494 = scmp.eq.s32.totalorder %s95, 1
      %p495 = scmp.ne.s32.totalorder %s490, %s492
      %p496 = scmp.eq.s32.totalorder %s95, 0
      %p497 = por %p495, %p496
      %p498 = scmp.ne.s32.totalorder %s490, %s492
      %p499 = scmp.eq.s32.totalorder %s100, 1
      %p500 = por %p498, %p499
      %p501 = scmp.ne.s32.totalorder %s492, %s493
      %p502 = scmp.eq.s32.totalorder %s100, 0
      %p503 = por %p501, %p502
      %p504 = scmp.ne.s32.totalorder %s492, %s493
      %p505 = scmp.eq.s32.totalorder %s101, 1
      %p506 = por %p504, %p505
      %p508 = scmp.ne.s32.totalorder %s493, %s507
      %p509 = scmp.eq.s32.totalorder %s101, 0
      %p510 = por %p508, %p509
      %s512 = sadd.s32 %s511, 1
      %p515 = scmp.eq.s32.totalorder %s95, 1
      %p516 = scmp.ne.s32.totalorder %s511, %s513
      %p517 = scmp.eq.s32.totalorder %s95, 0
      %p518 = por %p516, %p517
      %p519 = scmp.ne.s32.totalorder %s511, %s513
      %p520 = scmp.eq.s32.totalorder %s100, 1
      %p521 = por %p519, %p520
      %p522 = scmp.ne.s32.totalorder %s513, %s514
      %p523 = scmp.eq.s32.totalorder %s100, 0
      %p524 = por %p522, %p523
      %p525 = scmp.ne.s32.totalorder %s513, %s514
      %p526 = scmp.eq.s32.totalorder %s101, 1
      %p527 = por %p525, %p526
      %p529 = scmp.ne.s32.totalorder %s514, %s528
      %p530 = scmp.eq.s32.totalorder %s101, 0
      %p531 = por %p529, %p530
      %s533 = sadd.s32 %s532, 1
      %p536 = scmp.eq.s32.totalorder %s95, 1
      %p537 = scmp.ne.s32.totalorder %s532, %s534
      %p538 = scmp.eq.s32.totalorder %s95, 0
      %p539 = por %p537, %p538
      %p540 = scmp.ne.s32.totalorder %s532, %s534
      %p541 = scmp.eq.s32.totalorder %s100, 1
      %p542 = por %p540, %p541
      %p543 = scmp.ne.s32.totalorder %s534, %s535
      %p544 = scmp.eq.s32.totalorder %s100, 0
      %p545 = por %p543, %p544
      %p546 = scmp.ne.s32.totalorder %s534, %s535
      %p547 = scmp.eq.s32.totalorder %s101, 1
      %p548 = por %p546, %p547
      %p550 = scmp.ne.s32.totalorder %s535, %s549
      %p551 = scmp.eq.s32.totalorder %s101, 0
      %p552 = por %p550, %p551
      %s554 = sadd.s32 %s553, 1
      %p557 = scmp.eq.s32.totalorder %s95, 1
      %p558 = scmp.ne.s32.totalorder %s553, %s555
      %p559 = scmp.eq.s32.totalorder %s95, 0
      %p560 = por %p558, %p559
      %p561 = scmp.ne.s32.totalorder %s553, %s555
      %p562 = scmp.eq.s32.totalorder %s100, 1
      %p563 = por %p561, %p562
      %p564 = scmp.ne.s32.totalorder %s555, %s556
      %p565 = scmp.eq.s32.totalorder %s100, 0
      %p566 = por %p564, %p565
      %p567 = scmp.ne.s32.totalorder %s555, %s556
      %p568 = scmp.eq.s32.totalorder %s101, 1
      %p569 = por %p567, %p568
      %p571 = scmp.ne.s32.totalorder %s556, %s570
      %p572 = scmp.eq.s32.totalorder %s101, 0
      %p573 = por %p571, %p572
      %s575 = sadd.s32 %s574, 1
      %p578 = scmp.eq.s32.totalorder %s95, 1
      %p579 = scmp.ne.s32.totalorder %s574, %s576
      %p580 = scmp.eq.s32.totalorder %s95, 0
      %p581 = por %p579, %p580
      %p582 = scmp.ne.s32.totalorder %s574, %s576
      %p583 = scmp.eq.s32.totalorder %s100, 1
      %p584 = por %p582, %p583
      %p585 = scmp.ne.s32.totalorder %s576, %s577
      %p586 = scmp.eq.s32.totalorder %s100, 0
      %p587 = por %p585, %p586
      %p588 = scmp.ne.s32.totalorder %s576, %s577
      %p589 = scmp.eq.s32.totalorder %s101, 1
      %p590 = por %p588, %p589
      %p592 = scmp.ne.s32.totalorder %s577, %s591
      %p593 = scmp.eq.s32.totalorder %s101, 0
      %p594 = por %p592, %p593
      %s596 = sadd.s32 %s595, 1
      %p599 = scmp.eq.s32.totalorder %s95, 1
      %p600 = scmp.ne.s32.totalorder %s595, %s597
      %p601 = scmp.eq.s32.totalorder %s95, 0
      %p602 = por %p600, %p601
      %p603 = scmp.ne.s32.totalorder %s595, %s597
      %p604 = scmp.eq.s32.totalorder %s100, 1
      %p605 = por %p603, %p604
      %p606 = scmp.ne.s32.totalorder %s597, %s598
      %p607 = scmp.eq.s32.totalorder %s100, 0
      %p608 = por %p606, %p607
      %p609 = scmp.ne.s32.totalorder %s597, %s598
      %p610 = scmp.eq.s32.totalorder %s101, 1
      %p611 = por %p609, %p610
      %p613 = scmp.ne.s32.totalorder %s598, %s612
      %p614 = scmp.eq.s32.totalorder %s101, 0
      %p615 = por %p613, %p614
      %s617 = sadd.s32 %s616, 1
      %p620 = scmp.eq.s32.totalorder %s95, 1
      %p621 = scmp.ne.s32.totalorder %s616, %s618
      %p622 = scmp.eq.s32.totalorder %s95, 0
      %p623 = por %p621, %p622
      %p624 = scmp.ne.s32.totalorder %s616, %s618
      %p625 = scmp.eq.s32.totalorder %s100, 1
      %p626 = por %p624, %p625
      %p627 = scmp.ne.s32.totalorder %s618, %s619
      %p628 = scmp.eq.s32.totalorder %s100, 0
      %p629 = por %p627, %p628
      %p630 = scmp.ne.s32.totalorder %s618, %s619
      %p631 = scmp.eq.s32.totalorder %s101, 1
      %p632 = por %p630, %p631
      %p634 = scmp.ne.s32.totalorder %s619, %s633
      %p635 = scmp.eq.s32.totalorder %s101, 0
      %p636 = por %p634, %p635
      %s638 = sadd.s32 %s637, 1
      %p641 = scmp.eq.s32.totalorder %s95, 1
      %p642 = scmp.ne.s32.totalorder %s637, %s639
      %p643 = scmp.eq.s32.totalorder %s95, 0
      %p644 = por %p642, %p643
      %p645 = scmp.ne.s32.totalorder %s637, %s639
      %p646 = scmp.eq.s32.totalorder %s100, 1
      %p647 = por %p645, %p646
      %p648 = scmp.ne.s32.totalorder %s639, %s640
      %p649 = scmp.eq.s32.totalorder %s100, 0
      %p650 = por %p648, %p649
      %p651 = scmp.ne.s32.totalorder %s639, %s640
      %p652 = scmp.eq.s32.totalorder %s101, 1
      %p653 = por %p651, %p652
      %p655 = scmp.ne.s32.totalorder %s640, %s654
      %p656 = scmp.eq.s32.totalorder %s101, 0
      %p657 = por %p655, %p656
      %s659 = sadd.s32 %s658, 1
      %p662 = scmp.eq.s32.totalorder %s95, 1
      %p663 = scmp.ne.s32.totalorder %s658, %s660
      %p664 = scmp.eq.s32.totalorder %s95, 0
      %p665 = por %p663, %p664
      %p666 = scmp.ne.s32.totalorder %s658, %s660
      %p667 = scmp.eq.s32.totalorder %s100, 1
      %p668 = por %p666, %p667
      %p669 = scmp.ne.s32.totalorder %s660, %s661
      %p670 = scmp.eq.s32.totalorder %s100, 0
      %p671 = por %p669, %p670
      %p672 = scmp.ne.s32.totalorder %s660, %s661
      %p673 = scmp.eq.s32.totalorder %s101, 1
      %p674 = por %p672, %p673
      %p676 = scmp.ne.s32.totalorder %s661, %s675
      %p677 = scmp.eq.s32.totalorder %s101, 0
      %p678 = por %p676, %p677
      %s680 = sadd.s32 %s679, 1
      %p683 = scmp.eq.s32.totalorder %s95, 1
      %p684 = scmp.ne.s32.totalorder %s679, %s681
      %p685 = scmp.eq.s32.totalorder %s95, 0
      %p686 = por %p684, %p685
      %p687 = scmp.ne.s32.totalorder %s679, %s681
      %p688 = scmp.eq.s32.totalorder %s100, 1
      %p689 = por %p687, %p688
      %p690 = scmp.ne.s32.totalorder %s681, %s682
      %p691 = scmp.eq.s32.totalorder %s100, 0
      %p692 = por %p690, %p691
      %p693 = scmp.ne.s32.totalorder %s681, %s682
      %p694 = scmp.eq.s32.totalorder %s101, 1
      %p695 = por %p693, %p694
      %p697 = scmp.ne.s32.totalorder %s682, %s696
      %p698 = scmp.eq.s32.totalorder %s101, 0
      %p699 = por %p697, %p698
      %s701 = sadd.s32 %s700, 1
      %p704 = scmp.eq.s32.totalorder %s95, 1
      %p705 = scmp.ne.s32.totalorder %s700, %s702
      %p706 = scmp.eq.s32.totalorder %s95, 0
      %p707 = por %p705, %p706
      %p708 = scmp.ne.s32.totalorder %s700, %s702
      %p709 = scmp.eq.s32.totalorder %s100, 1
      %p710 = por %p708, %p709
      %p711 = scmp.ne.s32.totalorder %s702, %s703
      %p712 = scmp.eq.s32.totalorder %s100, 0
      %p713 = por %p711, %p712
      %p714 = scmp.ne.s32.totalorder %s702, %s703
      %p715 = scmp.eq.s32.totalorder %s101, 1
      %p716 = por %p714, %p715
      %p718 = scmp.ne.s32.totalorder %s703, %s717
      %p719 = scmp.eq.s32.totalorder %s101, 0
      %p720 = por %p718, %p719
      %s722 = sadd.s32 %s721, 1
      %p725 = scmp.eq.s32.totalorder %s95, 1
      %p726 = scmp.ne.s32.totalorder %s721, %s723
      %p727 = scmp.eq.s32.totalorder %s95, 0
      %p728 = por %p726, %p727
      %p729 = scmp.ne.s32.totalorder %s721, %s723
      %p730 = scmp.eq.s32.totalorder %s100, 1
      %p731 = por %p729, %p730
      %p732 = scmp.ne.s32.totalorder %s723, %s724
      %p733 = scmp.eq.s32.totalorder %s100, 0
      %p734 = por %p732, %p733
      %p735 = scmp.ne.s32.totalorder %s723, %s724
      %p736 = scmp.eq.s32.totalorder %s101, 1
      %p737 = por %p735, %p736
      %p739 = scmp.ne.s32.totalorder %s724, %s738
      %p740 = scmp.eq.s32.totalorder %s101, 0
      %p741 = por %p739, %p740
      %s743 = sadd.s32 %s742, 1
      %p746 = scmp.eq.s32.totalorder %s95, 1
      %p747 = scmp.ne.s32.totalorder %s742, %s744
      %p748 = scmp.eq.s32.totalorder %s95, 0
      %p749 = por %p747, %p748
      %p750 = scmp.ne.s32.totalorder %s742, %s744
      %p751 = scmp.eq.s32.totalorder %s100, 1
      %p752 = por %p750, %p751
      %p753 = scmp.ne.s32.totalorder %s744, %s745
      %p754 = scmp.eq.s32.totalorder %s100, 0
      %p755 = por %p753, %p754
      %p756 = scmp.ne.s32.totalorder %s744, %s745
      %p757 = scmp.eq.s32.totalorder %s101, 1
      %p758 = por %p756, %p757
      %p760 = scmp.ne.s32.totalorder %s745, %s759
      %p761 = scmp.eq.s32.totalorder %s101, 0
      %p762 = por %p760, %p761
      %s764 = sadd.s32 %s763, 1
      %p767 = scmp.eq.s32.totalorder %s95, 1
      %p768 = scmp.ne.s32.totalorder %s763, %s765
      %p769 = scmp.eq.s32.totalorder %s95, 0
      %p770 = por %p768, %p769
      %p771 = scmp.ne.s32.totalorder %s763, %s765
      %p772 = scmp.eq.s32.totalorder %s100, 1
      %p773 = por %p771, %p772
      %p774 = scmp.ne.s32.totalorder %s765, %s766
      %p775 = scmp.eq.s32.totalorder %s100, 0
      %p776 = por %p774, %p775
      %p777 = scmp.ne.s32.totalorder %s765, %s766
      %p778 = scmp.eq.s32.totalorder %s101, 1
      %p779 = por %p777, %p778
      %p781 = scmp.ne.s32.totalorder %s766, %s780
      %p782 = scmp.eq.s32.totalorder %s101, 0
      %p783 = por %p781, %p782
      %s785 = sadd.s32 %s784, 1
      %p788 = scmp.eq.s32.totalorder %s95, 1
      %p789 = scmp.ne.s32.totalorder %s784, %s786
      %p790 = scmp.eq.s32.totalorder %s95, 0
      %p791 = por %p789, %p790
      %p792 = scmp.ne.s32.totalorder %s784, %s786
      %p793 = scmp.eq.s32.totalorder %s100, 1
      %p794 = por %p792, %p793
      %p795 = scmp.ne.s32.totalorder %s786, %s787
      %p796 = scmp.eq.s32.totalorder %s100, 0
      %p797 = por %p795, %p796
      %p798 = scmp.ne.s32.totalorder %s786, %s787
      %p799 = scmp.eq.s32.totalorder %s101, 1
      %p800 = por %p798, %p799
      %p802 = scmp.ne.s32.totalorder %s787, %s801
      %p803 = scmp.eq.s32.totalorder %s101, 0
      %p804 = por %p802, %p803
      %s806 = sadd.s32 %s805, 1
      %p809 = scmp.eq.s32.totalorder %s95, 1
      %p810 = scmp.ne.s32.totalorder %s805, %s807
      %p811 = scmp.eq.s32.totalorder %s95, 0
      %p812 = por %p810, %p811
      %p813 = scmp.ne.s32.totalorder %s805, %s807
      %p814 = scmp.eq.s32.totalorder %s100, 1
      %p815 = por %p813, %p814
      %p816 = scmp.ne.s32.totalorder %s807, %s808
      %p817 = scmp.eq.s32.totalorder %s100, 0
      %p818 = por %p816, %p817
      %p819 = scmp.ne.s32.totalorder %s807, %s808
      %p820 = scmp.eq.s32.totalorder %s101, 1
      %p821 = por %p819, %p820
      %p823 = scmp.ne.s32.totalorder %s808, %s822
      %p824 = scmp.eq.s32.totalorder %s101, 0
      %p825 = por %p823, %p824
      %s827 = sadd.s32 %s826, 1
      %p830 = scmp.eq.s32.totalorder %s95, 1
      %p831 = scmp.ne.s32.totalorder %s826, %s828
      %p832 = scmp.eq.s32.totalorder %s95, 0
      %p833 = por %p831, %p832
      %p834 = scmp.ne.s32.totalorder %s826, %s828
      %p835 = scmp.eq.s32.totalorder %s100, 1
      %p836 = por %p834, %p835
      %p837 = scmp.ne.s32.totalorder %s828, %s829
      %p838 = scmp.eq.s32.totalorder %s100, 0
      %p839 = por %p837, %p838
      %p840 = scmp.ne.s32.totalorder %s828, %s829
      %p841 = scmp.eq.s32.totalorder %s101, 1
      %p842 = por %p840, %p841
      %p844 = scmp.ne.s32.totalorder %s829, %s843
      %p845 = scmp.eq.s32.totalorder %s101, 0
      %p846 = por %p844, %p845
      %s847 = ssub.s32 %s95, %s102
      %p848 = scmp.eq.s32.totalorder %s847, 0
      %s850 = sadd.s32 %s849, 1
      %s851 = scalar_select %p848, %s849, %s850
      %p854 = pneg %p848
      %p855 = scmp.eq.s32.totalorder %s95, 1
      %p856 = por %p854, %p855
      %p857 = scmp.ne.s32.totalorder %s849, %s852
      %p858 = scmp.eq.s32.totalorder %s95, 0
      %p859 = por %p857, %p858
      %p860 = scmp.ne.s32.totalorder %s849, %s852
      %p861 = scmp.eq.s32.totalorder %s100, 1
      %p862 = por %p860, %p861
      %p863 = scmp.ne.s32.totalorder %s852, %s853
      %p864 = scmp.eq.s32.totalorder %s100, 0
      %p865 = por %p863, %p864
      %p866 = scmp.ne.s32.totalorder %s852, %s853
      %p867 = scmp.eq.s32.totalorder %s101, 1
      %p868 = por %p866, %p867
      %p870 = scmp.ne.s32.totalorder %s853, %s869
      %p871 = scmp.eq.s32.totalorder %s101, 0
      %p872 = por %p870, %p871
      %p873 = scmp.le.s32.totalorder 1, %s95
      %p874 = scmp.lt.s32.totalorder %s95, 3
      %p875 = pnand %p873, %p874
      %p876 = pneg %p875
      // Predicated region
      $region9: #{tpu_custom_call.1} parent=5 // pred_check
        _
      $region10: #{tpu_custom_call.1} parent=5 // pred_check_branch
        %878 = sbr.rel (%p875) target = $region12
      $region11: #{tpu_custom_call.1} parent=5 // pred_region
        %s879 = ssub.s32 %s95, 1
        // Predicated region
        $region13: #{tpu_custom_call.1} parent=11 // pred_check
          %p880 = pneg %p272
        $region14: #{tpu_custom_call.1} parent=11 // pred_check_branch
          %882 = sbr.rel (%p880) target = $region16
        $region15: #{tpu_custom_call.1} parent=11 // pred_region
          %s884 = ssub.s32 16, 16
          %885 = vsyncadd [#allocation9], %s884
          %s887 = sshll.u32 [#allocation10], 4
          %s888 = int_to_ptr.vmem [resolvable:$true] %s887
          %890 = dma.hbm_to_vmem [thread:$0]  %s13, 16, %s888, [#allocation9]
        $region16: #{tpu_custom_call.1} parent=11 // pred_fallthru
          _
        // Predicated region
        $region17: #{tpu_custom_call.1} parent=11 // pred_check
          %p891 = pneg %p293
        $region18: #{tpu_custom_call.1} parent=11 // pred_check_branch
          %893 = sbr.rel (%p891) target = $region20
        $region19: #{tpu_custom_call.1} parent=11 // pred_region
          %s895 = ssub.s32 16, 16
          %896 = vsyncadd [#allocation12], %s895
          %s898 = sshll.u32 [#allocation11], 4
          %s899 = int_to_ptr.vmem [resolvable:$true] %s898
          %901 = dma.hbm_to_vmem [thread:$0]  %s15, 16, %s899, [#allocation12]
        $region20: #{tpu_custom_call.1} parent=11 // pred_fallthru
          _
        // Predicated region
        $region21: #{tpu_custom_call.1} parent=11 // pred_check
          %p902 = pneg %p314
        $region22: #{tpu_custom_call.1} parent=11 // pred_check_branch
          %904 = sbr.rel (%p902) target = $region24
        $region23: #{tpu_custom_call.1} parent=11 // pred_region
          %s906 = ssub.s32 16, 16
          %907 = vsyncadd [#allocation12], %s906
          %s909 = sshll.u32 [#allocation13], 4
          %s910 = int_to_ptr.vmem [resolvable:$true] %s909
          %912 = dma.hbm_to_vmem [thread:$0]  %s17, 16, %s910, [#allocation12]
        $region24: #{tpu_custom_call.1} parent=11 // pred_fallthru
          _
        // Predicated region
        $region25: #{tpu_custom_call.1} parent=11 // pred_check
          %p913 = pneg %p335
        $region26: #{tpu_custom_call.1} parent=11 // pred_check_branch
          %915 = sbr.rel (%p913) target = $region28
        $region27: #{tpu_custom_call.1} parent=11 // pred_region
          %s917 = ssub.s32 16, 16
          %918 = vsyncadd [#allocation15], %s917
          %s920 = sshll.u32 [#allocation14], 4
          %s921 = int_to_ptr.vmem [resolvable:$true] %s920
          %923 = dma.hbm_to_vmem [thread:$0]  %s19, 16, %s921, [#allocation15]
        $region28: #{tpu_custom_call.1} parent=11 // pred_fallthru
          _
        // Predicated region
        $region29: #{tpu_custom_call.1} parent=11 // pred_check
          %p924 = pneg %p356
        $region30: #{tpu_custom_call.1} parent=11 // pred_check_branch
          %926 = sbr.rel (%p924) target = $region32
        $region31: #{tpu_custom_call.1} parent=11 // pred_region
          %s928 = ssub.s32 16, 16
          %929 = vsyncadd [#allocation15], %s928
          %s931 = sshll.u32 [#allocation16], 4
          %s932 = int_to_ptr.vmem [resolvable:$true] %s931
          %934 = dma.hbm_to_vmem [thread:$0]  %s21, 16, %s932, [#allocation15]
        $region32: #{tpu_custom_call.1} parent=11 // pred_fallthru
          _
        // Predicated region
        $region33: #{tpu_custom_call.1} parent=11 // pred_check
          %p935 = pneg %p377
        $region34: #{tpu_custom_call.1} parent=11 // pred_check_branch
          %937 = sbr.rel (%p935) target = $region36
        $region35: #{tpu_custom_call.1} parent=11 // pred_region
          %s939 = ssub.s32 16, 16
          %940 = vsyncadd [#allocation18], %s939
          %s942 = sshll.u32 [#allocation17], 4
          %s943 = int_to_ptr.vmem [resolvable:$true] %s942
          %945 = dma.hbm_to_vmem [thread:$0]  %s23, 16, %s943, [#allocation18]
        $region36: #{tpu_custom_call.1} parent=11 // pred_fallthru
          _
        // Predicated region
        $region37: #{tpu_custom_call.1} parent=11 // pred_check
          %p946 = pneg %p398
        $region38: #{tpu_custom_call.1} parent=11 // pred_check_branch
          %948 = sbr.rel (%p946) target = $region40
        $region39: #{tpu_custom_call.1} parent=11 // pred_region
          _
        $region40: #{tpu_custom_call.1} parent=11 // pred_fallthru
          _
        // Predicated region
        $region41: #{tpu_custom_call.1} parent=11 // pred_check
          %p949 = pneg %p419
        $region42: #{tpu_custom_call.1} parent=11 // pred_check_branch
          %951 = sbr.rel (%p949) target = $region44
        $region43: #{tpu_custom_call.1} parent=11 // pred_region
          %s953 = ssub.s32 16, 16
          %954 = vsyncadd [#allocation18], %s953
          %s956 = sshll.u32 [#allocation19], 4
          %s957 = int_to_ptr.vmem [resolvable:$true] %s956
          %959 = dma.hbm_to_vmem [thread:$0]  %s27, 16, %s957, [#allocation18]
        $region44: #{tpu_custom_call.1} parent=11 // pred_fallthru
          _
        // Predicated region
        $region45: #{tpu_custom_call.1} parent=11 // pred_check
          %p960 = pneg %p440
        $region46: #{tpu_custom_call.1} parent=11 // pred_check_branch
          %962 = sbr.rel (%p960) target = $region48
        $region47: #{tpu_custom_call.1} parent=11 // pred_region
          _
        $region48: #{tpu_custom_call.1} parent=11 // pred_fallthru
          _
        // Predicated region
        $region49: #{tpu_custom_call.1} parent=11 // pred_check
          %p963 = pneg %p461
        $region50: #{tpu_custom_call.1} parent=11 // pred_check_branch
          %965 = sbr.rel (%p963) target = $region52
        $region51: #{tpu_custom_call.1} parent=11 // pred_region
          %s967 = ssub.s32 16, 16
          %968 = vsyncadd [#allocation21], %s967
          %s970 = sshll.u32 [#allocation20], 4
          %s971 = int_to_ptr.vmem [resolvable:$true] %s970
          %973 = dma.hbm_to_vmem [thread:$0]  %s31, 16, %s971, [#allocation21]
        $region52: #{tpu_custom_call.1} parent=11 // pred_fallthru
          _
        // Predicated region
        $region53: #{tpu_custom_call.1} parent=11 // pred_check
          %p974 = pneg %p482
        $region54: #{tpu_custom_call.1} parent=11 // pred_check_branch
          %976 = sbr.rel (%p974) target = $region56
        $region55: #{tpu_custom_call.1} parent=11 // pred_region
          _
        $region56: #{tpu_custom_call.1} parent=11 // pred_fallthru
          _
        // Predicated region
        $region57: #{tpu_custom_call.1} parent=11 // pred_check
          %p977 = pneg %p503
        $region58: #{tpu_custom_call.1} parent=11 // pred_check_branch
          %979 = sbr.rel (%p977) target = $region60
        $region59: #{tpu_custom_call.1} parent=11 // pred_region
          %s981 = ssub.s32 16, 16
          %982 = vsyncadd [#allocation21], %s981
          %s984 = sshll.u32 [#allocation22], 4
          %s985 = int_to_ptr.vmem [resolvable:$true] %s984
          %987 = dma.hbm_to_vmem [thread:$0]  %s35, 16, %s985, [#allocation21]
        $region60: #{tpu_custom_call.1} parent=11 // pred_fallthru
          _
        // Predicated region
        $region61: #{tpu_custom_call.1} parent=11 // pred_check
          %p988 = pneg %p524
        $region62: #{tpu_custom_call.1} parent=11 // pred_check_branch
          %990 = sbr.rel (%p988) target = $region64
        $region63: #{tpu_custom_call.1} parent=11 // pred_region
          _
        $region64: #{tpu_custom_call.1} parent=11 // pred_fallthru
          _
        // Predicated region
        $region65: #{tpu_custom_call.1} parent=11 // pred_check
          %p991 = pneg %p545
        $region66: #{tpu_custom_call.1} parent=11 // pred_check_branch
          %993 = sbr.rel (%p991) target = $region68
        $region67: #{tpu_custom_call.1} parent=11 // pred_region
          _
        $region68: #{tpu_custom_call.1} parent=11 // pred_fallthru
          _
        // Predicated region
        $region69: #{tpu_custom_call.1} parent=11 // pred_check
          %p994 = pneg %p566
        $region70: #{tpu_custom_call.1} parent=11 // pred_check_branch
          %996 = sbr.rel (%p994) target = $region72
        $region71: #{tpu_custom_call.1} parent=11 // pred_region
          %s998 = ssub.s32 256, 256
          %999 = vsyncadd [#allocation24], %s998
          %s1000 = sshll.u32 [#allocation23], 4
          %s1001 = int_to_ptr.vmem [resolvable:$true] %s1000
          %1006 = dma.hbm_to_vmem [thread:$0]  %s41, 256, %s1001, [#allocation24], 64, 64, 4
        $region72: #{tpu_custom_call.1} parent=11 // pred_fallthru
          _
        // Predicated region
        $region73: #{tpu_custom_call.1} parent=11 // pred_check
          %p1007 = pneg %p587
        $region74: #{tpu_custom_call.1} parent=11 // pred_check_branch
          %1009 = sbr.rel (%p1007) target = $region76
        $region75: #{tpu_custom_call.1} parent=11 // pred_region
          %s1011 = ssub.s32 16, 16
          %1012 = vsyncadd [#allocation24], %s1011
          %s1014 = sshll.u32 [#allocation25], 4
          %s1015 = int_to_ptr.vmem [resolvable:$true] %s1014
          %1017 = dma.hbm_to_vmem [thread:$0]  %s43, 16, %s1015, [#allocation24]
        $region76: #{tpu_custom_call.1} parent=11 // pred_fallthru
          _
        // Predicated region
        $region77: #{tpu_custom_call.1} parent=11 // pred_check
          %p1018 = pneg %p608
        $region78: #{tpu_custom_call.1} parent=11 // pred_check_branch
          %1020 = sbr.rel (%p1018) target = $region80
        $region79: #{tpu_custom_call.1} parent=11 // pred_region
          _
        $region80: #{tpu_custom_call.1} parent=11 // pred_fallthru
          _
        // Predicated region
        $region81: #{tpu_custom_call.1} parent=11 // pred_check
          %p1021 = pneg %p629
        $region82: #{tpu_custom_call.1} parent=11 // pred_check_branch
          %1023 = sbr.rel (%p1021) target = $region84
        $region83: #{tpu_custom_call.1} parent=11 // pred_region
          %s1025 = ssub.s32 16, 16
          %1026 = vsyncadd [#allocation27], %s1025
          %s1028 = sshll.u32 [#allocation26], 4
          %s1029 = int_to_ptr.vmem [resolvable:$true] %s1028
          %1031 = dma.hbm_to_vmem [thread:$0]  %s47, 16, %s1029, [#allocation27]
        $region84: #{tpu_custom_call.1} parent=11 // pred_fallthru
          _
        // Predicated region
        $region85: #{tpu_custom_call.1} parent=11 // pred_check
          %p1032 = pneg %p650
        $region86: #{tpu_custom_call.1} parent=11 // pred_check_branch
          %1034 = sbr.rel (%p1032) target = $region88
        $region87: #{tpu_custom_call.1} parent=11 // pred_region
          %s1036 = ssub.s32 256, 256
          %1037 = vsyncadd [#allocation27], %s1036
          %s1038 = sshll.u32 [#allocation28], 4
          %s1039 = int_to_ptr.vmem [resolvable:$true] %s1038
          %1044 = dma.hbm_to_vmem [thread:$0]  %s49, 256, %s1039, [#allocation27], 64, 64, 4
        $region88: #{tpu_custom_call.1} parent=11 // pred_fallthru
          _
        // Predicated region
        $region89: #{tpu_custom_call.1} parent=11 // pred_check
          %p1045 = pneg %p671
        $region90: #{tpu_custom_call.1} parent=11 // pred_check_branch
          %1047 = sbr.rel (%p1045) target = $region92
        $region91: #{tpu_custom_call.1} parent=11 // pred_region
          %s1049 = ssub.s32 16, 16
          %1050 = vsyncadd [#allocation30], %s1049
          %s1052 = sshll.u32 [#allocation29], 4
          %s1053 = int_to_ptr.vmem [resolvable:$true] %s1052
          %1055 = dma.hbm_to_vmem [thread:$0]  %s51, 16, %s1053, [#allocation30]
        $region92: #{tpu_custom_call.1} parent=11 // pred_fallthru
          _
        // Predicated region
        $region93: #{tpu_custom_call.1} parent=11 // pred_check
          %p1056 = pneg %p692
        $region94: #{tpu_custom_call.1} parent=11 // pred_check_branch
          %1058 = sbr.rel (%p1056) target = $region96
        $region95: #{tpu_custom_call.1} parent=11 // pred_region
          _
        $region96: #{tpu_custom_call.1} parent=11 // pred_fallthru
          _
        // Predicated region
        $region97: #{tpu_custom_call.1} parent=11 // pred_check
          %p1059 = pneg %p713
        $region98: #{tpu_custom_call.1} parent=11 // pred_check_branch
          %1061 = sbr.rel (%p1059) target = $region100
        $region99: #{tpu_custom_call.1} parent=11 // pred_region
          %s1063 = ssub.s32 16, 16
          %1064 = vsyncadd [#allocation30], %s1063
          %s1066 = sshll.u32 [#allocation31], 4
          %s1067 = int_to_ptr.vmem [resolvable:$true] %s1066
          %1069 = dma.hbm_to_vmem [thread:$0]  %s55, 16, %s1067, [#allocation30]
        $region100: #{tpu_custom_call.1} parent=11 // pred_fallthru
          _
        // Predicated region
        $region101: #{tpu_custom_call.1} parent=11 // pred_check
          %p1070 = pneg %p734
        $region102: #{tpu_custom_call.1} parent=11 // pred_check_branch
          %1072 = sbr.rel (%p1070) target = $region104
        $region103: #{tpu_custom_call.1} parent=11 // pred_region
          %s1074 = ssub.s32 16, 16
          %1075 = vsyncadd [#allocation33], %s1074
          %s1077 = sshll.u32 [#allocation32], 4
          %s1078 = int_to_ptr.vmem [resolvable:$true] %s1077
          %1080 = dma.hbm_to_vmem [thread:$0]  %s57, 16, %s1078, [#allocation33]
        $region104: #{tpu_custom_call.1} parent=11 // pred_fallthru
          _
        // Predicated region
        $region105: #{tpu_custom_call.1} parent=11 // pred_check
          %p1081 = pneg %p755
        $region106: #{tpu_custom_call.1} parent=11 // pred_check_branch
          %1083 = sbr.rel (%p1081) target = $region108
        $region107: #{tpu_custom_call.1} parent=11 // pred_region
          %s1085 = ssub.s32 16, 16
          %1086 = vsyncadd [#allocation33], %s1085
          %s1088 = sshll.u32 [#allocation34], 4
          %s1089 = int_to_ptr.vmem [resolvable:$true] %s1088
          %1091 = dma.hbm_to_vmem [thread:$0]  %s59, 16, %s1089, [#allocation33]
        $region108: #{tpu_custom_call.1} parent=11 // pred_fallthru
          _
        // Predicated region
        $region109: #{tpu_custom_call.1} parent=11 // pred_check
          %p1092 = pneg %p776
        $region110: #{tpu_custom_call.1} parent=11 // pred_check_branch
          %1094 = sbr.rel (%p1092) target = $region112
        $region111: #{tpu_custom_call.1} parent=11 // pred_region
          _
        $region112: #{tpu_custom_call.1} parent=11 // pred_fallthru
          _
        // Predicated region
        $region113: #{tpu_custom_call.1} parent=11 // pred_check
          %p1095 = pneg %p797
        $region114: #{tpu_custom_call.1} parent=11 // pred_check_branch
          %1097 = sbr.rel (%p1095) target = $region116
        $region115: #{tpu_custom_call.1} parent=11 // pred_region
          _
        $region116: #{tpu_custom_call.1} parent=11 // pred_fallthru
          _
        // Predicated region
        $region117: #{tpu_custom_call.1} parent=11 // pred_check
          %p1098 = pneg %p818
        $region118: #{tpu_custom_call.1} parent=11 // pred_check_branch
          %1100 = sbr.rel (%p1098) target = $region120
        $region119: #{tpu_custom_call.1} parent=11 // pred_region
          _
        $region120: #{tpu_custom_call.1} parent=11 // pred_fallthru
          _
        // Predicated region
        $region121: #{tpu_custom_call.1} parent=11 // pred_check
          %p1101 = pneg %p839
        $region122: #{tpu_custom_call.1} parent=11 // pred_check_branch
          %1103 = sbr.rel (%p1101) target = $region124
        $region123: #{tpu_custom_call.1} parent=11 // pred_region
          _
        $region124: #{tpu_custom_call.1} parent=11 // pred_fallthru
          _
      $region12: #{tpu_custom_call.1} parent=5 // pred_fallthru
        _
      %p1104 = scmp.lt.s32.totalorder %s95, 2
      // Predicated region
      $region125: #{tpu_custom_call.1} parent=5 // pred_check
        %p1105 = pneg %p1104
      $region126: #{tpu_custom_call.1} parent=5 // pred_check_branch
        %1107 = sbr.rel (%p1105) target = $region128
      $region127: #{tpu_custom_call.1} parent=5 // pred_region
        // Predicated region
        $region129: #{tpu_custom_call.1} parent=127 // pred_check
          %p1108 = pneg %p115
        $region130: #{tpu_custom_call.1} parent=127 // pred_check_branch
          %1110 = sbr.rel (%p1108) target = $region132
        $region131: #{tpu_custom_call.1} parent=127 // pred_region
          %p1111 = scmp.lt.s32.totalorder %s95, 1
          %s1112 = scalar_select %p1111, %s95, 1
          %s1113 = smul.addr %s1112, 8
          %s1114 = scalar_lea.vmem %s1, %s1113
        $region132: #{tpu_custom_call.1} parent=127 // pred_fallthru
          _
        // Predicated region
        $region133: #{tpu_custom_call.1} parent=127 // pred_check
          %p1115 = pneg %p141
        $region134: #{tpu_custom_call.1} parent=127 // pred_check_branch
          %1117 = sbr.rel (%p1115) target = $region136
        $region135: #{tpu_custom_call.1} parent=127 // pred_region
          %p1118 = scmp.lt.s32.totalorder %s95, 1
          %s1119 = scalar_select %p1118, %s95, 1
          %s1120 = smul.addr %s1119, 2
          %s1121 = smul.addr %s1120, 4
          %s1122 = scalar_lea.vmem %s3, %s1121
        $region136: #{tpu_custom_call.1} parent=127 // pred_fallthru
          _
        // Predicated region
        $region137: #{tpu_custom_call.1} parent=127 // pred_check
          %p1123 = pneg %p167
        $region138: #{tpu_custom_call.1} parent=127 // pred_check_branch
          %1125 = sbr.rel (%p1123) target = $region140
        $region139: #{tpu_custom_call.1} parent=127 // pred_region
          %s1126 = sand.u32 %s157, 1
          %s1127 = scalar_lea.sflag [#allocation3], %s1126
          %s1128 = sand.u32 %s157, 1
          %s1129 = smul.addr %s1128, 4
          %s1130 = scalar_lea.vmem [#allocation2], %s1129
          %s1132 = ssub.s32 64, 64
          %1133 = vsyncadd %s1127, %s1132
          %s1134 = smul.addr %s95, 64
          %s1135 = scalar_lea.hbm %s5, %s1134
          %s1137 = sshll.u32 %s1130, 4
          %s1138 = int_to_ptr.vmem [resolvable:$true] %s1137
          %1140 = dma.hbm_to_vmem [thread:$0]  %s1135, 64, %s1138, %s1127
        $region140: #{tpu_custom_call.1} parent=127 // pred_fallthru
          _
        // Predicated region
        $region141: #{tpu_custom_call.1} parent=127 // pred_check
          %p1141 = pneg %p193
        $region142: #{tpu_custom_call.1} parent=127 // pred_check_branch
          %1143 = sbr.rel (%p1141) target = $region144
        $region143: #{tpu_custom_call.1} parent=127 // pred_region
          %s1144 = sand.u32 %s95, 1
          %s1145 = scalar_lea.sflag [#allocation6], %s1144
          %s1146 = sand.u32 %s183, 1
          %s1147 = scalar_lea.vmem [#allocation5], %s1146
          %s1149 = ssub.s32 16, 16
          %1150 = vsyncadd %s1145, %s1149
          %s1151 = smul.addr %s95, 16
          %s1152 = scalar_lea.hbm %s7, %s1151
          %s1154 = sshll.u32 %s1147, 4
          %s1155 = int_to_ptr.vmem [resolvable:$true] %s1154
          %1157 = dma.hbm_to_vmem [thread:$0]  %s1152, 16, %s1155, %s1145
        $region144: #{tpu_custom_call.1} parent=127 // pred_fallthru
          _
        // Predicated region
        $region145: #{tpu_custom_call.1} parent=127 // pred_check
          %p1158 = pneg %p219
        $region146: #{tpu_custom_call.1} parent=127 // pred_check_branch
          %1160 = sbr.rel (%p1158) target = $region148
        $region147: #{tpu_custom_call.1} parent=127 // pred_region
          %s1161 = sand.u32 %s95, 1
          %s1162 = scalar_lea.sflag [#allocation6], %s1161
          %s1163 = sand.u32 %s209, 1
          %s1164 = scalar_lea.vmem [#allocation7], %s1163
          %s1166 = ssub.s32 16, 16
          %1167 = vsyncadd %s1162, %s1166
          %s1168 = smul.addr %s95, 16
          %s1169 = scalar_lea.hbm %s9, %s1168
          %s1171 = sshll.u32 %s1164, 4
          %s1172 = int_to_ptr.vmem [resolvable:$true] %s1171
          %1174 = dma.hbm_to_vmem [thread:$0]  %s1169, 16, %s1172, %s1162
        $region148: #{tpu_custom_call.1} parent=127 // pred_fallthru
          _
        // Predicated region
        $region149: #{tpu_custom_call.1} parent=127 // pred_check
          %p1175 = pneg %p245
        $region150: #{tpu_custom_call.1} parent=127 // pred_check_branch
          %1177 = sbr.rel (%p1175) target = $region152
        $region151: #{tpu_custom_call.1} parent=127 // pred_region
          %s1178 = sand.u32 %s95, 1
          %s1179 = scalar_lea.sflag [#allocation9], %s1178
          %s1180 = sand.u32 %s235, 1
          %s1181 = scalar_lea.vmem [#allocation8], %s1180
          %s1183 = ssub.s32 16, 16
          %1184 = vsyncadd %s1179, %s1183
          %s1185 = smul.addr %s95, 16
          %s1186 = scalar_lea.hbm %s11, %s1185
          %s1188 = sshll.u32 %s1181, 4
          %s1189 = int_to_ptr.vmem [resolvable:$true] %s1188
          %1191 = dma.hbm_to_vmem [thread:$0]  %s1186, 16, %s1189, %s1179
        $region152: #{tpu_custom_call.1} parent=127 // pred_fallthru
          _
      $region128: #{tpu_custom_call.1} parent=5 // pred_fallthru
        _
      %p1192 = scmp.le.s32.totalorder 1, %s95
      %p1193 = scmp.lt.s32.totalorder %s95, 3
      %p1194 = pnand %p1192, %p1193
      %p1195 = pneg %p1194
      // Predicated region
      $region153: #{tpu_custom_call.1} parent=5 // pred_check
        _
      $region154: #{tpu_custom_call.1} parent=5 // pred_check_branch
        %1197 = sbr.rel (%p1194) target = $region156
      $region155: #{tpu_custom_call.1} parent=5 // pred_region
        %s1198 = ssub.s32 %s95, 1
        %s1199 = sand.u32 %s160, 1
        %s1200 = scalar_lea.sflag [#allocation3], %s1199
        %s1201 = sand.u32 %s160, 1
        %s1202 = smul.addr %s1201, 4
        %s1203 = scalar_lea.vmem [#allocation2], %s1202
        // Predicated region
        $region157: #{tpu_custom_call.1} parent=155 // pred_check
          %p1204 = pneg %p173
        $region158: #{tpu_custom_call.1} parent=155 // pred_check_branch
          %1206 = sbr.rel (%p1204) target = $region160
        $region159: #{tpu_custom_call.1} parent=155 // pred_region
          %1207 = dma.done %s1200, 64
        $region160: #{tpu_custom_call.1} parent=155 // pred_fallthru
          _
        %s1208 = sand.u32 %s100, 1
        %s1209 = scalar_lea.sflag [#allocation6], %s1208
        %s1210 = sand.u32 %s186, 1
        %s1211 = scalar_lea.vmem [#allocation5], %s1210
        // Predicated region
        $region161: #{tpu_custom_call.1} parent=155 // pred_check
          %p1212 = pneg %p199
        $region162: #{tpu_custom_call.1} parent=155 // pred_check_branch
          %1214 = sbr.rel (%p1212) target = $region164
        $region163: #{tpu_custom_call.1} parent=155 // pred_region
          %1215 = dma.done %s1209, 16
        $region164: #{tpu_custom_call.1} parent=155 // pred_fallthru
          _
        %s1216 = sand.u32 %s100, 1
        %s1217 = scalar_lea.sflag [#allocation6], %s1216
        %s1218 = sand.u32 %s212, 1
        %s1219 = scalar_lea.vmem [#allocation7], %s1218
        // Predicated region
        $region165: #{tpu_custom_call.1} parent=155 // pred_check
          %p1220 = pneg %p225
        $region166: #{tpu_custom_call.1} parent=155 // pred_check_branch
          %1222 = sbr.rel (%p1220) target = $region168
        $region167: #{tpu_custom_call.1} parent=155 // pred_region
          %1223 = dma.done %s1217, 16
        $region168: #{tpu_custom_call.1} parent=155 // pred_fallthru
          _
        %s1224 = sand.u32 %s100, 1
        %s1225 = scalar_lea.sflag [#allocation9], %s1224
        %s1226 = sand.u32 %s238, 1
        %s1227 = scalar_lea.vmem [#allocation8], %s1226
        // Predicated region
        $region169: #{tpu_custom_call.1} parent=155 // pred_check
          %p1228 = pneg %p251
        $region170: #{tpu_custom_call.1} parent=155 // pred_check_branch
          %1230 = sbr.rel (%p1228) target = $region172
        $region171: #{tpu_custom_call.1} parent=155 // pred_region
          %1231 = dma.done %s1225, 16
        $region172: #{tpu_custom_call.1} parent=155 // pred_fallthru
          _
        // Predicated region
        $region173: #{tpu_custom_call.1} parent=155 // pred_check
          %p1232 = pneg %p272
        $region174: #{tpu_custom_call.1} parent=155 // pred_check_branch
          %1234 = sbr.rel (%p1232) target = $region176
        $region175: #{tpu_custom_call.1} parent=155 // pred_region
          %1235 = dma.done [#allocation9], 16
        $region176: #{tpu_custom_call.1} parent=155 // pred_fallthru
          _
        // Predicated region
        $region177: #{tpu_custom_call.1} parent=155 // pred_check
          %p1236 = pneg %p293
        $region178: #{tpu_custom_call.1} parent=155 // pred_check_branch
          %1238 = sbr.rel (%p1236) target = $region180
        $region179: #{tpu_custom_call.1} parent=155 // pred_region
          %1239 = dma.done [#allocation12], 16
        $region180: #{tpu_custom_call.1} parent=155 // pred_fallthru
          _
        // Predicated region
        $region181: #{tpu_custom_call.1} parent=155 // pred_check
          %p1240 = pneg %p314
        $region182: #{tpu_custom_call.1} parent=155 // pred_check_branch
          %1242 = sbr.rel (%p1240) target = $region184
        $region183: #{tpu_custom_call.1} parent=155 // pred_region
          %1243 = dma.done [#allocation12], 16
        $region184: #{tpu_custom_call.1} parent=155 // pred_fallthru
          _
        // Predicated region
        $region185: #{tpu_custom_call.1} parent=155 // pred_check
          %p1244 = pneg %p335
        $region186: #{tpu_custom_call.1} parent=155 // pred_check_branch
          %1246 = sbr.rel (%p1244) target = $region188
        $region187: #{tpu_custom_call.1} parent=155 // pred_region
          %1247 = dma.done [#allocation15], 16
        $region188: #{tpu_custom_call.1} parent=155 // pred_fallthru
          _
        // Predicated region
        $region189: #{tpu_custom_call.1} parent=155 // pred_check
          %p1248 = pneg %p356
        $region190: #{tpu_custom_call.1} parent=155 // pred_check_branch
          %1250 = sbr.rel (%p1248) target = $region192
        $region191: #{tpu_custom_call.1} parent=155 // pred_region
          %1251 = dma.done [#allocation15], 16
        $region192: #{tpu_custom_call.1} parent=155 // pred_fallthru
          _
        // Predicated region
        $region193: #{tpu_custom_call.1} parent=155 // pred_check
          %p1252 = pneg %p377
        $region194: #{tpu_custom_call.1} parent=155 // pred_check_branch
          %1254 = sbr.rel (%p1252) target = $region196
        $region195: #{tpu_custom_call.1} parent=155 // pred_region
          %1255 = dma.done [#allocation18], 16
        $region196: #{tpu_custom_call.1} parent=155 // pred_fallthru
          _
        // Predicated region
        $region197: #{tpu_custom_call.1} parent=155 // pred_check
          %p1256 = pneg %p419
        $region198: #{tpu_custom_call.1} parent=155 // pred_check_branch
          %1258 = sbr.rel (%p1256) target = $region200
        $region199: #{tpu_custom_call.1} parent=155 // pred_region
          %1259 = dma.done [#allocation18], 16
        $region200: #{tpu_custom_call.1} parent=155 // pred_fallthru
          _
        // Predicated region
        $region201: #{tpu_custom_call.1} parent=155 // pred_check
          %p1260 = pneg %p461
        $region202: #{tpu_custom_call.1} parent=155 // pred_check_branch
          %1262 = sbr.rel (%p1260) target = $region204
        $region203: #{tpu_custom_call.1} parent=155 // pred_region
          %1263 = dma.done [#allocation21], 16
        $region204: #{tpu_custom_call.1} parent=155 // pred_fallthru
          _
        // Predicated region
        $region205: #{tpu_custom_call.1} parent=155 // pred_check
          %p1264 = pneg %p503
        $region206: #{tpu_custom_call.1} parent=155 // pred_check_branch
          %1266 = sbr.rel (%p1264) target = $region208
        $region207: #{tpu_custom_call.1} parent=155 // pred_region
          %1267 = dma.done [#allocation21], 16
        $region208: #{tpu_custom_call.1} parent=155 // pred_fallthru
          _
        // Predicated region
        $region209: #{tpu_custom_call.1} parent=155 // pred_check
          %p1268 = pneg %p566
        $region210: #{tpu_custom_call.1} parent=155 // pred_check_branch
          %1270 = sbr.rel (%p1268) target = $region212
        $region211: #{tpu_custom_call.1} parent=155 // pred_region
          %1271 = dma.done [#allocation24], 256
        $region212: #{tpu_custom_call.1} parent=155 // pred_fallthru
          _
        // Predicated region
        $region213: #{tpu_custom_call.1} parent=155 // pred_check
          %p1272 = pneg %p587
        $region214: #{tpu_custom_call.1} parent=155 // pred_check_branch
          %1274 = sbr.rel (%p1272) target = $region216
        $region215: #{tpu_custom_call.1} parent=155 // pred_region
          %1275 = dma.done [#allocation24], 16
        $region216: #{tpu_custom_call.1} parent=155 // pred_fallthru
          _
        // Predicated region
        $region217: #{tpu_custom_call.1} parent=155 // pred_check
          %p1276 = pneg %p629
        $region218: #{tpu_custom_call.1} parent=155 // pred_check_branch
          %1278 = sbr.rel (%p1276) target = $region220
        $region219: #{tpu_custom_call.1} parent=155 // pred_region
          %1279 = dma.done [#allocation27], 16
        $region220: #{tpu_custom_call.1} parent=155 // pred_fallthru
          _
        // Predicated region
        $region221: #{tpu_custom_call.1} parent=155 // pred_check
          %p1280 = pneg %p650
        $region222: #{tpu_custom_call.1} parent=155 // pred_check_branch
          %1282 = sbr.rel (%p1280) target = $region224
        $region223: #{tpu_custom_call.1} parent=155 // pred_region
          %1283 = dma.done [#allocation27], 256
        $region224: #{tpu_custom_call.1} parent=155 // pred_fallthru
          _
        // Predicated region
        $region225: #{tpu_custom_call.1} parent=155 // pred_check
          %p1284 = pneg %p671
        $region226: #{tpu_custom_call.1} parent=155 // pred_check_branch
          %1286 = sbr.rel (%p1284) target = $region228
        $region227: #{tpu_custom_call.1} parent=155 // pred_region
          %1287 = dma.done [#allocation30], 16
        $region228: #{tpu_custom_call.1} parent=155 // pred_fallthru
          _
        // Predicated region
        $region229: #{tpu_custom_call.1} parent=155 // pred_check
          %p1288 = pneg %p713
        $region230: #{tpu_custom_call.1} parent=155 // pred_check_branch
          %1290 = sbr.rel (%p1288) target = $region232
        $region231: #{tpu_custom_call.1} parent=155 // pred_region
          %1291 = dma.done [#allocation30], 16
        $region232: #{tpu_custom_call.1} parent=155 // pred_fallthru
          _
        // Predicated region
        $region233: #{tpu_custom_call.1} parent=155 // pred_check
          %p1292 = pneg %p734
        $region234: #{tpu_custom_call.1} parent=155 // pred_check_branch
          %1294 = sbr.rel (%p1292) target = $region236
        $region235: #{tpu_custom_call.1} parent=155 // pred_region
          %1295 = dma.done [#allocation33], 16
        $region236: #{tpu_custom_call.1} parent=155 // pred_fallthru
          _
        // Predicated region
        $region237: #{tpu_custom_call.1} parent=155 // pred_check
          %p1296 = pneg %p755
        $region238: #{tpu_custom_call.1} parent=155 // pred_check_branch
          %1298 = sbr.rel (%p1296) target = $region240
        $region239: #{tpu_custom_call.1} parent=155 // pred_region
          %1299 = dma.done [#allocation33], 16
        $region240: #{tpu_custom_call.1} parent=155 // pred_fallthru
          _
        %p1300 = scmp.lt.s32.totalorder %s100, 1
        %s1301 = scalar_select %p1300, %s100, 1
        %s1302 = smul.addr %s1301, 8
        %s1303 = scalar_lea.vmem %s1, %s1302
        %p1304 = pneg %p121
        %p1305 = pneg %p118
        %p1306 = scmp.lt.s32.totalorder %s100, 1
        %s1307 = scalar_select %p1306, %s100, 1
        %s1308 = smul.addr %s1307, 2
        %s1309 = smul.addr %s1308, 4
        %s1310 = scalar_lea.vmem %s3, %s1309
        %p1311 = pneg %p147
        %p1312 = pneg %p144
        %s1313 = sand.u32 %s160, 1
        %s1314 = scalar_lea.sflag [#allocation3], %s1313
        %s1315 = sand.u32 %s160, 1
        %s1316 = smul.addr %s1315, 4
        %s1317 = scalar_lea.vmem [#allocation2], %s1316
        %p1318 = pneg %p173
        %p1319 = pneg %p170
        %s1320 = sand.u32 %s100, 1
        %s1321 = scalar_lea.sflag [#allocation6], %s1320
        %s1322 = sand.u32 %s186, 1
        %s1323 = scalar_lea.vmem [#allocation5], %s1322
        %p1324 = pneg %p199
        %p1325 = pneg %p196
        %s1326 = sand.u32 %s100, 1
        %s1327 = scalar_lea.sflag [#allocation6], %s1326
        %s1328 = sand.u32 %s212, 1
        %s1329 = scalar_lea.vmem [#allocation7], %s1328
        %p1330 = pneg %p225
        %p1331 = pneg %p222
        %s1332 = sand.u32 %s100, 1
        %s1333 = scalar_lea.sflag [#allocation9], %s1332
        %s1334 = sand.u32 %s238, 1
        %s1335 = scalar_lea.vmem [#allocation8], %s1334
        %p1336 = pneg %p251
        %p1337 = pneg %p248
        %p1338 = pneg %p272
        %p1339 = pneg %p269
        %p1340 = pneg %p293
        %p1341 = pneg %p290
        %p1342 = pneg %p314
        %p1343 = pneg %p311
        %p1344 = pneg %p335
        %p1345 = pneg %p332
        %p1346 = pneg %p356
        %p1347 = pneg %p353
        %p1348 = pneg %p377
        %p1349 = pneg %p374
        %p1350 = pneg %p398
        %p1351 = pneg %p395
        %p1352 = pneg %p419
        %p1353 = pneg %p416
        %p1354 = pneg %p440
        %p1355 = pneg %p437
        %p1356 = pneg %p461
        %p1357 = pneg %p458
        %p1358 = pneg %p482
        %p1359 = pneg %p479
        %p1360 = pneg %p503
        %p1361 = pneg %p500
        %p1362 = pneg %p524
        %p1363 = pneg %p521
        %p1364 = pneg %p545
        %p1365 = pneg %p542
        %p1366 = pneg %p566
        %p1367 = pneg %p563
        %p1368 = pneg %p587
        %p1369 = pneg %p584
        %p1370 = pneg %p608
        %p1371 = pneg %p605
        %p1372 = pneg %p629
        %p1373 = pneg %p626
        %p1374 = pneg %p650
        %p1375 = pneg %p647
        %p1376 = pneg %p671
        %p1377 = pneg %p668
        %p1378 = pneg %p692
        %p1379 = pneg %p689
        %p1380 = pneg %p713
        %p1381 = pneg %p710
        %p1382 = pneg %p734
        %p1383 = pneg %p731
        %p1384 = pneg %p755
        %p1385 = pneg %p752
        %p1386 = pneg %p776
        %p1387 = pneg %p773
        %p1388 = pneg %p797
        %p1389 = pneg %p794
        %p1390 = pneg %p818
        %p1391 = pneg %p815
        %p1392 = pneg %p839
        %p1393 = pneg %p836
        %p1394 = pneg %p865
        %p1395 = pneg %p862
        %s1396 = sand.u32 %s852, 1
        %s1397 = scalar_lea.sflag [#allocation4], %s1396
        %s1398 = sand.u32 %s852, 1
        %s1399 = smul.addr %s1398, 8
        %s1400 = scalar_lea.vmem [#allocation35], %s1399
        %p1401 = scmp.lt.s32.totalorder %s100, 1
        %s1402 = scalar_select %p1401, %s100, 1
        %s1403 = smul.addr %s1402, 8
        %s1404 = scalar_lea.vmem %s1, %s1403
        %p1405 = scmp.lt.s32.totalorder %s100, 1
        %s1406 = scalar_select %p1405, %s100, 1
        %s1407 = smul.addr %s1406, 2
        %s1408 = smul.addr %s1407, 4
        %s1409 = scalar_lea.vmem %s3, %s1408
        %v1411 = vld [vmem:[%s1404] sm:$0xff]
        %v1412 = vld [vmem:[#allocation10] sm:$0x1]
        %v1413 = vld [vmem:[#allocation11] sm:$0x1]
        %vm1414 = vcmask 261120
        %v1415 = vsel %vm1414, %v1411, 0.0
        %1416 = vadd.xlane.f32.xlu0 %v1415
        %v1417 = vpop.xlane.xlu0 %1416
        %v1418 = vrcp.pop 32.0
        %v1419 = vmul.f32 %v1417, %v1418
        %v1420 = vsub.f32 %v1411, %v1419
        %v1421 = vmul.f32 %v1420, %v1420
        %v1422 = vsel %vm1414, %v1421, 0.0
        %1423 = vadd.xlane.f32.xlu0 %v1422
        %v1424 = vpop.xlane.xlu0 %1423
        %v1425 = vmul.f32 %v1424, %v1418
        %v1426 = vadd.f32 %v1425, 1e-06
        %v1427 = vrsqrt.pop %v1426
        %v1428 = vmul.f32 %v1420, %v1427
        %v1430 = vlaneseq
        %v1431 = vshrl.u32 %v1430, 7
        %v1432 = vsub.s32 0, %v1431
        %v1433 = vrot.slane %v1412, %v1432
        %v1435 = vmul.f32 %v1428, %v1433
        %v1437 = vlaneseq
        %v1438 = vshrl.u32 %v1437, 7
        %v1439 = vsub.s32 0, %v1438
        %v1440 = vrot.slane %v1413, %v1439
        %v1442 = vadd.f32 %v1435, %v1440
        %v1443 = vpack.c.bf16 %v1442, %v1442
        %v1444 = vld [vmem:[%s1211] sm:$0x1]
        %vm1445 = vcmp.gt.f32.partialorder %v1444, 0.5
        %v1446 = vld [vmem:[%s25] sm:$0xf]
        %v1447 = vld [vmem:[%s25 + $0x4] sm:$0xf]
        %v1448 = vld [vmem:[%s25 + $0x8] sm:$0xf]
        %v1449 = vld [vmem:[%s25 + $0xc] sm:$0xf]
        %v1450 = vld [vmem:[#allocation19] sm:$0x1]
        %v1452 = vlaneseq
        %v1453 = vshrl.u32 %v1452, 7
        %v1454 = vsub.s32 0, %v1453
        %v1455 = vrot.slane %v1450, %v1454
        %v1461 = vunpack.c.l.b16 %v1446
        %v1462 = vunpack.c.l.b16 %v1447
        %v1463 = vunpack.c.l.b16 %v1448
        %v1464 = vunpack.c.l.b16 %v1449
        %v1465 = vpack.c.b16 %v1462, %v1461
        %v1466 = vpack.c.b16 %v1464, %v1463
        %v1470 = vsel %vm1414, %v1443, 0
        %1472 = vmatprep.subr.bf16.mxu0 0
        %1473 = vmatpush1.bf16.msra.mxu0 %v1465
        %1474 = vmatprep.subr.bf16.mxu0 0
        %1475 = vmatpush1.bf16.msra.mxu0 %v1466
        %1476 = vmatprep.subr.bf16.mxu0 0
        %1477 = vmatpush1.bf16.msra.mxu0 0
        %1478 = vmatprep.subr.bf16.mxu0 0
        %1479 = vmatpush1.bf16.msra.mxu0 0
        %1480 = vmatprep.subr.bf16.mxu0 0
        %1481 = vmatpush1.bf16.msra.mxu0 0
        %1482 = vmatprep.subr.bf16.mxu0 0
        %1483 = vmatpush1.bf16.msra.mxu0 0
        %1484 = vmatprep.subr.bf16.mxu0 0
        %1485 = vmatpush1.bf16.msra.mxu0 0
        %1486 = vmatprep.subr.bf16.mxu0 0
        %1487 = vmatpush1.bf16.msra.mxu0 0
        %1488 = vmatprep.subr.bf16.mxu0 0
        %1489 = vmatpush1.bf16.msra.mxu0 0
        %1490 = vmatprep.subr.bf16.mxu0 0
        %1491 = vmatpush1.bf16.msra.mxu0 0
        %1492 = vmatprep.subr.bf16.mxu0 0
        %1493 = vmatpush1.bf16.msra.mxu0 0
        %1494 = vmatprep.subr.bf16.mxu0 0
        %1495 = vmatpush1.bf16.msra.mxu0 0
        %1496 = vmatprep.subr.bf16.mxu0 0
        %1497 = vmatpush1.bf16.msra.mxu0 0
        %1498 = vmatprep.subr.bf16.mxu0 0
        %1499 = vmatpush1.bf16.msra.mxu0 0
        %1500 = vmatprep.subr.bf16.mxu0 0
        %1501 = vmatpush1.bf16.msra.mxu0 0
        %1502 = vmatprep.subr.bf16.mxu0 0
        %1503 = vmatpush1.bf16.msra.mxu0 0
        %1504 = vmatprep.mubr.bf16.mxu0 0
        %1505 = vmatmul.mubr.bf16.gmra.mrb[0].mxu0 %v1470
        %v1506 = vpop.f32.mrb[0].mxu0
        %v1507 = vadd.f32 %v1455, %v1506
        %v1508 = vpop.f32.mrb[0].mxu0
        %v1509 = vpop.f32.mrb[0].mxu0
        %v1510 = vpop.f32.mrb[0].mxu0
        %1511 = vdwg.mxu0
        %v1512 = vpack.c.bf16 %v1507, %v1507
        %1514 = vrot.lane.b32.xlu0 %v1512, 120
        %v1515 = vpop.permute.xlu0 %1514
        %1516 = vrot.lane.b32.xlu0 %v1512, 112
        %v1517 = vpop.permute.xlu0 %1516
        %1518 = vrot.lane.b32.xlu0 %v1512, 104
        %v1519 = vpop.permute.xlu0 %1518
        %v1521 = vunpack.c.l.s4 1983009808
        %v1522 = vunpack.c.0.s8 %v1521
        %v1523 = vlaneseq
        %v1524 = vshrl.u32 %v1523, 7
        %v1525 = vsub.s32 %v1522, %v1524
        %v1526 = vrot.slane %v1512, %v1525
        %v1529 = vunpack.c.l.s4 1983009808
        %v1530 = vunpack.c.0.s8 %v1529
        %v1531 = vlaneseq
        %v1532 = vshrl.u32 %v1531, 7
        %v1533 = vsub.s32 %v1530, %v1532
        %v1534 = vrot.slane %v1517, %v1533
        %v1535 = vcombine.low %v1526, %v1534
        %v1536 = vcombine.high %v1526, %v1534
        %v1538 = vunpack.c.l.s4 1934713408
        %v1539 = vunpack.c.0.s8 %v1538
        %v1540 = vlaneseq
        %v1541 = vshrl.u32 %v1540, 7
        %v1542 = vsub.s32 %v1539, %v1541
        %v1543 = vrot.slane %v1535, %v1542
        %v1545 = vunpack.c.l.s4 1934713408
        %v1546 = vunpack.c.0.s8 %v1545
        %v1547 = vlaneseq
        %v1548 = vshrl.u32 %v1547, 7
        %v1549 = vsub.s32 %v1546, %v1548
        %v1550 = vrot.slane %v1536, %v1549
        %v1551 = vcombine.high %v1543, 0
        %v1552 = vcombine.high %v1550, 0
        %v1555 = vunpack.c.l.s4 1983009808
        %v1556 = vunpack.c.0.s8 %v1555
        %v1557 = vlaneseq
        %v1558 = vshrl.u32 %v1557, 7
        %v1559 = vsub.s32 %v1556, %v1558
        %v1560 = vrot.slane %v1515, %v1559
        %v1563 = vunpack.c.l.s4 1983009808
        %v1564 = vunpack.c.0.s8 %v1563
        %v1565 = vlaneseq
        %v1566 = vshrl.u32 %v1565, 7
        %v1567 = vsub.s32 %v1564, %v1566
        %v1568 = vrot.slane %v1519, %v1567
        %v1569 = vcombine.low %v1560, %v1568
        %v1570 = vcombine.high %v1560, %v1568
        %v1572 = vunpack.c.l.s4 1934713408
        %v1573 = vunpack.c.0.s8 %v1572
        %v1574 = vlaneseq
        %v1575 = vshrl.u32 %v1574, 7
        %v1576 = vsub.s32 %v1573, %v1575
        %v1577 = vrot.slane %v1569, %v1576
        %v1579 = vunpack.c.l.s4 1934713408
        %v1580 = vunpack.c.0.s8 %v1579
        %v1581 = vlaneseq
        %v1582 = vshrl.u32 %v1581, 7
        %v1583 = vsub.s32 %v1580, %v1582
        %v1584 = vrot.slane %v1570, %v1583
        %v1585 = vcombine.high %v1577, 0
        %v1586 = vcombine.high %v1584, 0
        %v1589 = vpack.i.b16 %v1577, %v1543
        %v1591 = vshrl.u32 %v1543, 16
        %v1592 = vshrl.u32 %v1577, 16
        %v1593 = vpack.i.b16 %v1592, %v1591
        %v1597 = vpack.i.b16 %v1585, %v1551
        %v1599 = vshrl.u32 %v1551, 16
        %v1600 = vshrl.u32 %v1585, 16
        %v1601 = vpack.i.b16 %v1600, %v1599
        %v1605 = vpack.i.b16 %v1584, %v1550
        %v1607 = vshrl.u32 %v1550, 16
        %v1608 = vshrl.u32 %v1584, 16
        %v1609 = vpack.i.b16 %v1608, %v1607
        %v1613 = vpack.i.b16 %v1586, %v1552
        %v1615 = vshrl.u32 %v1552, 16
        %v1616 = vshrl.u32 %v1586, 16
        %v1617 = vpack.i.b16 %v1616, %v1615
        %v1619 = vcombine.low %v1589, %v1605
        %v1621 = vunpack.c.l.s4 1983009808
        %v1622 = vunpack.c.0.s8 %v1621
        %v1623 = vlaneseq
        %v1624 = vshrl.u32 %v1623, 7
        %v1625 = vsub.s32 %v1622, %v1624
        %v1626 = vrot.slane %v1619, %v1625
        %v1627 = vcombine.low %v1597, %v1613
        %v1629 = vunpack.c.l.s4 1983009808
        %v1630 = vunpack.c.0.s8 %v1629
        %v1631 = vlaneseq
        %v1632 = vshrl.u32 %v1631, 7
        %v1633 = vsub.s32 %v1630, %v1632
        %v1634 = vrot.slane %v1627, %v1633
        %v1635 = vcombine.low %v1626, %v1634
        %v1637 = vunpack.c.l.s4 1934713408
        %v1638 = vunpack.c.0.s8 %v1637
        %v1639 = vlaneseq
        %v1640 = vshrl.u32 %v1639, 7
        %v1641 = vsub.s32 %v1638, %v1640
        %v1642 = vrot.slane %v1635, %v1641
        %v1643 = vcombine.high %v1642, 0
        %v1644 = vcombine.low %v1593, %v1609
        %v1646 = vunpack.c.l.s4 1983009808
        %v1647 = vunpack.c.0.s8 %v1646
        %v1648 = vlaneseq
        %v1649 = vshrl.u32 %v1648, 7
        %v1650 = vsub.s32 %v1647, %v1649
        %v1651 = vrot.slane %v1644, %v1650
        %v1652 = vcombine.low %v1601, %v1617
        %v1654 = vunpack.c.l.s4 1983009808
        %v1655 = vunpack.c.0.s8 %v1654
        %v1656 = vlaneseq
        %v1657 = vshrl.u32 %v1656, 7
        %v1658 = vsub.s32 %v1655, %v1657
        %v1659 = vrot.slane %v1652, %v1658
        %v1660 = vcombine.low %v1651, %v1659
        %v1662 = vunpack.c.l.s4 1934713408
        %v1663 = vunpack.c.0.s8 %v1662
        %v1664 = vlaneseq
        %v1665 = vshrl.u32 %v1664, 7
        %v1666 = vsub.s32 %v1663, %v1665
        %v1667 = vrot.slane %v1660, %v1666
        %v1668 = vcombine.high %v1667, 0
        %v1671 = vpack.i.b16 %v1667, %v1642
        %v1672 = vshrl.u32 %v1642, 16
        %v1673 = vshrl.u32 %v1667, 16
        %v1674 = vpack.i.b16 %v1673, %v1672
        %v1677 = vpack.i.b16 %v1668, %v1643
        %v1678 = vshrl.u32 %v1643, 16
        %v1679 = vshrl.u32 %v1668, 16
        %v1680 = vpack.i.b16 %v1679, %v1678
        %1681 = vrot.lane.b32.xlu0 %v1512, 96
        %v1682 = vpop.permute.xlu0 %1681
        %1683 = vrot.lane.b32.xlu0 %v1515, 96
        %v1684 = vpop.permute.xlu0 %1683
        %1685 = vrot.lane.b32.xlu0 %v1517, 96
        %v1686 = vpop.permute.xlu0 %1685
        %1687 = vrot.lane.b32.xlu0 %v1519, 96
        %v1688 = vpop.permute.xlu0 %1687
        %v1691 = vunpack.c.l.s4 1983009808
        %v1692 = vunpack.c.0.s8 %v1691
        %v1693 = vlaneseq
        %v1694 = vshrl.u32 %v1693, 7
        %v1695 = vsub.s32 %v1692, %v1694
        %v1696 = vrot.slane %v1682, %v1695
        %v1699 = vunpack.c.l.s4 1983009808
        %v1700 = vunpack.c.0.s8 %v1699
        %v1701 = vlaneseq
        %v1702 = vshrl.u32 %v1701, 7
        %v1703 = vsub.s32 %v1700, %v1702
        %v1704 = vrot.slane %v1686, %v1703
        %v1705 = vcombine.low %v1696, %v1704
        %v1706 = vcombine.high %v1696, %v1704
        %v1708 = vunpack.c.l.s4 1934713408
        %v1709 = vunpack.c.0.s8 %v1708
        %v1710 = vlaneseq
        %v1711 = vshrl.u32 %v1710, 7
        %v1712 = vsub.s32 %v1709, %v1711
        %v1713 = vrot.slane %v1705, %v1712
        %v1715 = vunpack.c.l.s4 1934713408
        %v1716 = vunpack.c.0.s8 %v1715
        %v1717 = vlaneseq
        %v1718 = vshrl.u32 %v1717, 7
        %v1719 = vsub.s32 %v1716, %v1718
        %v1720 = vrot.slane %v1706, %v1719
        %v1721 = vcombine.high %v1713, 0
        %v1722 = vcombine.high %v1720, 0
        %v1725 = vunpack.c.l.s4 1983009808
        %v1726 = vunpack.c.0.s8 %v1725
        %v1727 = vlaneseq
        %v1728 = vshrl.u32 %v1727, 7
        %v1729 = vsub.s32 %v1726, %v1728
        %v1730 = vrot.slane %v1684, %v1729
        %v1733 = vunpack.c.l.s4 1983009808
        %v1734 = vunpack.c.0.s8 %v1733
        %v1735 = vlaneseq
        %v1736 = vshrl.u32 %v1735, 7
        %v1737 = vsub.s32 %v1734, %v1736
        %v1738 = vrot.slane %v1688, %v1737
        %v1739 = vcombine.low %v1730, %v1738
        %v1740 = vcombine.high %v1730, %v1738
        %v1742 = vunpack.c.l.s4 1934713408
        %v1743 = vunpack.c.0.s8 %v1742
        %v1744 = vlaneseq
        %v1745 = vshrl.u32 %v1744, 7
        %v1746 = vsub.s32 %v1743, %v1745
        %v1747 = vrot.slane %v1739, %v1746
        %v1749 = vunpack.c.l.s4 1934713408
        %v1750 = vunpack.c.0.s8 %v1749
        %v1751 = vlaneseq
        %v1752 = vshrl.u32 %v1751, 7
        %v1753 = vsub.s32 %v1750, %v1752
        %v1754 = vrot.slane %v1740, %v1753
        %v1755 = vcombine.high %v1747, 0
        %v1756 = vcombine.high %v1754, 0
        %v1759 = vpack.i.b16 %v1747, %v1713
        %v1761 = vshrl.u32 %v1713, 16
        %v1762 = vshrl.u32 %v1747, 16
        %v1763 = vpack.i.b16 %v1762, %v1761
        %v1767 = vpack.i.b16 %v1755, %v1721
        %v1769 = vshrl.u32 %v1721, 16
        %v1770 = vshrl.u32 %v1755, 16
        %v1771 = vpack.i.b16 %v1770, %v1769
        %v1775 = vpack.i.b16 %v1754, %v1720
        %v1777 = vshrl.u32 %v1720, 16
        %v1778 = vshrl.u32 %v1754, 16
        %v1779 = vpack.i.b16 %v1778, %v1777
        %v1783 = vpack.i.b16 %v1756, %v1722
        %v1785 = vshrl.u32 %v1722, 16
        %v1786 = vshrl.u32 %v1756, 16
        %v1787 = vpack.i.b16 %v1786, %v1785
        %v1789 = vcombine.low %v1759, %v1775
        %v1791 = vunpack.c.l.s4 1983009808
        %v1792 = vunpack.c.0.s8 %v1791
        %v1793 = vlaneseq
        %v1794 = vshrl.u32 %v1793, 7
        %v1795 = vsub.s32 %v1792, %v1794
        %v1796 = vrot.slane %v1789, %v1795
        %v1797 = vcombine.low %v1767, %v1783
        %v1799 = vunpack.c.l.s4 1983009808
        %v1800 = vunpack.c.0.s8 %v1799
        %v1801 = vlaneseq
        %v1802 = vshrl.u32 %v1801, 7
        %v1803 = vsub.s32 %v1800, %v1802
        %v1804 = vrot.slane %v1797, %v1803
        %v1805 = vcombine.low %v1796, %v1804
        %v1807 = vunpack.c.l.s4 1934713408
        %v1808 = vunpack.c.0.s8 %v1807
        %v1809 = vlaneseq
        %v1810 = vshrl.u32 %v1809, 7
        %v1811 = vsub.s32 %v1808, %v1810
        %v1812 = vrot.slane %v1805, %v1811
        %v1813 = vcombine.high %v1812, 0
        %v1814 = vcombine.low %v1763, %v1779
        %v1816 = vunpack.c.l.s4 1983009808
        %v1817 = vunpack.c.0.s8 %v1816
        %v1818 = vlaneseq
        %v1819 = vshrl.u32 %v1818, 7
        %v1820 = vsub.s32 %v1817, %v1819
        %v1821 = vrot.slane %v1814, %v1820
        %v1822 = vcombine.low %v1771, %v1787
        %v1824 = vunpack.c.l.s4 1983009808
        %v1825 = vunpack.c.0.s8 %v1824
        %v1826 = vlaneseq
        %v1827 = vshrl.u32 %v1826, 7
        %v1828 = vsub.s32 %v1825, %v1827
        %v1829 = vrot.slane %v1822, %v1828
        %v1830 = vcombine.low %v1821, %v1829
        %v1832 = vunpack.c.l.s4 1934713408
        %v1833 = vunpack.c.0.s8 %v1832
        %v1834 = vlaneseq
        %v1835 = vshrl.u32 %v1834, 7
        %v1836 = vsub.s32 %v1833, %v1835
        %v1837 = vrot.slane %v1830, %v1836
        %v1838 = vcombine.high %v1837, 0
        %v1841 = vpack.i.b16 %v1837, %v1812
        %v1842 = vshrl.u32 %v1812, 16
        %v1843 = vshrl.u32 %v1837, 16
        %v1844 = vpack.i.b16 %v1843, %v1842
        %v1847 = vpack.i.b16 %v1838, %v1813
        %v1848 = vshrl.u32 %v1813, 16
        %v1849 = vshrl.u32 %v1838, 16
        %v1850 = vpack.i.b16 %v1849, %v1848
        %1851 = vrot.lane.b32.xlu0 %v1512, 64
        %v1852 = vpop.permute.xlu0 %1851
        %1853 = vrot.lane.b32.xlu0 %v1515, 64
        %v1854 = vpop.permute.xlu0 %1853
        %1855 = vrot.lane.b32.xlu0 %v1517, 64
        %v1856 = vpop.permute.xlu0 %1855
        %1857 = vrot.lane.b32.xlu0 %v1519, 64
        %v1858 = vpop.permute.xlu0 %1857
        %v1861 = vunpack.c.l.s4 1983009808
        %v1862 = vunpack.c.0.s8 %v1861
        %v1863 = vlaneseq
        %v1864 = vshrl.u32 %v1863, 7
        %v1865 = vsub.s32 %v1862, %v1864
        %v1866 = vrot.slane %v1852, %v1865
        %v1869 = vunpack.c.l.s4 1983009808
        %v1870 = vunpack.c.0.s8 %v1869
        %v1871 = vlaneseq
        %v1872 = vshrl.u32 %v1871, 7
        %v1873 = vsub.s32 %v1870, %v1872
        %v1874 = vrot.slane %v1856, %v1873
        %v1875 = vcombine.low %v1866, %v1874
        %v1876 = vcombine.high %v1866, %v1874
        %v1878 = vunpack.c.l.s4 1934713408
        %v1879 = vunpack.c.0.s8 %v1878
        %v1880 = vlaneseq
        %v1881 = vshrl.u32 %v1880, 7
        %v1882 = vsub.s32 %v1879, %v1881
        %v1883 = vrot.slane %v1875, %v1882
        %v1885 = vunpack.c.l.s4 1934713408
        %v1886 = vunpack.c.0.s8 %v1885
        %v1887 = vlaneseq
        %v1888 = vshrl.u32 %v1887, 7
        %v1889 = vsub.s32 %v1886, %v1888
        %v1890 = vrot.slane %v1876, %v1889
        %v1891 = vcombine.high %v1883, 0
        %v1892 = vcombine.high %v1890, 0
        %v1895 = vunpack.c.l.s4 1983009808
        %v1896 = vunpack.c.0.s8 %v1895
        %v1897 = vlaneseq
        %v1898 = vshrl.u32 %v1897, 7
        %v1899 = vsub.s32 %v1896, %v1898
        %v1900 = vrot.slane %v1854, %v1899
        %v1903 = vunpack.c.l.s4 1983009808
        %v1904 = vunpack.c.0.s8 %v1903
        %v1905 = vlaneseq
        %v1906 = vshrl.u32 %v1905, 7
        %v1907 = vsub.s32 %v1904, %v1906
        %v1908 = vrot.slane %v1858, %v1907
        %v1909 = vcombine.low %v1900, %v1908
        %v1910 = vcombine.high %v1900, %v1908
        %v1912 = vunpack.c.l.s4 1934713408
        %v1913 = vunpack.c.0.s8 %v1912
        %v1914 = vlaneseq
        %v1915 = vshrl.u32 %v1914, 7
        %v1916 = vsub.s32 %v1913, %v1915
        %v1917 = vrot.slane %v1909, %v1916
        %v1919 = vunpack.c.l.s4 1934713408
        %v1920 = vunpack.c.0.s8 %v1919
        %v1921 = vlaneseq
        %v1922 = vshrl.u32 %v1921, 7
        %v1923 = vsub.s32 %v1920, %v1922
        %v1924 = vrot.slane %v1910, %v1923
        %v1925 = vcombine.high %v1917, 0
        %v1926 = vcombine.high %v1924, 0
        %v1929 = vpack.i.b16 %v1917, %v1883
        %v1931 = vshrl.u32 %v1883, 16
        %v1932 = vshrl.u32 %v1917, 16
        %v1933 = vpack.i.b16 %v1932, %v1931
        %v1937 = vpack.i.b16 %v1925, %v1891
        %v1939 = vshrl.u32 %v1891, 16
        %v1940 = vshrl.u32 %v1925, 16
        %v1941 = vpack.i.b16 %v1940, %v1939
        %v1945 = vpack.i.b16 %v1924, %v1890
        %v1947 = vshrl.u32 %v1890, 16
        %v1948 = vshrl.u32 %v1924, 16
        %v1949 = vpack.i.b16 %v1948, %v1947
        %v1953 = vpack.i.b16 %v1926, %v1892
        %v1955 = vshrl.u32 %v1892, 16
        %v1956 = vshrl.u32 %v1926, 16
        %v1957 = vpack.i.b16 %v1956, %v1955
        %v1959 = vcombine.low %v1929, %v1945
        %v1961 = vunpack.c.l.s4 1983009808
        %v1962 = vunpack.c.0.s8 %v1961
        %v1963 = vlaneseq
        %v1964 = vshrl.u32 %v1963, 7
        %v1965 = vsub.s32 %v1962, %v1964
        %v1966 = vrot.slane %v1959, %v1965
        %v1967 = vcombine.low %v1937, %v1953
        %v1969 = vunpack.c.l.s4 1983009808
        %v1970 = vunpack.c.0.s8 %v1969
        %v1971 = vlaneseq
        %v1972 = vshrl.u32 %v1971, 7
        %v1973 = vsub.s32 %v1970, %v1972
        %v1974 = vrot.slane %v1967, %v1973
        %v1975 = vcombine.low %v1966, %v1974
        %v1977 = vunpack.c.l.s4 1934713408
        %v1978 = vunpack.c.0.s8 %v1977
        %v1979 = vlaneseq
        %v1980 = vshrl.u32 %v1979, 7
        %v1981 = vsub.s32 %v1978, %v1980
        %v1982 = vrot.slane %v1975, %v1981
        %v1983 = vcombine.high %v1982, 0
        %v1984 = vcombine.low %v1933, %v1949
        %v1986 = vunpack.c.l.s4 1983009808
        %v1987 = vunpack.c.0.s8 %v1986
        %v1988 = vlaneseq
        %v1989 = vshrl.u32 %v1988, 7
        %v1990 = vsub.s32 %v1987, %v1989
        %v1991 = vrot.slane %v1984, %v1990
        %v1992 = vcombine.low %v1941, %v1957
        %v1994 = vunpack.c.l.s4 1983009808
        %v1995 = vunpack.c.0.s8 %v1994
        %v1996 = vlaneseq
        %v1997 = vshrl.u32 %v1996, 7
        %v1998 = vsub.s32 %v1995, %v1997
        %v1999 = vrot.slane %v1992, %v1998
        %v2000 = vcombine.low %v1991, %v1999
        %v2002 = vunpack.c.l.s4 1934713408
        %v2003 = vunpack.c.0.s8 %v2002
        %v2004 = vlaneseq
        %v2005 = vshrl.u32 %v2004, 7
        %v2006 = vsub.s32 %v2003, %v2005
        %v2007 = vrot.slane %v2000, %v2006
        %v2008 = vcombine.high %v2007, 0
        %v2011 = vpack.i.b16 %v2007, %v1982
        %v2012 = vshrl.u32 %v1982, 16
        %v2013 = vshrl.u32 %v2007, 16
        %v2014 = vpack.i.b16 %v2013, %v2012
        %v2017 = vpack.i.b16 %v2008, %v1983
        %v2018 = vshrl.u32 %v1983, 16
        %v2019 = vshrl.u32 %v2008, 16
        %v2020 = vpack.i.b16 %v2019, %v2018
        %vm2021 = vcmask 64512
        %v2023 = vsel %vm2021, %v1671, 0
        %v2026 = vsel %vm2021, %v1841, 0
        %2028 = vmatprep.subr.bf16.mxu0 0
        %2029 = vmatpush1.bf16.xpose.msra.mxu0 %v2026
        %2030 = vmatprep.subr.bf16.mxu0 0
        %2031 = vmatpush1.bf16.xpose.msra.mxu0 0
        %2032 = vmatprep.subr.bf16.mxu0 0
        %2033 = vmatpush1.bf16.xpose.msra.mxu0 0
        %2034 = vmatprep.subr.bf16.mxu0 0
        %2035 = vmatpush1.bf16.xpose.msra.mxu0 0
        %2036 = vmatprep.subr.bf16.mxu0 0
        %2037 = vmatpush1.bf16.xpose.msra.mxu0 0
        %2038 = vmatprep.subr.bf16.mxu0 0
        %2039 = vmatpush1.bf16.xpose.msra.mxu0 0
        %2040 = vmatprep.subr.bf16.mxu0 0
        %2041 = vmatpush1.bf16.xpose.msra.mxu0 0
        %2042 = vmatprep.subr.bf16.mxu0 0
        %2043 = vmatpush1.bf16.xpose.msra.mxu0 0
        %2044 = vmatprep.subr.bf16.mxu0 0
        %2045 = vmatpush1.bf16.xpose.msra.mxu0 0
        %2046 = vmatprep.subr.bf16.mxu0 0
        %2047 = vmatpush1.bf16.xpose.msra.mxu0 0
        %2048 = vmatprep.subr.bf16.mxu0 0
        %2049 = vmatpush1.bf16.xpose.msra.mxu0 0
        %2050 = vmatprep.subr.bf16.mxu0 0
        %2051 = vmatpush1.bf16.xpose.msra.mxu0 0
        %2052 = vmatprep.subr.bf16.mxu0 0
        %2053 = vmatpush1.bf16.xpose.msra.mxu0 0
        %2054 = vmatprep.subr.bf16.mxu0 0
        %2055 = vmatpush1.bf16.xpose.msra.mxu0 0
        %2056 = vmatprep.subr.bf16.mxu0 0
        %2057 = vmatpush1.bf16.xpose.msra.mxu0 0
        %2058 = vmatprep.subr.bf16.mxu0 0
        %2059 = vmatpush1.bf16.xpose.msra.mxu0 0
        %2060 = vmatprep.mubr.bf16.mxu0 0
        %2061 = vmatmul.mubr.bf16.gmra.mrb[0].mxu0 %v2023
        %v2062 = vpop.f32.mrb[0].mxu0
        %v2063 = vadd.f32 0.0, %v2062
        %v2064 = vpop.f32.mrb[0].mxu0
        %v2065 = vpop.f32.mrb[0].mxu0
        %v2066 = vpop.f32.mrb[0].mxu0
        %2067 = vdwg.mxu0
        %v2069 = vsel %vm2021, %v1674, 0
        %v2072 = vsel %vm2021, %v1844, 0
        %2074 = vmatprep.subr.bf16.mxu0 0
        %2075 = vmatpush1.bf16.xpose.msra.mxu0 %v2072
        %2076 = vmatprep.subr.bf16.mxu0 0
        %2077 = vmatpush1.bf16.xpose.msra.mxu0 0
        %2078 = vmatprep.subr.bf16.mxu0 0
        %2079 = vmatpush1.bf16.xpose.msra.mxu0 0
        %2080 = vmatprep.subr.bf16.mxu0 0
        %2081 = vmatpush1.bf16.xpose.msra.mxu0 0
        %2082 = vmatprep.subr.bf16.mxu0 0
        %2083 = vmatpush1.bf16.xpose.msra.mxu0 0
        %2084 = vmatprep.subr.bf16.mxu0 0
        %2085 = vmatpush1.bf16.xpose.msra.mxu0 0
        %2086 = vmatprep.subr.bf16.mxu0 0
        %2087 = vmatpush1.bf16.xpose.msra.mxu0 0
        %2088 = vmatprep.subr.bf16.mxu0 0
        %2089 = vmatpush1.bf16.xpose.msra.mxu0 0
        %2090 = vmatprep.subr.bf16.mxu0 0
        %2091 = vmatpush1.bf16.xpose.msra.mxu0 0
        %2092 = vmatprep.subr.bf16.mxu0 0
        %2093 = vmatpush1.bf16.xpose.msra.mxu0 0
        %2094 = vmatprep.subr.bf16.mxu0 0
        %2095 = vmatpush1.bf16.xpose.msra.mxu0 0
        %2096 = vmatprep.subr.bf16.mxu0 0
        %2097 = vmatpush1.bf16.xpose.msra.mxu0 0
        %2098 = vmatprep.subr.bf16.mxu0 0
        %2099 = vmatpush1.bf16.xpose.msra.mxu0 0
        %2100 = vmatprep.subr.bf16.mxu0 0
        %2101 = vmatpush1.bf16.xpose.msra.mxu0 0
        %2102 = vmatprep.subr.bf16.mxu0 0
        %2103 = vmatpush1.bf16.xpose.msra.mxu0 0
        %2104 = vmatprep.subr.bf16.mxu0 0
        %2105 = vmatpush1.bf16.xpose.msra.mxu0 0
        %2106 = vmatprep.mubr.bf16.mxu0 0
        %2107 = vmatmul.mubr.bf16.gmra.mrb[0].mxu0 %v2069
        %v2108 = vpop.f32.mrb[0].mxu0
        %v2109 = vadd.f32 0.0, %v2108
        %v2110 = vpop.f32.mrb[0].mxu0
        %v2111 = vpop.f32.mrb[0].mxu0
        %v2112 = vpop.f32.mrb[0].mxu0
        %2113 = vdwg.mxu0
        %v2115 = vsel %vm2021, %v1677, 0
        %v2118 = vsel %vm2021, %v1847, 0
        %2120 = vmatprep.subr.bf16.mxu0 0
        %2121 = vmatpush1.bf16.xpose.msra.mxu0 %v2118
        %2122 = vmatprep.subr.bf16.mxu0 0
        %2123 = vmatpush1.bf16.xpose.msra.mxu0 0
        %2124 = vmatprep.subr.bf16.mxu0 0
        %2125 = vmatpush1.bf16.xpose.msra.mxu0 0
        %2126 = vmatprep.subr.bf16.mxu0 0
        %2127 = vmatpush1.bf16.xpose.msra.mxu0 0
        %2128 = vmatprep.subr.bf16.mxu0 0
        %2129 = vmatpush1.bf16.xpose.msra.mxu0 0
        %2130 = vmatprep.subr.bf16.mxu0 0
        %2131 = vmatpush1.bf16.xpose.msra.mxu0 0
        %2132 = vmatprep.subr.bf16.mxu0 0
        %2133 = vmatpush1.bf16.xpose.msra.mxu0 0
        %2134 = vmatprep.subr.bf16.mxu0 0
        %2135 = vmatpush1.bf16.xpose.msra.mxu0 0
        %2136 = vmatprep.subr.bf16.mxu0 0
        %2137 = vmatpush1.bf16.xpose.msra.mxu0 0
        %2138 = vmatprep.subr.bf16.mxu0 0
        %2139 = vmatpush1.bf16.xpose.msra.mxu0 0
        %2140 = vmatprep.subr.bf16.mxu0 0
        %2141 = vmatpush1.bf16.xpose.msra.mxu0 0
        %2142 = vmatprep.subr.bf16.mxu0 0
        %2143 = vmatpush1.bf16.xpose.msra.mxu0 0
        %2144 = vmatprep.subr.bf16.mxu0 0
        %2145 = vmatpush1.bf16.xpose.msra.mxu0 0
        %2146 = vmatprep.subr.bf16.mxu0 0
        %2147 = vmatpush1.bf16.xpose.msra.mxu0 0
        %2148 = vmatprep.subr.bf16.mxu0 0
        %2149 = vmatpush1.bf16.xpose.msra.mxu0 0
        %2150 = vmatprep.subr.bf16.mxu0 0
        %2151 = vmatpush1.bf16.xpose.msra.mxu0 0
        %2152 = vmatprep.mubr.bf16.mxu0 0
        %2153 = vmatmul.mubr.bf16.gmra.mrb[0].mxu0 %v2115
        %v2154 = vpop.f32.mrb[0].mxu0
        %v2155 = vadd.f32 0.0, %v2154
        %v2156 = vpop.f32.mrb[0].mxu0
        %v2157 = vpop.f32.mrb[0].mxu0
        %v2158 = vpop.f32.mrb[0].mxu0
        %2159 = vdwg.mxu0
        %v2161 = vsel %vm2021, %v1680, 0
        %v2164 = vsel %vm2021, %v1850, 0
        %2166 = vmatprep.subr.bf16.mxu0 0
        %2167 = vmatpush1.bf16.xpose.msra.mxu0 %v2164
        %2168 = vmatprep.subr.bf16.mxu0 0
        %2169 = vmatpush1.bf16.xpose.msra.mxu0 0
        %2170 = vmatprep.subr.bf16.mxu0 0
        %2171 = vmatpush1.bf16.xpose.msra.mxu0 0
        %2172 = vmatprep.subr.bf16.mxu0 0
        %2173 = vmatpush1.bf16.xpose.msra.mxu0 0
        %2174 = vmatprep.subr.bf16.mxu0 0
        %2175 = vmatpush1.bf16.xpose.msra.mxu0 0
        %2176 = vmatprep.subr.bf16.mxu0 0
        %2177 = vmatpush1.bf16.xpose.msra.mxu0 0
        %2178 = vmatprep.subr.bf16.mxu0 0
        %2179 = vmatpush1.bf16.xpose.msra.mxu0 0
        %2180 = vmatprep.subr.bf16.mxu0 0
        %2181 = vmatpush1.bf16.xpose.msra.mxu0 0
        %2182 = vmatprep.subr.bf16.mxu0 0
        %2183 = vmatpush1.bf16.xpose.msra.mxu0 0
        %2184 = vmatprep.subr.bf16.mxu0 0
        %2185 = vmatpush1.bf16.xpose.msra.mxu0 0
        %2186 = vmatprep.subr.bf16.mxu0 0
        %2187 = vmatpush1.bf16.xpose.msra.mxu0 0
        %2188 = vmatprep.subr.bf16.mxu0 0
        %2189 = vmatpush1.bf16.xpose.msra.mxu0 0
        %2190 = vmatprep.subr.bf16.mxu0 0
        %2191 = vmatpush1.bf16.xpose.msra.mxu0 0
        %2192 = vmatprep.subr.bf16.mxu0 0
        %2193 = vmatpush1.bf16.xpose.msra.mxu0 0
        %2194 = vmatprep.subr.bf16.mxu0 0
        %2195 = vmatpush1.bf16.xpose.msra.mxu0 0
        %2196 = vmatprep.subr.bf16.mxu0 0
        %2197 = vmatpush1.bf16.xpose.msra.mxu0 0
        %2198 = vmatprep.mubr.bf16.mxu0 0
        %2199 = vmatmul.mubr.bf16.gmra.mrb[0].mxu0 %v2161
        %v2200 = vpop.f32.mrb[0].mxu0
        %v2201 = vadd.f32 0.0, %v2200
        %v2202 = vpop.f32.mrb[0].mxu0
        %v2203 = vpop.f32.mrb[0].mxu0
        %v2204 = vpop.f32.mrb[0].mxu0
        %2205 = vdwg.mxu0
        %v2206 = vsel %vm1445, 1, 0
        %v2207 = vlaneseq
        %v2208 = vshrl.u32 %v2207, 7
        %v2209 = vsub.s32 0, %v2208
        %v2210 = vrot.slane %v2206, %v2209
        %vm2211 = vcmp.eq.s32.totalorder %v2210, 1
        %v2212 = vsel %vm2211, -1e+18, %v2063
        %v2213 = vsel %vm2211, -1e+18, %v2109
        %v2214 = vsel %vm2211, -1e+18, %v2155
        %v2215 = vsel %vm2211, -1e+18, %v2201
        %v2216 = vsel %vm2021, %v2212, -inf
        %2217 = vmax.xlane.f32.xlu0 %v2216
        %v2218 = vpop.xlane.xlu0 %2217
        %v2219 = vsel %vm2021, %v2213, -inf
        %2220 = vmax.xlane.f32.xlu0 %v2219
        %v2221 = vpop.xlane.xlu0 %2220
        %v2222 = vsel %vm2021, %v2214, -inf
        %2223 = vmax.xlane.f32.xlu0 %v2222
        %v2224 = vpop.xlane.xlu0 %2223
        %v2225 = vsel %vm2021, %v2215, -inf
        %2226 = vmax.xlane.f32.xlu0 %v2225
        %v2227 = vpop.xlane.xlu0 %2226
        %v2228 = vsub.f32 %v2212, %v2218
        %v2229 = vsub.f32 %v2213, %v2221
        %v2230 = vsub.f32 %v2214, %v2224
        %v2231 = vsub.f32 %v2215, %v2227
        %v2232 = vmul.f32 %v2228, 1.442695
        %v2233 = vpow.pop %v2232
        %v2234 = vmul.f32 %v2229, 1.442695
        %v2235 = vpow.pop %v2234
        %v2236 = vmul.f32 %v2230, 1.442695
        %v2237 = vpow.pop %v2236
        %v2238 = vmul.f32 %v2231, 1.442695
        %v2239 = vpow.pop %v2238
        %v2240 = vsel %vm2021, %v2233, 0.0
        %2241 = vadd.xlane.f32.xlu0 %v2240
        %v2242 = vpop.xlane.xlu0 %2241
        %v2243 = vsel %vm2021, %v2235, 0.0
        %2244 = vadd.xlane.f32.xlu0 %v2243
        %v2245 = vpop.xlane.xlu0 %2244
        %v2246 = vsel %vm2021, %v2237, 0.0
        %2247 = vadd.xlane.f32.xlu0 %v2246
        %v2248 = vpop.xlane.xlu0 %2247
        %v2249 = vsel %vm2021, %v2239, 0.0
        %2250 = vadd.xlane.f32.xlu0 %v2249
        %v2251 = vpop.xlane.xlu0 %2250
        %v2252 = vrcp.pop %v2242
        %v2253 = vrcp.pop %v2245
        %v2254 = vrcp.pop %v2248
        %v2255 = vrcp.pop %v2251
        %v2256 = vmul.f32 %v2233, %v2252
        %v2257 = vmul.f32 %v2235, %v2253
        %v2258 = vmul.f32 %v2237, %v2254
        %v2259 = vmul.f32 %v2239, %v2255
        %v2260 = vpack.c.bf16 %v2256, %v2256
        %v2261 = vpack.c.bf16 %v2257, %v2257
        %v2262 = vpack.c.bf16 %v2258, %v2258
        %v2263 = vpack.c.bf16 %v2259, %v2259
        %v2265 = vsel %vm2021, %v2260, 0
        %vm2267 = vcmask 1043456
        %v2269 = vsel %vm2267, %v2011, 0
        %2271 = vmatprep.subr.bf16.mxu0 0
        %2272 = vmatpush1.bf16.msra.mxu0 %v2269
        %2273 = vmatprep.subr.bf16.mxu0 0
        %2274 = vmatpush1.bf16.msra.mxu0 0
        %2275 = vmatprep.subr.bf16.mxu0 0
        %2276 = vmatpush1.bf16.msra.mxu0 0
        %2277 = vmatprep.subr.bf16.mxu0 0
        %2278 = vmatpush1.bf16.msra.mxu0 0
        %2279 = vmatprep.subr.bf16.mxu0 0
        %2280 = vmatpush1.bf16.msra.mxu0 0
        %2281 = vmatprep.subr.bf16.mxu0 0
        %2282 = vmatpush1.bf16.msra.mxu0 0
        %2283 = vmatprep.subr.bf16.mxu0 0
        %2284 = vmatpush1.bf16.msra.mxu0 0
        %2285 = vmatprep.subr.bf16.mxu0 0
        %2286 = vmatpush1.bf16.msra.mxu0 0
        %2287 = vmatprep.subr.bf16.mxu0 0
        %2288 = vmatpush1.bf16.msra.mxu0 0
        %2289 = vmatprep.subr.bf16.mxu0 0
        %2290 = vmatpush1.bf16.msra.mxu0 0
        %2291 = vmatprep.subr.bf16.mxu0 0
        %2292 = vmatpush1.bf16.msra.mxu0 0
        %2293 = vmatprep.subr.bf16.mxu0 0
        %2294 = vmatpush1.bf16.msra.mxu0 0
        %2295 = vmatprep.subr.bf16.mxu0 0
        %2296 = vmatpush1.bf16.msra.mxu0 0
        %2297 = vmatprep.subr.bf16.mxu0 0
        %2298 = vmatpush1.bf16.msra.mxu0 0
        %2299 = vmatprep.subr.bf16.mxu0 0
        %2300 = vmatpush1.bf16.msra.mxu0 0
        %2301 = vmatprep.subr.bf16.mxu0 0
        %2302 = vmatpush1.bf16.msra.mxu0 0
        %2303 = vmatprep.mubr.bf16.mxu0 0
        %2304 = vmatmul.mubr.bf16.gmra.mrb[0].mxu0 %v2265
        %v2305 = vpop.f32.mrb[0].mxu0
        %v2306 = vadd.f32 0.0, %v2305
        %v2307 = vpop.f32.mrb[0].mxu0
        %v2308 = vpop.f32.mrb[0].mxu0
        %v2309 = vpop.f32.mrb[0].mxu0
        %2310 = vdwg.mxu0
        %v2312 = vsel %vm2021, %v2261, 0
        %v2315 = vsel %vm2267, %v2014, 0
        %2317 = vmatprep.subr.bf16.mxu0 0
        %2318 = vmatpush1.bf16.msra.mxu0 %v2315
        %2319 = vmatprep.subr.bf16.mxu0 0
        %2320 = vmatpush1.bf16.msra.mxu0 0
        %2321 = vmatprep.subr.bf16.mxu0 0
        %2322 = vmatpush1.bf16.msra.mxu0 0
        %2323 = vmatprep.subr.bf16.mxu0 0
        %2324 = vmatpush1.bf16.msra.mxu0 0
        %2325 = vmatprep.subr.bf16.mxu0 0
        %2326 = vmatpush1.bf16.msra.mxu0 0
        %2327 = vmatprep.subr.bf16.mxu0 0
        %2328 = vmatpush1.bf16.msra.mxu0 0
        %2329 = vmatprep.subr.bf16.mxu0 0
        %2330 = vmatpush1.bf16.msra.mxu0 0
        %2331 = vmatprep.subr.bf16.mxu0 0
        %2332 = vmatpush1.bf16.msra.mxu0 0
        %2333 = vmatprep.subr.bf16.mxu0 0
        %2334 = vmatpush1.bf16.msra.mxu0 0
        %2335 = vmatprep.subr.bf16.mxu0 0
        %2336 = vmatpush1.bf16.msra.mxu0 0
        %2337 = vmatprep.subr.bf16.mxu0 0
        %2338 = vmatpush1.bf16.msra.mxu0 0
        %2339 = vmatprep.subr.bf16.mxu0 0
        %2340 = vmatpush1.bf16.msra.mxu0 0
        %2341 = vmatprep.subr.bf16.mxu0 0
        %2342 = vmatpush1.bf16.msra.mxu0 0
        %2343 = vmatprep.subr.bf16.mxu0 0
        %2344 = vmatpush1.bf16.msra.mxu0 0
        %2345 = vmatprep.subr.bf16.mxu0 0
        %2346 = vmatpush1.bf16.msra.mxu0 0
        %2347 = vmatprep.subr.bf16.mxu0 0
        %2348 = vmatpush1.bf16.msra.mxu0 0
        %2349 = vmatprep.mubr.bf16.mxu0 0
        %2350 = vmatmul.mubr.bf16.gmra.mrb[0].mxu0 %v2312
        %v2351 = vpop.f32.mrb[0].mxu0
        %v2352 = vadd.f32 0.0, %v2351
        %v2353 = vpop.f32.mrb[0].mxu0
        %v2354 = vpop.f32.mrb[0].mxu0
        %v2355 = vpop.f32.mrb[0].mxu0
        %2356 = vdwg.mxu0
        %v2358 = vsel %vm2021, %v2262, 0
        %v2361 = vsel %vm2267, %v2017, 0
        %2363 = vmatprep.subr.bf16.mxu0 0
        %2364 = vmatpush1.bf16.msra.mxu0 %v2361
        %2365 = vmatprep.subr.bf16.mxu0 0
        %2366 = vmatpush1.bf16.msra.mxu0 0
        %2367 = vmatprep.subr.bf16.mxu0 0
        %2368 = vmatpush1.bf16.msra.mxu0 0
        %2369 = vmatprep.subr.bf16.mxu0 0
        %2370 = vmatpush1.bf16.msra.mxu0 0
        %2371 = vmatprep.subr.bf16.mxu0 0
        %2372 = vmatpush1.bf16.msra.mxu0 0
        %2373 = vmatprep.subr.bf16.mxu0 0
        %2374 = vmatpush1.bf16.msra.mxu0 0
        %2375 = vmatprep.subr.bf16.mxu0 0
        %2376 = vmatpush1.bf16.msra.mxu0 0
        %2377 = vmatprep.subr.bf16.mxu0 0
        %2378 = vmatpush1.bf16.msra.mxu0 0
        %2379 = vmatprep.subr.bf16.mxu0 0
        %2380 = vmatpush1.bf16.msra.mxu0 0
        %2381 = vmatprep.subr.bf16.mxu0 0
        %2382 = vmatpush1.bf16.msra.mxu0 0
        %2383 = vmatprep.subr.bf16.mxu0 0
        %2384 = vmatpush1.bf16.msra.mxu0 0
        %2385 = vmatprep.subr.bf16.mxu0 0
        %2386 = vmatpush1.bf16.msra.mxu0 0
        %2387 = vmatprep.subr.bf16.mxu0 0
        %2388 = vmatpush1.bf16.msra.mxu0 0
        %2389 = vmatprep.subr.bf16.mxu0 0
        %2390 = vmatpush1.bf16.msra.mxu0 0
        %2391 = vmatprep.subr.bf16.mxu0 0
        %2392 = vmatpush1.bf16.msra.mxu0 0
        %2393 = vmatprep.subr.bf16.mxu0 0
        %2394 = vmatpush1.bf16.msra.mxu0 0
        %2395 = vmatprep.mubr.bf16.mxu0 0
        %2396 = vmatmul.mubr.bf16.gmra.mrb[0].mxu0 %v2358
        %v2397 = vpop.f32.mrb[0].mxu0
        %v2398 = vadd.f32 0.0, %v2397
        %v2399 = vpop.f32.mrb[0].mxu0
        %v2400 = vpop.f32.mrb[0].mxu0
        %v2401 = vpop.f32.mrb[0].mxu0
        %2402 = vdwg.mxu0
        %v2404 = vsel %vm2021, %v2263, 0
        %v2407 = vsel %vm2267, %v2020, 0
        %2409 = vmatprep.subr.bf16.mxu0 0
        %2410 = vmatpush1.bf16.msra.mxu0 %v2407
        %2411 = vmatprep.subr.bf16.mxu0 0
        %2412 = vmatpush1.bf16.msra.mxu0 0
        %2413 = vmatprep.subr.bf16.mxu0 0
        %2414 = vmatpush1.bf16.msra.mxu0 0
        %2415 = vmatprep.subr.bf16.mxu0 0
        %2416 = vmatpush1.bf16.msra.mxu0 0
        %2417 = vmatprep.subr.bf16.mxu0 0
        %2418 = vmatpush1.bf16.msra.mxu0 0
        %2419 = vmatprep.subr.bf16.mxu0 0
        %2420 = vmatpush1.bf16.msra.mxu0 0
        %2421 = vmatprep.subr.bf16.mxu0 0
        %2422 = vmatpush1.bf16.msra.mxu0 0
        %2423 = vmatprep.subr.bf16.mxu0 0
        %2424 = vmatpush1.bf16.msra.mxu0 0
        %2425 = vmatprep.subr.bf16.mxu0 0
        %2426 = vmatpush1.bf16.msra.mxu0 0
        %2427 = vmatprep.subr.bf16.mxu0 0
        %2428 = vmatpush1.bf16.msra.mxu0 0
        %2429 = vmatprep.subr.bf16.mxu0 0
        %2430 = vmatpush1.bf16.msra.mxu0 0
        %2431 = vmatprep.subr.bf16.mxu0 0
        %2432 = vmatpush1.bf16.msra.mxu0 0
        %2433 = vmatprep.subr.bf16.mxu0 0
        %2434 = vmatpush1.bf16.msra.mxu0 0
        %2435 = vmatprep.subr.bf16.mxu0 0
        %2436 = vmatpush1.bf16.msra.mxu0 0
        %2437 = vmatprep.subr.bf16.mxu0 0
        %2438 = vmatpush1.bf16.msra.mxu0 0
        %2439 = vmatprep.subr.bf16.mxu0 0
        %2440 = vmatpush1.bf16.msra.mxu0 0
        %2441 = vmatprep.mubr.bf16.mxu0 0
        %2442 = vmatmul.mubr.bf16.gmra.mrb[0].mxu0 %v2404
        %v2443 = vpop.f32.mrb[0].mxu0
        %v2444 = vadd.f32 0.0, %v2443
        %v2445 = vpop.f32.mrb[0].mxu0
        %v2446 = vpop.f32.mrb[0].mxu0
        %v2447 = vpop.f32.mrb[0].mxu0
        %2448 = vdwg.mxu0
        %v2449 = vcombine.low %v2306, %v2398
        %v2450 = vcombine.high %v2306, %v2398
        %v2452 = vunpack.c.l.s4 1983009808
        %v2453 = vunpack.c.0.s8 %v2452
        %v2454 = vlaneseq
        %v2455 = vshrl.u32 %v2454, 7
        %v2456 = vsub.s32 %v2453, %v2455
        %v2457 = vrot.slane %v2449, %v2456
        %v2459 = vunpack.c.l.s4 1983009808
        %v2460 = vunpack.c.0.s8 %v2459
        %v2461 = vlaneseq
        %v2462 = vshrl.u32 %v2461, 7
        %v2463 = vsub.s32 %v2460, %v2462
        %v2464 = vrot.slane %v2450, %v2463
        %v2465 = vcombine.low %v2352, %v2444
        %v2466 = vcombine.high %v2352, %v2444
        %v2468 = vunpack.c.l.s4 1983009808
        %v2469 = vunpack.c.0.s8 %v2468
        %v2470 = vlaneseq
        %v2471 = vshrl.u32 %v2470, 7
        %v2472 = vsub.s32 %v2469, %v2471
        %v2473 = vrot.slane %v2465, %v2472
        %v2475 = vunpack.c.l.s4 1983009808
        %v2476 = vunpack.c.0.s8 %v2475
        %v2477 = vlaneseq
        %v2478 = vshrl.u32 %v2477, 7
        %v2479 = vsub.s32 %v2476, %v2478
        %v2480 = vrot.slane %v2466, %v2479
        %v2481 = vcombine.low %v2457, %v2473
        %v2482 = vcombine.high %v2457, %v2473
        %v2484 = vunpack.c.l.s4 1934713408
        %v2485 = vunpack.c.0.s8 %v2484
        %v2486 = vlaneseq
        %v2487 = vshrl.u32 %v2486, 7
        %v2488 = vsub.s32 %v2485, %v2487
        %v2489 = vrot.slane %v2481, %v2488
        %v2491 = vunpack.c.l.s4 1934713408
        %v2492 = vunpack.c.0.s8 %v2491
        %v2493 = vlaneseq
        %v2494 = vshrl.u32 %v2493, 7
        %v2495 = vsub.s32 %v2492, %v2494
        %v2496 = vrot.slane %v2482, %v2495
        %v2497 = vcombine.low %v2464, %v2480
        %v2498 = vcombine.high %v2464, %v2480
        %v2500 = vunpack.c.l.s4 1934713408
        %v2501 = vunpack.c.0.s8 %v2500
        %v2502 = vlaneseq
        %v2503 = vshrl.u32 %v2502, 7
        %v2504 = vsub.s32 %v2501, %v2503
        %v2505 = vrot.slane %v2497, %v2504
        %v2507 = vunpack.c.l.s4 1934713408
        %v2508 = vunpack.c.0.s8 %v2507
        %v2509 = vlaneseq
        %v2510 = vshrl.u32 %v2509, 7
        %v2511 = vsub.s32 %v2508, %v2510
        %v2512 = vrot.slane %v2498, %v2511
        %v2513 = vcombine.high %v2489, 0.0
        %v2514 = vcombine.high %v2496, 0.0
        %v2515 = vcombine.high %v2505, 0.0
        %v2516 = vcombine.high %v2512, 0.0
        %v2517 = vcombine.low %v2489, %v2496
        %v2519 = vunpack.c.l.s4 1983009808
        %v2520 = vunpack.c.0.s8 %v2519
        %v2521 = vlaneseq
        %v2522 = vshrl.u32 %v2521, 7
        %v2523 = vsub.s32 %v2520, %v2522
        %v2524 = vrot.slane %v2517, %v2523
        %v2525 = vcombine.low %v2513, %v2514
        %v2527 = vunpack.c.l.s4 1983009808
        %v2528 = vunpack.c.0.s8 %v2527
        %v2529 = vlaneseq
        %v2530 = vshrl.u32 %v2529, 7
        %v2531 = vsub.s32 %v2528, %v2530
        %v2532 = vrot.slane %v2525, %v2531
        %v2533 = vcombine.low %v2505, %v2512
        %v2535 = vunpack.c.l.s4 1983009808
        %v2536 = vunpack.c.0.s8 %v2535
        %v2537 = vlaneseq
        %v2538 = vshrl.u32 %v2537, 7
        %v2539 = vsub.s32 %v2536, %v2538
        %v2540 = vrot.slane %v2533, %v2539
        %v2541 = vcombine.low %v2515, %v2516
        %v2543 = vunpack.c.l.s4 1983009808
        %v2544 = vunpack.c.0.s8 %v2543
        %v2545 = vlaneseq
        %v2546 = vshrl.u32 %v2545, 7
        %v2547 = vsub.s32 %v2544, %v2546
        %v2548 = vrot.slane %v2541, %v2547
        %v2549 = vcombine.low %v2524, %v2532
        %v2550 = vcombine.high %v2524, %v2532
        %v2552 = vunpack.c.l.s4 1934713408
        %v2553 = vunpack.c.0.s8 %v2552
        %v2554 = vlaneseq
        %v2555 = vshrl.u32 %v2554, 7
        %v2556 = vsub.s32 %v2553, %v2555
        %v2557 = vrot.slane %v2549, %v2556
        %v2559 = vunpack.c.l.s4 1934713408
        %v2560 = vunpack.c.0.s8 %v2559
        %v2561 = vlaneseq
        %v2562 = vshrl.u32 %v2561, 7
        %v2563 = vsub.s32 %v2560, %v2562
        %v2564 = vrot.slane %v2550, %v2563
        %v2565 = vcombine.low %v2540, %v2548
        %v2566 = vcombine.high %v2540, %v2548
        %v2568 = vunpack.c.l.s4 1934713408
        %v2569 = vunpack.c.0.s8 %v2568
        %v2570 = vlaneseq
        %v2571 = vshrl.u32 %v2570, 7
        %v2572 = vsub.s32 %v2569, %v2571
        %v2573 = vrot.slane %v2565, %v2572
        %v2575 = vunpack.c.l.s4 1934713408
        %v2576 = vunpack.c.0.s8 %v2575
        %v2577 = vlaneseq
        %v2578 = vshrl.u32 %v2577, 7
        %v2579 = vsub.s32 %v2576, %v2578
        %v2580 = vrot.slane %v2566, %v2579
        %v2581 = vcombine.low %v2557, %v2573
        %v2582 = vcombine.high %v2557, %v2573
        %v2583 = vcombine.low %v2564, %v2580
        %v2584 = vcombine.high %v2564, %v2580
        %2586 = vrot.lane.b32.xlu0 %v2582, 8
        %v2587 = vpop.permute.xlu0 %2586
        %2590 = vrot.lane.b32.xlu0 %v2583, 16
        %v2591 = vpop.permute.xlu0 %2590
        %2594 = vrot.lane.b32.xlu0 %v2584, 24
        %v2595 = vpop.permute.xlu0 %2594
        %v2597 = vsel %vm2021, %v2581, %v2587
        %vm2598 = vcmask 130048
        %v2599 = vsel %vm2598, %v2597, %v2591
        %vm2600 = vcmask 195584
        %v2601 = vsel %vm2600, %v2599, %v2595
        %v2602 = vpack.c.bf16 %v2601, %v2601
        %v2603 = vld [vmem:[%s29] sm:$0xf]
        %v2604 = vld [vmem:[%s29 + $0x4] sm:$0xf]
        %v2605 = vld [vmem:[%s29 + $0x8] sm:$0xf]
        %v2606 = vld [vmem:[%s29 + $0xc] sm:$0xf]
        %v2607 = vld [vmem:[#allocation20] sm:$0x1]
        %v2609 = vlaneseq
        %v2610 = vshrl.u32 %v2609, 7
        %v2611 = vsub.s32 0, %v2610
        %v2612 = vrot.slane %v2607, %v2611
        %v2618 = vunpack.c.l.b16 %v2603
        %v2619 = vunpack.c.l.b16 %v2604
        %v2620 = vunpack.c.l.b16 %v2605
        %v2621 = vunpack.c.l.b16 %v2606
        %v2622 = vpack.c.b16 %v2619, %v2618
        %v2623 = vpack.c.b16 %v2621, %v2620
        %v2627 = vsel %vm1414, %v2602, 0
        %2629 = vmatprep.subr.bf16.mxu0 0
        %2630 = vmatpush1.bf16.msra.mxu0 %v2622
        %2631 = vmatprep.subr.bf16.mxu0 0
        %2632 = vmatpush1.bf16.msra.mxu0 %v2623
        %2633 = vmatprep.subr.bf16.mxu0 0
        %2634 = vmatpush1.bf16.msra.mxu0 0
        %2635 = vmatprep.subr.bf16.mxu0 0
        %2636 = vmatpush1.bf16.msra.mxu0 0
        %2637 = vmatprep.subr.bf16.mxu0 0
        %2638 = vmatpush1.bf16.msra.mxu0 0
        %2639 = vmatprep.subr.bf16.mxu0 0
        %2640 = vmatpush1.bf16.msra.mxu0 0
        %2641 = vmatprep.subr.bf16.mxu0 0
        %2642 = vmatpush1.bf16.msra.mxu0 0
        %2643 = vmatprep.subr.bf16.mxu0 0
        %2644 = vmatpush1.bf16.msra.mxu0 0
        %2645 = vmatprep.subr.bf16.mxu0 0
        %2646 = vmatpush1.bf16.msra.mxu0 0
        %2647 = vmatprep.subr.bf16.mxu0 0
        %2648 = vmatpush1.bf16.msra.mxu0 0
        %2649 = vmatprep.subr.bf16.mxu0 0
        %2650 = vmatpush1.bf16.msra.mxu0 0
        %2651 = vmatprep.subr.bf16.mxu0 0
        %2652 = vmatpush1.bf16.msra.mxu0 0
        %2653 = vmatprep.subr.bf16.mxu0 0
        %2654 = vmatpush1.bf16.msra.mxu0 0
        %2655 = vmatprep.subr.bf16.mxu0 0
        %2656 = vmatpush1.bf16.msra.mxu0 0
        %2657 = vmatprep.subr.bf16.mxu0 0
        %2658 = vmatpush1.bf16.msra.mxu0 0
        %2659 = vmatprep.subr.bf16.mxu0 0
        %2660 = vmatpush1.bf16.msra.mxu0 0
        %2661 = vmatprep.mubr.bf16.mxu0 0
        %2662 = vmatmul.mubr.bf16.gmra.mrb[0].mxu0 %v2627
        %v2663 = vpop.f32.mrb[0].mxu0
        %v2664 = vadd.f32 %v2612, %v2663
        %v2665 = vpop.f32.mrb[0].mxu0
        %v2666 = vpop.f32.mrb[0].mxu0
        %v2667 = vpop.f32.mrb[0].mxu0
        %2668 = vdwg.mxu0
        %v2669 = vadd.f32 %v2664, %v1411
        %v2670 = vld [vmem:[#allocation13] sm:$0x1]
        %v2671 = vld [vmem:[#allocation14] sm:$0x1]
        %v2672 = vsel %vm1414, %v2669, 0.0
        %2673 = vadd.xlane.f32.xlu0 %v2672
        %v2674 = vpop.xlane.xlu0 %2673
        %v2675 = vmul.f32 %v2674, %v1418
        %v2676 = vsub.f32 %v2669, %v2675
        %v2677 = vmul.f32 %v2676, %v2676
        %v2678 = vsel %vm1414, %v2677, 0.0
        %2679 = vadd.xlane.f32.xlu0 %v2678
        %v2680 = vpop.xlane.xlu0 %2679
        %v2681 = vmul.f32 %v2680, %v1418
        %v2682 = vadd.f32 %v2681, 1e-06
        %v2683 = vrsqrt.pop %v2682
        %v2684 = vmul.f32 %v2676, %v2683
        %v2686 = vlaneseq
        %v2687 = vshrl.u32 %v2686, 7
        %v2688 = vsub.s32 0, %v2687
        %v2689 = vrot.slane %v2670, %v2688
        %v2691 = vmul.f32 %v2684, %v2689
        %v2693 = vlaneseq
        %v2694 = vshrl.u32 %v2693, 7
        %v2695 = vsub.s32 0, %v2694
        %v2696 = vrot.slane %v2671, %v2695
        %v2698 = vadd.f32 %v2691, %v2696
        %v2699 = vpack.c.bf16 %v2698, %v2698
        %v2700 = vld [vmem:[%s1409] sm:$0xf]
        %v2701 = vld [vmem:[%s1409 + $0x4] sm:$0xf]
        %v2702 = vld [vmem:[%s1219] sm:$0x1]
        %vm2703 = vcmp.gt.f32.partialorder %v2702, 0.5
        %v2704 = vld [vmem:[%s33] sm:$0xf]
        %v2705 = vld [vmem:[%s33 + $0x4] sm:$0xf]
        %v2706 = vld [vmem:[%s33 + $0x8] sm:$0xf]
        %v2707 = vld [vmem:[%s33 + $0xc] sm:$0xf]
        %v2708 = vld [vmem:[#allocation22] sm:$0x1]
        %v2710 = vlaneseq
        %v2711 = vshrl.u32 %v2710, 7
        %v2712 = vsub.s32 0, %v2711
        %v2713 = vrot.slane %v2708, %v2712
        %v2719 = vunpack.c.l.b16 %v2704
        %v2720 = vunpack.c.l.b16 %v2705
        %v2721 = vunpack.c.l.b16 %v2706
        %v2722 = vunpack.c.l.b16 %v2707
        %v2723 = vpack.c.b16 %v2720, %v2719
        %v2724 = vpack.c.b16 %v2722, %v2721
        %v2728 = vsel %vm1414, %v2699, 0
        %2730 = vmatprep.subr.bf16.mxu0 0
        %2731 = vmatpush1.bf16.msra.mxu0 %v2723
        %2732 = vmatprep.subr.bf16.mxu0 0
        %2733 = vmatpush1.bf16.msra.mxu0 %v2724
        %2734 = vmatprep.subr.bf16.mxu0 0
        %2735 = vmatpush1.bf16.msra.mxu0 0
        %2736 = vmatprep.subr.bf16.mxu0 0
        %2737 = vmatpush1.bf16.msra.mxu0 0
        %2738 = vmatprep.subr.bf16.mxu0 0
        %2739 = vmatpush1.bf16.msra.mxu0 0
        %2740 = vmatprep.subr.bf16.mxu0 0
        %2741 = vmatpush1.bf16.msra.mxu0 0
        %2742 = vmatprep.subr.bf16.mxu0 0
        %2743 = vmatpush1.bf16.msra.mxu0 0
        %2744 = vmatprep.subr.bf16.mxu0 0
        %2745 = vmatpush1.bf16.msra.mxu0 0
        %2746 = vmatprep.subr.bf16.mxu0 0
        %2747 = vmatpush1.bf16.msra.mxu0 0
        %2748 = vmatprep.subr.bf16.mxu0 0
        %2749 = vmatpush1.bf16.msra.mxu0 0
        %2750 = vmatprep.subr.bf16.mxu0 0
        %2751 = vmatpush1.bf16.msra.mxu0 0
        %2752 = vmatprep.subr.bf16.mxu0 0
        %2753 = vmatpush1.bf16.msra.mxu0 0
        %2754 = vmatprep.subr.bf16.mxu0 0
        %2755 = vmatpush1.bf16.msra.mxu0 0
        %2756 = vmatprep.subr.bf16.mxu0 0
        %2757 = vmatpush1.bf16.msra.mxu0 0
        %2758 = vmatprep.subr.bf16.mxu0 0
        %2759 = vmatpush1.bf16.msra.mxu0 0
        %2760 = vmatprep.subr.bf16.mxu0 0
        %2761 = vmatpush1.bf16.msra.mxu0 0
        %2762 = vmatprep.mubr.bf16.mxu0 0
        %2763 = vmatmul.mubr.bf16.gmra.mrb[0].mxu0 %v2728
        %v2764 = vpop.f32.mrb[0].mxu0
        %v2765 = vadd.f32 %v2713, %v2764
        %v2766 = vpop.f32.mrb[0].mxu0
        %v2767 = vpop.f32.mrb[0].mxu0
        %v2768 = vpop.f32.mrb[0].mxu0
        %2769 = vdwg.mxu0
        %v2770 = vpack.c.bf16 %v2765, %v2765
        %v2771 = vld [vmem:[%s37] sm:$0xf]
        %v2772 = vld [vmem:[%s37 + $0x4] sm:$0xf]
        %v2773 = vld [vmem:[%s37 + $0x8] sm:$0xf]
        %v2774 = vld [vmem:[%s37 + $0xc] sm:$0xf]
        %v2775 = vld [vmem:[%s39] sm:$0x1]
        %v2777 = vlaneseq
        %v2778 = vshrl.u32 %v2777, 7
        %v2779 = vsub.s32 0, %v2778
        %v2780 = vrot.slane %v2775, %v2779
        %v2784 = vunpack.c.l.b16 %v2700
        %v2785 = vunpack.c.l.b16 %v2701
        %v2786 = vpack.c.b16 %v2785, %v2784
        %v2791 = vunpack.c.l.b16 %v2771
        %v2792 = vunpack.c.l.b16 %v2772
        %v2793 = vunpack.c.l.b16 %v2773
        %v2794 = vunpack.c.l.b16 %v2774
        %v2795 = vpack.c.b16 %v2792, %v2791
        %v2796 = vpack.c.b16 %v2794, %v2793
        %v2800 = vsel %vm1414, %v2786, 0
        %2802 = vmatprep.subr.bf16.mxu0 0
        %2803 = vmatpush1.bf16.msra.mxu0 %v2795
        %2804 = vmatprep.subr.bf16.mxu0 0
        %2805 = vmatpush1.bf16.msra.mxu0 %v2796
        %2806 = vmatprep.subr.bf16.mxu0 0
        %2807 = vmatpush1.bf16.msra.mxu0 0
        %2808 = vmatprep.subr.bf16.mxu0 0
        %2809 = vmatpush1.bf16.msra.mxu0 0
        %2810 = vmatprep.subr.bf16.mxu0 0
        %2811 = vmatpush1.bf16.msra.mxu0 0
        %2812 = vmatprep.subr.bf16.mxu0 0
        %2813 = vmatpush1.bf16.msra.mxu0 0
        %2814 = vmatprep.subr.bf16.mxu0 0
        %2815 = vmatpush1.bf16.msra.mxu0 0
        %2816 = vmatprep.subr.bf16.mxu0 0
        %2817 = vmatpush1.bf16.msra.mxu0 0
        %2818 = vmatprep.subr.bf16.mxu0 0
        %2819 = vmatpush1.bf16.msra.mxu0 0
        %2820 = vmatprep.subr.bf16.mxu0 0
        %2821 = vmatpush1.bf16.msra.mxu0 0
        %2822 = vmatprep.subr.bf16.mxu0 0
        %2823 = vmatpush1.bf16.msra.mxu0 0
        %2824 = vmatprep.subr.bf16.mxu0 0
        %2825 = vmatpush1.bf16.msra.mxu0 0
        %2826 = vmatprep.subr.bf16.mxu0 0
        %2827 = vmatpush1.bf16.msra.mxu0 0
        %2828 = vmatprep.subr.bf16.mxu0 0
        %2829 = vmatpush1.bf16.msra.mxu0 0
        %2830 = vmatprep.subr.bf16.mxu0 0
        %2831 = vmatpush1.bf16.msra.mxu0 0
        %2832 = vmatprep.subr.bf16.mxu0 0
        %2833 = vmatpush1.bf16.msra.mxu0 0
        %2834 = vmatprep.mubr.bf16.mxu0 0
        %2835 = vmatmul.mubr.bf16.gmra.mrb[0].mxu0 %v2800
        %v2836 = vpop.f32.mrb[0].mxu0
        %v2837 = vadd.f32 %v2780, %v2836
        %v2838 = vpop.f32.mrb[0].mxu0
        %v2839 = vpop.f32.mrb[0].mxu0
        %v2840 = vadd.f32 %v2780, %v2839
        %v2841 = vpop.f32.mrb[0].mxu0
        %2842 = vdwg.mxu0
        %v2843 = vpack.c.bf16 %v2840, %v2837
        %2845 = vrot.lane.b32.xlu0 %v2770, 120
        %v2846 = vpop.permute.xlu0 %2845
        %2847 = vrot.lane.b32.xlu0 %v2770, 112
        %v2848 = vpop.permute.xlu0 %2847
        %2849 = vrot.lane.b32.xlu0 %v2770, 104
        %v2850 = vpop.permute.xlu0 %2849
        %v2852 = vunpack.c.l.s4 1983009808
        %v2853 = vunpack.c.0.s8 %v2852
        %v2854 = vlaneseq
        %v2855 = vshrl.u32 %v2854, 7
        %v2856 = vsub.s32 %v2853, %v2855
        %v2857 = vrot.slane %v2770, %v2856
        %v2860 = vunpack.c.l.s4 1983009808
        %v2861 = vunpack.c.0.s8 %v2860
        %v2862 = vlaneseq
        %v2863 = vshrl.u32 %v2862, 7
        %v2864 = vsub.s32 %v2861, %v2863
        %v2865 = vrot.slane %v2848, %v2864
        %v2866 = vcombine.low %v2857, %v2865
        %v2867 = vcombine.high %v2857, %v2865
        %v2869 = vunpack.c.l.s4 1934713408
        %v2870 = vunpack.c.0.s8 %v2869
        %v2871 = vlaneseq
        %v2872 = vshrl.u32 %v2871, 7
        %v2873 = vsub.s32 %v2870, %v2872
        %v2874 = vrot.slane %v2866, %v2873
        %v2876 = vunpack.c.l.s4 1934713408
        %v2877 = vunpack.c.0.s8 %v2876
        %v2878 = vlaneseq
        %v2879 = vshrl.u32 %v2878, 7
        %v2880 = vsub.s32 %v2877, %v2879
        %v2881 = vrot.slane %v2867, %v2880
        %v2882 = vcombine.high %v2874, 0
        %v2883 = vcombine.high %v2881, 0
        %v2886 = vunpack.c.l.s4 1983009808
        %v2887 = vunpack.c.0.s8 %v2886
        %v2888 = vlaneseq
        %v2889 = vshrl.u32 %v2888, 7
        %v2890 = vsub.s32 %v2887, %v2889
        %v2891 = vrot.slane %v2846, %v2890
        %v2894 = vunpack.c.l.s4 1983009808
        %v2895 = vunpack.c.0.s8 %v2894
        %v2896 = vlaneseq
        %v2897 = vshrl.u32 %v2896, 7
        %v2898 = vsub.s32 %v2895, %v2897
        %v2899 = vrot.slane %v2850, %v2898
        %v2900 = vcombine.low %v2891, %v2899
        %v2901 = vcombine.high %v2891, %v2899
        %v2903 = vunpack.c.l.s4 1934713408
        %v2904 = vunpack.c.0.s8 %v2903
        %v2905 = vlaneseq
        %v2906 = vshrl.u32 %v2905, 7
        %v2907 = vsub.s32 %v2904, %v2906
        %v2908 = vrot.slane %v2900, %v2907
        %v2910 = vunpack.c.l.s4 1934713408
        %v2911 = vunpack.c.0.s8 %v2910
        %v2912 = vlaneseq
        %v2913 = vshrl.u32 %v2912, 7
        %v2914 = vsub.s32 %v2911, %v2913
        %v2915 = vrot.slane %v2901, %v2914
        %v2916 = vcombine.high %v2908, 0
        %v2917 = vcombine.high %v2915, 0
        %v2920 = vpack.i.b16 %v2908, %v2874
        %v2922 = vshrl.u32 %v2874, 16
        %v2923 = vshrl.u32 %v2908, 16
        %v2924 = vpack.i.b16 %v2923, %v2922
        %v2928 = vpack.i.b16 %v2916, %v2882
        %v2930 = vshrl.u32 %v2882, 16
        %v2931 = vshrl.u32 %v2916, 16
        %v2932 = vpack.i.b16 %v2931, %v2930
        %v2936 = vpack.i.b16 %v2915, %v2881
        %v2938 = vshrl.u32 %v2881, 16
        %v2939 = vshrl.u32 %v2915, 16
        %v2940 = vpack.i.b16 %v2939, %v2938
        %v2944 = vpack.i.b16 %v2917, %v2883
        %v2946 = vshrl.u32 %v2883, 16
        %v2947 = vshrl.u32 %v2917, 16
        %v2948 = vpack.i.b16 %v2947, %v2946
        %v2950 = vcombine.low %v2920, %v2936
        %v2952 = vunpack.c.l.s4 1983009808
        %v2953 = vunpack.c.0.s8 %v2952
        %v2954 = vlaneseq
        %v2955 = vshrl.u32 %v2954, 7
        %v2956 = vsub.s32 %v2953, %v2955
        %v2957 = vrot.slane %v2950, %v2956
        %v2958 = vcombine.low %v2928, %v2944
        %v2960 = vunpack.c.l.s4 1983009808
        %v2961 = vunpack.c.0.s8 %v2960
        %v2962 = vlaneseq
        %v2963 = vshrl.u32 %v2962, 7
        %v2964 = vsub.s32 %v2961, %v2963
        %v2965 = vrot.slane %v2958, %v2964
        %v2966 = vcombine.low %v2957, %v2965
        %v2968 = vunpack.c.l.s4 1934713408
        %v2969 = vunpack.c.0.s8 %v2968
        %v2970 = vlaneseq
        %v2971 = vshrl.u32 %v2970, 7
        %v2972 = vsub.s32 %v2969, %v2971
        %v2973 = vrot.slane %v2966, %v2972
        %v2974 = vcombine.high %v2973, 0
        %v2975 = vcombine.low %v2924, %v2940
        %v2977 = vunpack.c.l.s4 1983009808
        %v2978 = vunpack.c.0.s8 %v2977
        %v2979 = vlaneseq
        %v2980 = vshrl.u32 %v2979, 7
        %v2981 = vsub.s32 %v2978, %v2980
        %v2982 = vrot.slane %v2975, %v2981
        %v2983 = vcombine.low %v2932, %v2948
        %v2985 = vunpack.c.l.s4 1983009808
        %v2986 = vunpack.c.0.s8 %v2985
        %v2987 = vlaneseq
        %v2988 = vshrl.u32 %v2987, 7
        %v2989 = vsub.s32 %v2986, %v2988
        %v2990 = vrot.slane %v2983, %v2989
        %v2991 = vcombine.low %v2982, %v2990
        %v2993 = vunpack.c.l.s4 1934713408
        %v2994 = vunpack.c.0.s8 %v2993
        %v2995 = vlaneseq
        %v2996 = vshrl.u32 %v2995, 7
        %v2997 = vsub.s32 %v2994, %v2996
        %v2998 = vrot.slane %v2991, %v2997
        %v2999 = vcombine.high %v2998, 0
        %v3002 = vpack.i.b16 %v2998, %v2973
        %v3003 = vshrl.u32 %v2973, 16
        %v3004 = vshrl.u32 %v2998, 16
        %v3005 = vpack.i.b16 %v3004, %v3003
        %v3008 = vpack.i.b16 %v2999, %v2974
        %v3009 = vshrl.u32 %v2974, 16
        %v3010 = vshrl.u32 %v2999, 16
        %v3011 = vpack.i.b16 %v3010, %v3009
        %3013 = vrot.lane.b32.xlu0 %v2843, 120
        %v3014 = vpop.permute.xlu0 %3013
        %3015 = vrot.lane.b32.xlu0 %v2843, 112
        %v3016 = vpop.permute.xlu0 %3015
        %3017 = vrot.lane.b32.xlu0 %v2843, 104
        %v3018 = vpop.permute.xlu0 %3017
        %v3021 = vpack.i.b16 %v3014, %v2843
        %v3023 = vshrl.u32 %v2843, 16
        %v3024 = vshrl.u32 %v3014, 16
        %v3025 = vpack.i.b16 %v3024, %v3023
        %v3029 = vpack.i.b16 %v3018, %v3016
        %v3031 = vshrl.u32 %v3016, 16
        %v3032 = vshrl.u32 %v3018, 16
        %v3033 = vpack.i.b16 %v3032, %v3031
        %v3036 = vpack.i.b16 0, 0
        %v3038 = vshrl.u32 0, 16
        %v3039 = vpack.i.b16 %v3038, %v3038
        %v3041 = vcombine.high %v3021, %v3036
        %v3043 = vunpack.c.l.s4 1983009808
        %v3044 = vunpack.c.0.s8 %v3043
        %v3045 = vlaneseq
        %v3046 = vshrl.u32 %v3045, 7
        %v3047 = vsub.s32 %v3044, %v3046
        %v3048 = vrot.slane %v3021, %v3047
        %v3050 = vunpack.c.l.s4 1983009808
        %v3051 = vunpack.c.0.s8 %v3050
        %v3052 = vlaneseq
        %v3053 = vshrl.u32 %v3052, 7
        %v3054 = vsub.s32 %v3051, %v3053
        %v3055 = vrot.slane %v3041, %v3054
        %v3056 = vcombine.high %v3029, %v3036
        %v3058 = vunpack.c.l.s4 1983009808
        %v3059 = vunpack.c.0.s8 %v3058
        %v3060 = vlaneseq
        %v3061 = vshrl.u32 %v3060, 7
        %v3062 = vsub.s32 %v3059, %v3061
        %v3063 = vrot.slane %v3029, %v3062
        %v3065 = vunpack.c.l.s4 1983009808
        %v3066 = vunpack.c.0.s8 %v3065
        %v3067 = vlaneseq
        %v3068 = vshrl.u32 %v3067, 7
        %v3069 = vsub.s32 %v3066, %v3068
        %v3070 = vrot.slane %v3056, %v3069
        %v3071 = vcombine.low %v3048, %v3063
        %v3072 = vcombine.high %v3048, %v3063
        %v3074 = vunpack.c.l.s4 1934713408
        %v3075 = vunpack.c.0.s8 %v3074
        %v3076 = vlaneseq
        %v3077 = vshrl.u32 %v3076, 7
        %v3078 = vsub.s32 %v3075, %v3077
        %v3079 = vrot.slane %v3071, %v3078
        %v3081 = vunpack.c.l.s4 1934713408
        %v3082 = vunpack.c.0.s8 %v3081
        %v3083 = vlaneseq
        %v3084 = vshrl.u32 %v3083, 7
        %v3085 = vsub.s32 %v3082, %v3084
        %v3086 = vrot.slane %v3072, %v3085
        %v3087 = vcombine.low %v3055, %v3070
        %v3088 = vcombine.high %v3055, %v3070
        %v3090 = vunpack.c.l.s4 1934713408
        %v3091 = vunpack.c.0.s8 %v3090
        %v3092 = vlaneseq
        %v3093 = vshrl.u32 %v3092, 7
        %v3094 = vsub.s32 %v3091, %v3093
        %v3095 = vrot.slane %v3087, %v3094
        %v3097 = vunpack.c.l.s4 1934713408
        %v3098 = vunpack.c.0.s8 %v3097
        %v3099 = vlaneseq
        %v3100 = vshrl.u32 %v3099, 7
        %v3101 = vsub.s32 %v3098, %v3100
        %v3102 = vrot.slane %v3088, %v3101
        %v3103 = vcombine.high %v3079, 0
        %v3104 = vcombine.high %v3086, 0
        %v3105 = vcombine.high %v3095, 0
        %v3106 = vcombine.high %v3102, 0
        %v3107 = vcombine.high %v3025, %v3039
        %v3109 = vunpack.c.l.s4 1983009808
        %v3110 = vunpack.c.0.s8 %v3109
        %v3111 = vlaneseq
        %v3112 = vshrl.u32 %v3111, 7
        %v3113 = vsub.s32 %v3110, %v3112
        %v3114 = vrot.slane %v3025, %v3113
        %v3116 = vunpack.c.l.s4 1983009808
        %v3117 = vunpack.c.0.s8 %v3116
        %v3118 = vlaneseq
        %v3119 = vshrl.u32 %v3118, 7
        %v3120 = vsub.s32 %v3117, %v3119
        %v3121 = vrot.slane %v3107, %v3120
        %v3122 = vcombine.high %v3033, %v3039
        %v3124 = vunpack.c.l.s4 1983009808
        %v3125 = vunpack.c.0.s8 %v3124
        %v3126 = vlaneseq
        %v3127 = vshrl.u32 %v3126, 7
        %v3128 = vsub.s32 %v3125, %v3127
        %v3129 = vrot.slane %v3033, %v3128
        %v3131 = vunpack.c.l.s4 1983009808
        %v3132 = vunpack.c.0.s8 %v3131
        %v3133 = vlaneseq
        %v3134 = vshrl.u32 %v3133, 7
        %v3135 = vsub.s32 %v3132, %v3134
        %v3136 = vrot.slane %v3122, %v3135
        %v3137 = vcombine.low %v3114, %v3129
        %v3138 = vcombine.high %v3114, %v3129
        %v3140 = vunpack.c.l.s4 1934713408
        %v3141 = vunpack.c.0.s8 %v3140
        %v3142 = vlaneseq
        %v3143 = vshrl.u32 %v3142, 7
        %v3144 = vsub.s32 %v3141, %v3143
        %v3145 = vrot.slane %v3137, %v3144
        %v3147 = vunpack.c.l.s4 1934713408
        %v3148 = vunpack.c.0.s8 %v3147
        %v3149 = vlaneseq
        %v3150 = vshrl.u32 %v3149, 7
        %v3151 = vsub.s32 %v3148, %v3150
        %v3152 = vrot.slane %v3138, %v3151
        %v3153 = vcombine.low %v3121, %v3136
        %v3154 = vcombine.high %v3121, %v3136
        %v3156 = vunpack.c.l.s4 1934713408
        %v3157 = vunpack.c.0.s8 %v3156
        %v3158 = vlaneseq
        %v3159 = vshrl.u32 %v3158, 7
        %v3160 = vsub.s32 %v3157, %v3159
        %v3161 = vrot.slane %v3153, %v3160
        %v3163 = vunpack.c.l.s4 1934713408
        %v3164 = vunpack.c.0.s8 %v3163
        %v3165 = vlaneseq
        %v3166 = vshrl.u32 %v3165, 7
        %v3167 = vsub.s32 %v3164, %v3166
        %v3168 = vrot.slane %v3154, %v3167
        %v3169 = vcombine.high %v3145, 0
        %v3170 = vcombine.high %v3152, 0
        %v3171 = vcombine.high %v3161, 0
        %v3172 = vcombine.high %v3168, 0
        %v3173 = vcombine.low %v3079, %v3086
        %v3175 = vunpack.c.l.s4 1983009808
        %v3176 = vunpack.c.0.s8 %v3175
        %v3177 = vlaneseq
        %v3178 = vshrl.u32 %v3177, 7
        %v3179 = vsub.s32 %v3176, %v3178
        %v3180 = vrot.slane %v3173, %v3179
        %v3181 = vcombine.low %v3103, %v3104
        %v3183 = vunpack.c.l.s4 1983009808
        %v3184 = vunpack.c.0.s8 %v3183
        %v3185 = vlaneseq
        %v3186 = vshrl.u32 %v3185, 7
        %v3187 = vsub.s32 %v3184, %v3186
        %v3188 = vrot.slane %v3181, %v3187
        %v3189 = vcombine.low %v3095, %v3102
        %v3191 = vunpack.c.l.s4 1983009808
        %v3192 = vunpack.c.0.s8 %v3191
        %v3193 = vlaneseq
        %v3194 = vshrl.u32 %v3193, 7
        %v3195 = vsub.s32 %v3192, %v3194
        %v3196 = vrot.slane %v3189, %v3195
        %v3197 = vcombine.low %v3105, %v3106
        %v3199 = vunpack.c.l.s4 1983009808
        %v3200 = vunpack.c.0.s8 %v3199
        %v3201 = vlaneseq
        %v3202 = vshrl.u32 %v3201, 7
        %v3203 = vsub.s32 %v3200, %v3202
        %v3204 = vrot.slane %v3197, %v3203
        %v3205 = vcombine.low %v3180, %v3188
        %v3207 = vunpack.c.l.s4 1934713408
        %v3208 = vunpack.c.0.s8 %v3207
        %v3209 = vlaneseq
        %v3210 = vshrl.u32 %v3209, 7
        %v3211 = vsub.s32 %v3208, %v3210
        %v3212 = vrot.slane %v3205, %v3211
        %v3213 = vcombine.low %v3196, %v3204
        %v3215 = vunpack.c.l.s4 1934713408
        %v3216 = vunpack.c.0.s8 %v3215
        %v3217 = vlaneseq
        %v3218 = vshrl.u32 %v3217, 7
        %v3219 = vsub.s32 %v3216, %v3218
        %v3220 = vrot.slane %v3213, %v3219
        %v3221 = vcombine.low %v3212, %v3220
        %v3222 = vcombine.high %v3212, %v3220
        %v3223 = vcombine.low %v3145, %v3152
        %v3225 = vunpack.c.l.s4 1983009808
        %v3226 = vunpack.c.0.s8 %v3225
        %v3227 = vlaneseq
        %v3228 = vshrl.u32 %v3227, 7
        %v3229 = vsub.s32 %v3226, %v3228
        %v3230 = vrot.slane %v3223, %v3229
        %v3231 = vcombine.low %v3169, %v3170
        %v3233 = vunpack.c.l.s4 1983009808
        %v3234 = vunpack.c.0.s8 %v3233
        %v3235 = vlaneseq
        %v3236 = vshrl.u32 %v3235, 7
        %v3237 = vsub.s32 %v3234, %v3236
        %v3238 = vrot.slane %v3231, %v3237
        %v3239 = vcombine.low %v3161, %v3168
        %v3241 = vunpack.c.l.s4 1983009808
        %v3242 = vunpack.c.0.s8 %v3241
        %v3243 = vlaneseq
        %v3244 = vshrl.u32 %v3243, 7
        %v3245 = vsub.s32 %v3242, %v3244
        %v3246 = vrot.slane %v3239, %v3245
        %v3247 = vcombine.low %v3171, %v3172
        %v3249 = vunpack.c.l.s4 1983009808
        %v3250 = vunpack.c.0.s8 %v3249
        %v3251 = vlaneseq
        %v3252 = vshrl.u32 %v3251, 7
        %v3253 = vsub.s32 %v3250, %v3252
        %v3254 = vrot.slane %v3247, %v3253
        %v3255 = vcombine.low %v3230, %v3238
        %v3257 = vunpack.c.l.s4 1934713408
        %v3258 = vunpack.c.0.s8 %v3257
        %v3259 = vlaneseq
        %v3260 = vshrl.u32 %v3259, 7
        %v3261 = vsub.s32 %v3258, %v3260
        %v3262 = vrot.slane %v3255, %v3261
        %v3263 = vcombine.low %v3246, %v3254
        %v3265 = vunpack.c.l.s4 1934713408
        %v3266 = vunpack.c.0.s8 %v3265
        %v3267 = vlaneseq
        %v3268 = vshrl.u32 %v3267, 7
        %v3269 = vsub.s32 %v3266, %v3268
        %v3270 = vrot.slane %v3263, %v3269
        %v3271 = vcombine.low %v3262, %v3270
        %v3272 = vcombine.high %v3262, %v3270
        %v3275 = vpack.i.b16 %v3271, %v3221
        %v3276 = vshrl.u32 %v3221, 16
        %v3277 = vshrl.u32 %v3271, 16
        %v3278 = vpack.i.b16 %v3277, %v3276
        %v3281 = vpack.i.b16 %v3272, %v3222
        %v3282 = vshrl.u32 %v3222, 16
        %v3283 = vshrl.u32 %v3272, 16
        %v3284 = vpack.i.b16 %v3283, %v3282
        %3285 = vrot.lane.b32.xlu0 %v2843, 96
        %v3286 = vpop.permute.xlu0 %3285
        %3287 = vrot.lane.b32.xlu0 %v3014, 96
        %v3288 = vpop.permute.xlu0 %3287
        %3289 = vrot.lane.b32.xlu0 %v3016, 96
        %v3290 = vpop.permute.xlu0 %3289
        %3291 = vrot.lane.b32.xlu0 %v3018, 96
        %v3292 = vpop.permute.xlu0 %3291
        %v3295 = vpack.i.b16 %v3288, %v3286
        %v3297 = vshrl.u32 %v3286, 16
        %v3298 = vshrl.u32 %v3288, 16
        %v3299 = vpack.i.b16 %v3298, %v3297
        %v3303 = vpack.i.b16 %v3292, %v3290
        %v3305 = vshrl.u32 %v3290, 16
        %v3306 = vshrl.u32 %v3292, 16
        %v3307 = vpack.i.b16 %v3306, %v3305
        %v3309 = vcombine.high %v3295, %v3036
        %v3311 = vunpack.c.l.s4 1983009808
        %v3312 = vunpack.c.0.s8 %v3311
        %v3313 = vlaneseq
        %v3314 = vshrl.u32 %v3313, 7
        %v3315 = vsub.s32 %v3312, %v3314
        %v3316 = vrot.slane %v3295, %v3315
        %v3318 = vunpack.c.l.s4 1983009808
        %v3319 = vunpack.c.0.s8 %v3318
        %v3320 = vlaneseq
        %v3321 = vshrl.u32 %v3320, 7
        %v3322 = vsub.s32 %v3319, %v3321
        %v3323 = vrot.slane %v3309, %v3322
        %v3324 = vcombine.high %v3303, %v3036
        %v3326 = vunpack.c.l.s4 1983009808
        %v3327 = vunpack.c.0.s8 %v3326
        %v3328 = vlaneseq
        %v3329 = vshrl.u32 %v3328, 7
        %v3330 = vsub.s32 %v3327, %v3329
        %v3331 = vrot.slane %v3303, %v3330
        %v3333 = vunpack.c.l.s4 1983009808
        %v3334 = vunpack.c.0.s8 %v3333
        %v3335 = vlaneseq
        %v3336 = vshrl.u32 %v3335, 7
        %v3337 = vsub.s32 %v3334, %v3336
        %v3338 = vrot.slane %v3324, %v3337
        %v3339 = vcombine.low %v3316, %v3331
        %v3340 = vcombine.high %v3316, %v3331
        %v3342 = vunpack.c.l.s4 1934713408
        %v3343 = vunpack.c.0.s8 %v3342
        %v3344 = vlaneseq
        %v3345 = vshrl.u32 %v3344, 7
        %v3346 = vsub.s32 %v3343, %v3345
        %v3347 = vrot.slane %v3339, %v3346
        %v3349 = vunpack.c.l.s4 1934713408
        %v3350 = vunpack.c.0.s8 %v3349
        %v3351 = vlaneseq
        %v3352 = vshrl.u32 %v3351, 7
        %v3353 = vsub.s32 %v3350, %v3352
        %v3354 = vrot.slane %v3340, %v3353
        %v3355 = vcombine.low %v3323, %v3338
        %v3356 = vcombine.high %v3323, %v3338
        %v3358 = vunpack.c.l.s4 1934713408
        %v3359 = vunpack.c.0.s8 %v3358
        %v3360 = vlaneseq
        %v3361 = vshrl.u32 %v3360, 7
        %v3362 = vsub.s32 %v3359, %v3361
        %v3363 = vrot.slane %v3355, %v3362
        %v3365 = vunpack.c.l.s4 1934713408
        %v3366 = vunpack.c.0.s8 %v3365
        %v3367 = vlaneseq
        %v3368 = vshrl.u32 %v3367, 7
        %v3369 = vsub.s32 %v3366, %v3368
        %v3370 = vrot.slane %v3356, %v3369
        %v3371 = vcombine.high %v3347, 0
        %v3372 = vcombine.high %v3354, 0
        %v3373 = vcombine.high %v3363, 0
        %v3374 = vcombine.high %v3370, 0
        %v3375 = vcombine.high %v3299, %v3039
        %v3377 = vunpack.c.l.s4 1983009808
        %v3378 = vunpack.c.0.s8 %v3377
        %v3379 = vlaneseq
        %v3380 = vshrl.u32 %v3379, 7
        %v3381 = vsub.s32 %v3378, %v3380
        %v3382 = vrot.slane %v3299, %v3381
        %v3384 = vunpack.c.l.s4 1983009808
        %v3385 = vunpack.c.0.s8 %v3384
        %v3386 = vlaneseq
        %v3387 = vshrl.u32 %v3386, 7
        %v3388 = vsub.s32 %v3385, %v3387
        %v3389 = vrot.slane %v3375, %v3388
        %v3390 = vcombine.high %v3307, %v3039
        %v3392 = vunpack.c.l.s4 1983009808
        %v3393 = vunpack.c.0.s8 %v3392
        %v3394 = vlaneseq
        %v3395 = vshrl.u32 %v3394, 7
        %v3396 = vsub.s32 %v3393, %v3395
        %v3397 = vrot.slane %v3307, %v3396
        %v3399 = vunpack.c.l.s4 1983009808
        %v3400 = vunpack.c.0.s8 %v3399
        %v3401 = vlaneseq
        %v3402 = vshrl.u32 %v3401, 7
        %v3403 = vsub.s32 %v3400, %v3402
        %v3404 = vrot.slane %v3390, %v3403
        %v3405 = vcombine.low %v3382, %v3397
        %v3406 = vcombine.high %v3382, %v3397
        %v3408 = vunpack.c.l.s4 1934713408
        %v3409 = vunpack.c.0.s8 %v3408
        %v3410 = vlaneseq
        %v3411 = vshrl.u32 %v3410, 7
        %v3412 = vsub.s32 %v3409, %v3411
        %v3413 = vrot.slane %v3405, %v3412
        %v3415 = vunpack.c.l.s4 1934713408
        %v3416 = vunpack.c.0.s8 %v3415
        %v3417 = vlaneseq
        %v3418 = vshrl.u32 %v3417, 7
        %v3419 = vsub.s32 %v3416, %v3418
        %v3420 = vrot.slane %v3406, %v3419
        %v3421 = vcombine.low %v3389, %v3404
        %v3422 = vcombine.high %v3389, %v3404
        %v3424 = vunpack.c.l.s4 1934713408
        %v3425 = vunpack.c.0.s8 %v3424
        %v3426 = vlaneseq
        %v3427 = vshrl.u32 %v3426, 7
        %v3428 = vsub.s32 %v3425, %v3427
        %v3429 = vrot.slane %v3421, %v3428
        %v3431 = vunpack.c.l.s4 1934713408
        %v3432 = vunpack.c.0.s8 %v3431
        %v3433 = vlaneseq
        %v3434 = vshrl.u32 %v3433, 7
        %v3435 = vsub.s32 %v3432, %v3434
        %v3436 = vrot.slane %v3422, %v3435
        %v3437 = vcombine.high %v3413, 0
        %v3438 = vcombine.high %v3420, 0
        %v3439 = vcombine.high %v3429, 0
        %v3440 = vcombine.high %v3436, 0
        %v3441 = vcombine.low %v3347, %v3354
        %v3443 = vunpack.c.l.s4 1983009808
        %v3444 = vunpack.c.0.s8 %v3443
        %v3445 = vlaneseq
        %v3446 = vshrl.u32 %v3445, 7
        %v3447 = vsub.s32 %v3444, %v3446
        %v3448 = vrot.slane %v3441, %v3447
        %v3449 = vcombine.low %v3371, %v3372
        %v3451 = vunpack.c.l.s4 1983009808
        %v3452 = vunpack.c.0.s8 %v3451
        %v3453 = vlaneseq
        %v3454 = vshrl.u32 %v3453, 7
        %v3455 = vsub.s32 %v3452, %v3454
        %v3456 = vrot.slane %v3449, %v3455
        %v3457 = vcombine.low %v3363, %v3370
        %v3459 = vunpack.c.l.s4 1983009808
        %v3460 = vunpack.c.0.s8 %v3459
        %v3461 = vlaneseq
        %v3462 = vshrl.u32 %v3461, 7
        %v3463 = vsub.s32 %v3460, %v3462
        %v3464 = vrot.slane %v3457, %v3463
        %v3465 = vcombine.low %v3373, %v3374
        %v3467 = vunpack.c.l.s4 1983009808
        %v3468 = vunpack.c.0.s8 %v3467
        %v3469 = vlaneseq
        %v3470 = vshrl.u32 %v3469, 7
        %v3471 = vsub.s32 %v3468, %v3470
        %v3472 = vrot.slane %v3465, %v3471
        %v3473 = vcombine.low %v3448, %v3456
        %v3475 = vunpack.c.l.s4 1934713408
        %v3476 = vunpack.c.0.s8 %v3475
        %v3477 = vlaneseq
        %v3478 = vshrl.u32 %v3477, 7
        %v3479 = vsub.s32 %v3476, %v3478
        %v3480 = vrot.slane %v3473, %v3479
        %v3481 = vcombine.low %v3464, %v3472
        %v3483 = vunpack.c.l.s4 1934713408
        %v3484 = vunpack.c.0.s8 %v3483
        %v3485 = vlaneseq
        %v3486 = vshrl.u32 %v3485, 7
        %v3487 = vsub.s32 %v3484, %v3486
        %v3488 = vrot.slane %v3481, %v3487
        %v3489 = vcombine.low %v3480, %v3488
        %v3490 = vcombine.high %v3480, %v3488
        %v3491 = vcombine.low %v3413, %v3420
        %v3493 = vunpack.c.l.s4 1983009808
        %v3494 = vunpack.c.0.s8 %v3493
        %v3495 = vlaneseq
        %v3496 = vshrl.u32 %v3495, 7
        %v3497 = vsub.s32 %v3494, %v3496
        %v3498 = vrot.slane %v3491, %v3497
        %v3499 = vcombine.low %v3437, %v3438
        %v3501 = vunpack.c.l.s4 1983009808
        %v3502 = vunpack.c.0.s8 %v3501
        %v3503 = vlaneseq
        %v3504 = vshrl.u32 %v3503, 7
        %v3505 = vsub.s32 %v3502, %v3504
        %v3506 = vrot.slane %v3499, %v3505
        %v3507 = vcombine.low %v3429, %v3436
        %v3509 = vunpack.c.l.s4 1983009808
        %v3510 = vunpack.c.0.s8 %v3509
        %v3511 = vlaneseq
        %v3512 = vshrl.u32 %v3511, 7
        %v3513 = vsub.s32 %v3510, %v3512
        %v3514 = vrot.slane %v3507, %v3513
        %v3515 = vcombine.low %v3439, %v3440
        %v3517 = vunpack.c.l.s4 1983009808
        %v3518 = vunpack.c.0.s8 %v3517
        %v3519 = vlaneseq
        %v3520 = vshrl.u32 %v3519, 7
        %v3521 = vsub.s32 %v3518, %v3520
        %v3522 = vrot.slane %v3515, %v3521
        %v3523 = vcombine.low %v3498, %v3506
        %v3525 = vunpack.c.l.s4 1934713408
        %v3526 = vunpack.c.0.s8 %v3525
        %v3527 = vlaneseq
        %v3528 = vshrl.u32 %v3527, 7
        %v3529 = vsub.s32 %v3526, %v3528
        %v3530 = vrot.slane %v3523, %v3529
        %v3531 = vcombine.low %v3514, %v3522
        %v3533 = vunpack.c.l.s4 1934713408
        %v3534 = vunpack.c.0.s8 %v3533
        %v3535 = vlaneseq
        %v3536 = vshrl.u32 %v3535, 7
        %v3537 = vsub.s32 %v3534, %v3536
        %v3538 = vrot.slane %v3531, %v3537
        %v3539 = vcombine.low %v3530, %v3538
        %v3540 = vcombine.high %v3530, %v3538
        %v3543 = vpack.i.b16 %v3539, %v3489
        %v3545 = vshrl.u32 %v3489, 16
        %v3546 = vshrl.u32 %v3539, 16
        %v3547 = vpack.i.b16 %v3546, %v3545
        %v3551 = vpack.i.b16 %v3540, %v3490
        %v3553 = vshrl.u32 %v3490, 16
        %v3554 = vshrl.u32 %v3540, 16
        %v3555 = vpack.i.b16 %v3554, %v3553
        %v3558 = vsel %vm2021, %v3002, 0
        %v3561 = vsel %vm2021, %v3275, 0
        %3563 = vmatprep.subr.bf16.mxu0 0
        %3564 = vmatpush1.bf16.xpose.msra.mxu0 %v3561
        %3565 = vmatprep.subr.bf16.mxu0 0
        %3566 = vmatpush1.bf16.xpose.msra.mxu0 0
        %3567 = vmatprep.subr.bf16.mxu0 0
        %3568 = vmatpush1.bf16.xpose.msra.mxu0 0
        %3569 = vmatprep.subr.bf16.mxu0 0
        %3570 = vmatpush1.bf16.xpose.msra.mxu0 0
        %3571 = vmatprep.subr.bf16.mxu0 0
        %3572 = vmatpush1.bf16.xpose.msra.mxu0 0
        %3573 = vmatprep.subr.bf16.mxu0 0
        %3574 = vmatpush1.bf16.xpose.msra.mxu0 0
        %3575 = vmatprep.subr.bf16.mxu0 0
        %3576 = vmatpush1.bf16.xpose.msra.mxu0 0
        %3577 = vmatprep.subr.bf16.mxu0 0
        %3578 = vmatpush1.bf16.xpose.msra.mxu0 0
        %3579 = vmatprep.subr.bf16.mxu0 0
        %3580 = vmatpush1.bf16.xpose.msra.mxu0 0
        %3581 = vmatprep.subr.bf16.mxu0 0
        %3582 = vmatpush1.bf16.xpose.msra.mxu0 0
        %3583 = vmatprep.subr.bf16.mxu0 0
        %3584 = vmatpush1.bf16.xpose.msra.mxu0 0
        %3585 = vmatprep.subr.bf16.mxu0 0
        %3586 = vmatpush1.bf16.xpose.msra.mxu0 0
        %3587 = vmatprep.subr.bf16.mxu0 0
        %3588 = vmatpush1.bf16.xpose.msra.mxu0 0
        %3589 = vmatprep.subr.bf16.mxu0 0
        %3590 = vmatpush1.bf16.xpose.msra.mxu0 0
        %3591 = vmatprep.subr.bf16.mxu0 0
        %3592 = vmatpush1.bf16.xpose.msra.mxu0 0
        %3593 = vmatprep.subr.bf16.mxu0 0
        %3594 = vmatpush1.bf16.xpose.msra.mxu0 0
        %3595 = vmatprep.mubr.bf16.mxu0 0
        %3596 = vmatmul.mubr.bf16.gmra.mrb[0].mxu0 %v3558
        %v3597 = vpop.f32.mrb[0].mxu0
        %v3598 = vadd.f32 0.0, %v3597
        %v3599 = vpop.f32.mrb[0].mxu0
        %v3600 = vpop.f32.mrb[0].mxu0
        %v3601 = vpop.f32.mrb[0].mxu0
        %3602 = vdwg.mxu0
        %v3604 = vsel %vm2021, %v3005, 0
        %v3607 = vsel %vm2021, %v3278, 0
        %3609 = vmatprep.subr.bf16.mxu0 0
        %3610 = vmatpush1.bf16.xpose.msra.mxu0 %v3607
        %3611 = vmatprep.subr.bf16.mxu0 0
        %3612 = vmatpush1.bf16.xpose.msra.mxu0 0
        %3613 = vmatprep.subr.bf16.mxu0 0
        %3614 = vmatpush1.bf16.xpose.msra.mxu0 0
        %3615 = vmatprep.subr.bf16.mxu0 0
        %3616 = vmatpush1.bf16.xpose.msra.mxu0 0
        %3617 = vmatprep.subr.bf16.mxu0 0
        %3618 = vmatpush1.bf16.xpose.msra.mxu0 0
        %3619 = vmatprep.subr.bf16.mxu0 0
        %3620 = vmatpush1.bf16.xpose.msra.mxu0 0
        %3621 = vmatprep.subr.bf16.mxu0 0
        %3622 = vmatpush1.bf16.xpose.msra.mxu0 0
        %3623 = vmatprep.subr.bf16.mxu0 0
        %3624 = vmatpush1.bf16.xpose.msra.mxu0 0
        %3625 = vmatprep.subr.bf16.mxu0 0
        %3626 = vmatpush1.bf16.xpose.msra.mxu0 0
        %3627 = vmatprep.subr.bf16.mxu0 0
        %3628 = vmatpush1.bf16.xpose.msra.mxu0 0
        %3629 = vmatprep.subr.bf16.mxu0 0
        %3630 = vmatpush1.bf16.xpose.msra.mxu0 0
        %3631 = vmatprep.subr.bf16.mxu0 0
        %3632 = vmatpush1.bf16.xpose.msra.mxu0 0
        %3633 = vmatprep.subr.bf16.mxu0 0
        %3634 = vmatpush1.bf16.xpose.msra.mxu0 0
        %3635 = vmatprep.subr.bf16.mxu0 0
        %3636 = vmatpush1.bf16.xpose.msra.mxu0 0
        %3637 = vmatprep.subr.bf16.mxu0 0
        %3638 = vmatpush1.bf16.xpose.msra.mxu0 0
        %3639 = vmatprep.subr.bf16.mxu0 0
        %3640 = vmatpush1.bf16.xpose.msra.mxu0 0
        %3641 = vmatprep.mubr.bf16.mxu0 0
        %3642 = vmatmul.mubr.bf16.gmra.mrb[0].mxu0 %v3604
        %v3643 = vpop.f32.mrb[0].mxu0
        %v3644 = vadd.f32 0.0, %v3643
        %v3645 = vpop.f32.mrb[0].mxu0
        %v3646 = vpop.f32.mrb[0].mxu0
        %v3647 = vpop.f32.mrb[0].mxu0
        %3648 = vdwg.mxu0
        %v3650 = vsel %vm2021, %v3008, 0
        %v3653 = vsel %vm2021, %v3281, 0
        %3655 = vmatprep.subr.bf16.mxu0 0
        %3656 = vmatpush1.bf16.xpose.msra.mxu0 %v3653
        %3657 = vmatprep.subr.bf16.mxu0 0
        %3658 = vmatpush1.bf16.xpose.msra.mxu0 0
        %3659 = vmatprep.subr.bf16.mxu0 0
        %3660 = vmatpush1.bf16.xpose.msra.mxu0 0
        %3661 = vmatprep.subr.bf16.mxu0 0
        %3662 = vmatpush1.bf16.xpose.msra.mxu0 0
        %3663 = vmatprep.subr.bf16.mxu0 0
        %3664 = vmatpush1.bf16.xpose.msra.mxu0 0
        %3665 = vmatprep.subr.bf16.mxu0 0
        %3666 = vmatpush1.bf16.xpose.msra.mxu0 0
        %3667 = vmatprep.subr.bf16.mxu0 0
        %3668 = vmatpush1.bf16.xpose.msra.mxu0 0
        %3669 = vmatprep.subr.bf16.mxu0 0
        %3670 = vmatpush1.bf16.xpose.msra.mxu0 0
        %3671 = vmatprep.subr.bf16.mxu0 0
        %3672 = vmatpush1.bf16.xpose.msra.mxu0 0
        %3673 = vmatprep.subr.bf16.mxu0 0
        %3674 = vmatpush1.bf16.xpose.msra.mxu0 0
        %3675 = vmatprep.subr.bf16.mxu0 0
        %3676 = vmatpush1.bf16.xpose.msra.mxu0 0
        %3677 = vmatprep.subr.bf16.mxu0 0
        %3678 = vmatpush1.bf16.xpose.msra.mxu0 0
        %3679 = vmatprep.subr.bf16.mxu0 0
        %3680 = vmatpush1.bf16.xpose.msra.mxu0 0
        %3681 = vmatprep.subr.bf16.mxu0 0
        %3682 = vmatpush1.bf16.xpose.msra.mxu0 0
        %3683 = vmatprep.subr.bf16.mxu0 0
        %3684 = vmatpush1.bf16.xpose.msra.mxu0 0
        %3685 = vmatprep.subr.bf16.mxu0 0
        %3686 = vmatpush1.bf16.xpose.msra.mxu0 0
        %3687 = vmatprep.mubr.bf16.mxu0 0
        %3688 = vmatmul.mubr.bf16.gmra.mrb[0].mxu0 %v3650
        %v3689 = vpop.f32.mrb[0].mxu0
        %v3690 = vadd.f32 0.0, %v3689
        %v3691 = vpop.f32.mrb[0].mxu0
        %v3692 = vpop.f32.mrb[0].mxu0
        %v3693 = vpop.f32.mrb[0].mxu0
        %3694 = vdwg.mxu0
        %v3696 = vsel %vm2021, %v3011, 0
        %v3699 = vsel %vm2021, %v3284, 0
        %3701 = vmatprep.subr.bf16.mxu0 0
        %3702 = vmatpush1.bf16.xpose.msra.mxu0 %v3699
        %3703 = vmatprep.subr.bf16.mxu0 0
        %3704 = vmatpush1.bf16.xpose.msra.mxu0 0
        %3705 = vmatprep.subr.bf16.mxu0 0
        %3706 = vmatpush1.bf16.xpose.msra.mxu0 0
        %3707 = vmatprep.subr.bf16.mxu0 0
        %3708 = vmatpush1.bf16.xpose.msra.mxu0 0
        %3709 = vmatprep.subr.bf16.mxu0 0
        %3710 = vmatpush1.bf16.xpose.msra.mxu0 0
        %3711 = vmatprep.subr.bf16.mxu0 0
        %3712 = vmatpush1.bf16.xpose.msra.mxu0 0
        %3713 = vmatprep.subr.bf16.mxu0 0
        %3714 = vmatpush1.bf16.xpose.msra.mxu0 0
        %3715 = vmatprep.subr.bf16.mxu0 0
        %3716 = vmatpush1.bf16.xpose.msra.mxu0 0
        %3717 = vmatprep.subr.bf16.mxu0 0
        %3718 = vmatpush1.bf16.xpose.msra.mxu0 0
        %3719 = vmatprep.subr.bf16.mxu0 0
        %3720 = vmatpush1.bf16.xpose.msra.mxu0 0
        %3721 = vmatprep.subr.bf16.mxu0 0
        %3722 = vmatpush1.bf16.xpose.msra.mxu0 0
        %3723 = vmatprep.subr.bf16.mxu0 0
        %3724 = vmatpush1.bf16.xpose.msra.mxu0 0
        %3725 = vmatprep.subr.bf16.mxu0 0
        %3726 = vmatpush1.bf16.xpose.msra.mxu0 0
        %3727 = vmatprep.subr.bf16.mxu0 0
        %3728 = vmatpush1.bf16.xpose.msra.mxu0 0
        %3729 = vmatprep.subr.bf16.mxu0 0
        %3730 = vmatpush1.bf16.xpose.msra.mxu0 0
        %3731 = vmatprep.subr.bf16.mxu0 0
        %3732 = vmatpush1.bf16.xpose.msra.mxu0 0
        %3733 = vmatprep.mubr.bf16.mxu0 0
        %3734 = vmatmul.mubr.bf16.gmra.mrb[0].mxu0 %v3696
        %v3735 = vpop.f32.mrb[0].mxu0
        %v3736 = vadd.f32 0.0, %v3735
        %v3737 = vpop.f32.mrb[0].mxu0
        %v3738 = vpop.f32.mrb[0].mxu0
        %v3739 = vpop.f32.mrb[0].mxu0
        %3740 = vdwg.mxu0
        %v3741 = vsel %vm2703, 1, 0
        %v3742 = vlaneseq
        %v3743 = vshrl.u32 %v3742, 7
        %v3744 = vsub.s32 0, %v3743
        %v3745 = vrot.slane %v3741, %v3744
        %vm3746 = vcmp.eq.s32.totalorder %v3745, 1
        %v3747 = vsel %vm3746, -1e+18, %v3598
        %v3748 = vsel %vm3746, -1e+18, %v3644
        %v3749 = vsel %vm3746, -1e+18, %v3690
        %v3750 = vsel %vm3746, -1e+18, %v3736
        %v3751 = vsel %vm2598, %v3747, -inf
        %3752 = vmax.xlane.f32.xlu0 %v3751
        %v3753 = vpop.xlane.xlu0 %3752
        %v3754 = vsel %vm2598, %v3748, -inf
        %3755 = vmax.xlane.f32.xlu0 %v3754
        %v3756 = vpop.xlane.xlu0 %3755
        %v3757 = vsel %vm2598, %v3749, -inf
        %3758 = vmax.xlane.f32.xlu0 %v3757
        %v3759 = vpop.xlane.xlu0 %3758
        %v3760 = vsel %vm2598, %v3750, -inf
        %3761 = vmax.xlane.f32.xlu0 %v3760
        %v3762 = vpop.xlane.xlu0 %3761
        %v3763 = vsub.f32 %v3747, %v3753
        %v3764 = vsub.f32 %v3748, %v3756
        %v3765 = vsub.f32 %v3749, %v3759
        %v3766 = vsub.f32 %v3750, %v3762
        %v3767 = vmul.f32 %v3763, 1.442695
        %v3768 = vpow.pop %v3767
        %v3769 = vmul.f32 %v3764, 1.442695
        %v3770 = vpow.pop %v3769
        %v3771 = vmul.f32 %v3765, 1.442695
        %v3772 = vpow.pop %v3771
        %v3773 = vmul.f32 %v3766, 1.442695
        %v3774 = vpow.pop %v3773
        %v3775 = vsel %vm2598, %v3768, 0.0
        %3776 = vadd.xlane.f32.xlu0 %v3775
        %v3777 = vpop.xlane.xlu0 %3776
        %v3778 = vsel %vm2598, %v3770, 0.0
        %3779 = vadd.xlane.f32.xlu0 %v3778
        %v3780 = vpop.xlane.xlu0 %3779
        %v3781 = vsel %vm2598, %v3772, 0.0
        %3782 = vadd.xlane.f32.xlu0 %v3781
        %v3783 = vpop.xlane.xlu0 %3782
        %v3784 = vsel %vm2598, %v3774, 0.0
        %3785 = vadd.xlane.f32.xlu0 %v3784
        %v3786 = vpop.xlane.xlu0 %3785
        %v3787 = vrcp.pop %v3777
        %v3788 = vrcp.pop %v3780
        %v3789 = vrcp.pop %v3783
        %v3790 = vrcp.pop %v3786
        %v3791 = vmul.f32 %v3768, %v3787
        %v3792 = vmul.f32 %v3770, %v3788
        %v3793 = vmul.f32 %v3772, %v3789
        %v3794 = vmul.f32 %v3774, %v3790
        %v3795 = vpack.c.bf16 %v3791, %v3791
        %v3796 = vpack.c.bf16 %v3792, %v3792
        %v3797 = vpack.c.bf16 %v3793, %v3793
        %v3798 = vpack.c.bf16 %v3794, %v3794
        %v3800 = vsel %vm2598, %v3795, 0
        %3802 = vmatprep.subr.bf16.mxu0 0
        %3803 = vmatpush1.bf16.msra.mxu0 %v3543
        %3804 = vmatprep.subr.bf16.mxu0 0
        %3805 = vmatpush1.bf16.msra.mxu0 0
        %3806 = vmatprep.subr.bf16.mxu0 0
        %3807 = vmatpush1.bf16.msra.mxu0 0
        %3808 = vmatprep.subr.bf16.mxu0 0
        %3809 = vmatpush1.bf16.msra.mxu0 0
        %3810 = vmatprep.subr.bf16.mxu0 0
        %3811 = vmatpush1.bf16.msra.mxu0 0
        %3812 = vmatprep.subr.bf16.mxu0 0
        %3813 = vmatpush1.bf16.msra.mxu0 0
        %3814 = vmatprep.subr.bf16.mxu0 0
        %3815 = vmatpush1.bf16.msra.mxu0 0
        %3816 = vmatprep.subr.bf16.mxu0 0
        %3817 = vmatpush1.bf16.msra.mxu0 0
        %3818 = vmatprep.subr.bf16.mxu0 0
        %3819 = vmatpush1.bf16.msra.mxu0 0
        %3820 = vmatprep.subr.bf16.mxu0 0
        %3821 = vmatpush1.bf16.msra.mxu0 0
        %3822 = vmatprep.subr.bf16.mxu0 0
        %3823 = vmatpush1.bf16.msra.mxu0 0
        %3824 = vmatprep.subr.bf16.mxu0 0
        %3825 = vmatpush1.bf16.msra.mxu0 0
        %3826 = vmatprep.subr.bf16.mxu0 0
        %3827 = vmatpush1.bf16.msra.mxu0 0
        %3828 = vmatprep.subr.bf16.mxu0 0
        %3829 = vmatpush1.bf16.msra.mxu0 0
        %3830 = vmatprep.subr.bf16.mxu0 0
        %3831 = vmatpush1.bf16.msra.mxu0 0
        %3832 = vmatprep.subr.bf16.mxu0 0
        %3833 = vmatpush1.bf16.msra.mxu0 0
        %3834 = vmatprep.mubr.bf16.mxu0 0
        %3835 = vmatmul.mubr.bf16.gmra.mrb[0].mxu0 %v3800
        %v3836 = vpop.f32.mrb[0].mxu0
        %v3837 = vadd.f32 0.0, %v3836
        %v3838 = vpop.f32.mrb[0].mxu0
        %v3839 = vpop.f32.mrb[0].mxu0
        %v3840 = vpop.f32.mrb[0].mxu0
        %3841 = vdwg.mxu0
        %v3843 = vsel %vm2598, %v3796, 0
        %3845 = vmatprep.subr.bf16.mxu0 0
        %3846 = vmatpush1.bf16.msra.mxu0 %v3547
        %3847 = vmatprep.subr.bf16.mxu0 0
        %3848 = vmatpush1.bf16.msra.mxu0 0
        %3849 = vmatprep.subr.bf16.mxu0 0
        %3850 = vmatpush1.bf16.msra.mxu0 0
        %3851 = vmatprep.subr.bf16.mxu0 0
        %3852 = vmatpush1.bf16.msra.mxu0 0
        %3853 = vmatprep.subr.bf16.mxu0 0
        %3854 = vmatpush1.bf16.msra.mxu0 0
        %3855 = vmatprep.subr.bf16.mxu0 0
        %3856 = vmatpush1.bf16.msra.mxu0 0
        %3857 = vmatprep.subr.bf16.mxu0 0
        %3858 = vmatpush1.bf16.msra.mxu0 0
        %3859 = vmatprep.subr.bf16.mxu0 0
        %3860 = vmatpush1.bf16.msra.mxu0 0
        %3861 = vmatprep.subr.bf16.mxu0 0
        %3862 = vmatpush1.bf16.msra.mxu0 0
        %3863 = vmatprep.subr.bf16.mxu0 0
        %3864 = vmatpush1.bf16.msra.mxu0 0
        %3865 = vmatprep.subr.bf16.mxu0 0
        %3866 = vmatpush1.bf16.msra.mxu0 0
        %3867 = vmatprep.subr.bf16.mxu0 0
        %3868 = vmatpush1.bf16.msra.mxu0 0
        %3869 = vmatprep.subr.bf16.mxu0 0
        %3870 = vmatpush1.bf16.msra.mxu0 0
        %3871 = vmatprep.subr.bf16.mxu0 0
        %3872 = vmatpush1.bf16.msra.mxu0 0
        %3873 = vmatprep.subr.bf16.mxu0 0
        %3874 = vmatpush1.bf16.msra.mxu0 0
        %3875 = vmatprep.subr.bf16.mxu0 0
        %3876 = vmatpush1.bf16.msra.mxu0 0
        %3877 = vmatprep.mubr.bf16.mxu0 0
        %3878 = vmatmul.mubr.bf16.gmra.mrb[0].mxu0 %v3843
        %v3879 = vpop.f32.mrb[0].mxu0
        %v3880 = vadd.f32 0.0, %v3879
        %v3881 = vpop.f32.mrb[0].mxu0
        %v3882 = vpop.f32.mrb[0].mxu0
        %v3883 = vpop.f32.mrb[0].mxu0
        %3884 = vdwg.mxu0
        %v3886 = vsel %vm2598, %v3797, 0
        %3888 = vmatprep.subr.bf16.mxu0 0
        %3889 = vmatpush1.bf16.msra.mxu0 %v3551
        %3890 = vmatprep.subr.bf16.mxu0 0
        %3891 = vmatpush1.bf16.msra.mxu0 0
        %3892 = vmatprep.subr.bf16.mxu0 0
        %3893 = vmatpush1.bf16.msra.mxu0 0
        %3894 = vmatprep.subr.bf16.mxu0 0
        %3895 = vmatpush1.bf16.msra.mxu0 0
        %3896 = vmatprep.subr.bf16.mxu0 0
        %3897 = vmatpush1.bf16.msra.mxu0 0
        %3898 = vmatprep.subr.bf16.mxu0 0
        %3899 = vmatpush1.bf16.msra.mxu0 0
        %3900 = vmatprep.subr.bf16.mxu0 0
        %3901 = vmatpush1.bf16.msra.mxu0 0
        %3902 = vmatprep.subr.bf16.mxu0 0
        %3903 = vmatpush1.bf16.msra.mxu0 0
        %3904 = vmatprep.subr.bf16.mxu0 0
        %3905 = vmatpush1.bf16.msra.mxu0 0
        %3906 = vmatprep.subr.bf16.mxu0 0
        %3907 = vmatpush1.bf16.msra.mxu0 0
        %3908 = vmatprep.subr.bf16.mxu0 0
        %3909 = vmatpush1.bf16.msra.mxu0 0
        %3910 = vmatprep.subr.bf16.mxu0 0
        %3911 = vmatpush1.bf16.msra.mxu0 0
        %3912 = vmatprep.subr.bf16.mxu0 0
        %3913 = vmatpush1.bf16.msra.mxu0 0
        %3914 = vmatprep.subr.bf16.mxu0 0
        %3915 = vmatpush1.bf16.msra.mxu0 0
        %3916 = vmatprep.subr.bf16.mxu0 0
        %3917 = vmatpush1.bf16.msra.mxu0 0
        %3918 = vmatprep.subr.bf16.mxu0 0
        %3919 = vmatpush1.bf16.msra.mxu0 0
        %3920 = vmatprep.mubr.bf16.mxu0 0
        %3921 = vmatmul.mubr.bf16.gmra.mrb[0].mxu0 %v3886
        %v3922 = vpop.f32.mrb[0].mxu0
        %v3923 = vadd.f32 0.0, %v3922
        %v3924 = vpop.f32.mrb[0].mxu0
        %v3925 = vpop.f32.mrb[0].mxu0
        %v3926 = vpop.f32.mrb[0].mxu0
        %3927 = vdwg.mxu0
        %v3929 = vsel %vm2598, %v3798, 0
        %3931 = vmatprep.subr.bf16.mxu0 0
        %3932 = vmatpush1.bf16.msra.mxu0 %v3555
        %3933 = vmatprep.subr.bf16.mxu0 0
        %3934 = vmatpush1.bf16.msra.mxu0 0
        %3935 = vmatprep.subr.bf16.mxu0 0
        %3936 = vmatpush1.bf16.msra.mxu0 0
        %3937 = vmatprep.subr.bf16.mxu0 0
        %3938 = vmatpush1.bf16.msra.mxu0 0
        %3939 = vmatprep.subr.bf16.mxu0 0
        %3940 = vmatpush1.bf16.msra.mxu0 0
        %3941 = vmatprep.subr.bf16.mxu0 0
        %3942 = vmatpush1.bf16.msra.mxu0 0
        %3943 = vmatprep.subr.bf16.mxu0 0
        %3944 = vmatpush1.bf16.msra.mxu0 0
        %3945 = vmatprep.subr.bf16.mxu0 0
        %3946 = vmatpush1.bf16.msra.mxu0 0
        %3947 = vmatprep.subr.bf16.mxu0 0
        %3948 = vmatpush1.bf16.msra.mxu0 0
        %3949 = vmatprep.subr.bf16.mxu0 0
        %3950 = vmatpush1.bf16.msra.mxu0 0
        %3951 = vmatprep.subr.bf16.mxu0 0
        %3952 = vmatpush1.bf16.msra.mxu0 0
        %3953 = vmatprep.subr.bf16.mxu0 0
        %3954 = vmatpush1.bf16.msra.mxu0 0
        %3955 = vmatprep.subr.bf16.mxu0 0
        %3956 = vmatpush1.bf16.msra.mxu0 0
        %3957 = vmatprep.subr.bf16.mxu0 0
        %3958 = vmatpush1.bf16.msra.mxu0 0
        %3959 = vmatprep.subr.bf16.mxu0 0
        %3960 = vmatpush1.bf16.msra.mxu0 0
        %3961 = vmatprep.subr.bf16.mxu0 0
        %3962 = vmatpush1.bf16.msra.mxu0 0
        %3963 = vmatprep.mubr.bf16.mxu0 0
        %3964 = vmatmul.mubr.bf16.gmra.mrb[0].mxu0 %v3929
        %v3965 = vpop.f32.mrb[0].mxu0
        %v3966 = vadd.f32 0.0, %v3965
        %v3967 = vpop.f32.mrb[0].mxu0
        %v3968 = vpop.f32.mrb[0].mxu0
        %v3969 = vpop.f32.mrb[0].mxu0
        %3970 = vdwg.mxu0
        %v3971 = vcombine.low %v3837, %v3923
        %v3972 = vcombine.high %v3837, %v3923
        %v3974 = vunpack.c.l.s4 1983009808
        %v3975 = vunpack.c.0.s8 %v3974
        %v3976 = vlaneseq
        %v3977 = vshrl.u32 %v3976, 7
        %v3978 = vsub.s32 %v3975, %v3977
        %v3979 = vrot.slane %v3971, %v3978
        %v3981 = vunpack.c.l.s4 1983009808
        %v3982 = vunpack.c.0.s8 %v3981
        %v3983 = vlaneseq
        %v3984 = vshrl.u32 %v3983, 7
        %v3985 = vsub.s32 %v3982, %v3984
        %v3986 = vrot.slane %v3972, %v3985
        %v3987 = vcombine.low %v3880, %v3966
        %v3988 = vcombine.high %v3880, %v3966
        %v3990 = vunpack.c.l.s4 1983009808
        %v3991 = vunpack.c.0.s8 %v3990
        %v3992 = vlaneseq
        %v3993 = vshrl.u32 %v3992, 7
        %v3994 = vsub.s32 %v3991, %v3993
        %v3995 = vrot.slane %v3987, %v3994
        %v3997 = vunpack.c.l.s4 1983009808
        %v3998 = vunpack.c.0.s8 %v3997
        %v3999 = vlaneseq
        %v4000 = vshrl.u32 %v3999, 7
        %v4001 = vsub.s32 %v3998, %v4000
        %v4002 = vrot.slane %v3988, %v4001
        %v4003 = vcombine.low %v3979, %v3995
        %v4004 = vcombine.high %v3979, %v3995
        %v4006 = vunpack.c.l.s4 1934713408
        %v4007 = vunpack.c.0.s8 %v4006
        %v4008 = vlaneseq
        %v4009 = vshrl.u32 %v4008, 7
        %v4010 = vsub.s32 %v4007, %v4009
        %v4011 = vrot.slane %v4003, %v4010
        %v4013 = vunpack.c.l.s4 1934713408
        %v4014 = vunpack.c.0.s8 %v4013
        %v4015 = vlaneseq
        %v4016 = vshrl.u32 %v4015, 7
        %v4017 = vsub.s32 %v4014, %v4016
        %v4018 = vrot.slane %v4004, %v4017
        %v4019 = vcombine.low %v3986, %v4002
        %v4020 = vcombine.high %v3986, %v4002
        %v4022 = vunpack.c.l.s4 1934713408
        %v4023 = vunpack.c.0.s8 %v4022
        %v4024 = vlaneseq
        %v4025 = vshrl.u32 %v4024, 7
        %v4026 = vsub.s32 %v4023, %v4025
        %v4027 = vrot.slane %v4019, %v4026
        %v4029 = vunpack.c.l.s4 1934713408
        %v4030 = vunpack.c.0.s8 %v4029
        %v4031 = vlaneseq
        %v4032 = vshrl.u32 %v4031, 7
        %v4033 = vsub.s32 %v4030, %v4032
        %v4034 = vrot.slane %v4020, %v4033
        %v4035 = vcombine.high %v4011, 0.0
        %v4036 = vcombine.high %v4018, 0.0
        %v4037 = vcombine.high %v4027, 0.0
        %v4038 = vcombine.high %v4034, 0.0
        %v4039 = vcombine.low %v4011, %v4018
        %v4041 = vunpack.c.l.s4 1983009808
        %v4042 = vunpack.c.0.s8 %v4041
        %v4043 = vlaneseq
        %v4044 = vshrl.u32 %v4043, 7
        %v4045 = vsub.s32 %v4042, %v4044
        %v4046 = vrot.slane %v4039, %v4045
        %v4047 = vcombine.low %v4035, %v4036
        %v4049 = vunpack.c.l.s4 1983009808
        %v4050 = vunpack.c.0.s8 %v4049
        %v4051 = vlaneseq
        %v4052 = vshrl.u32 %v4051, 7
        %v4053 = vsub.s32 %v4050, %v4052
        %v4054 = vrot.slane %v4047, %v4053
        %v4055 = vcombine.low %v4027, %v4034
        %v4057 = vunpack.c.l.s4 1983009808
        %v4058 = vunpack.c.0.s8 %v4057
        %v4059 = vlaneseq
        %v4060 = vshrl.u32 %v4059, 7
        %v4061 = vsub.s32 %v4058, %v4060
        %v4062 = vrot.slane %v4055, %v4061
        %v4063 = vcombine.low %v4037, %v4038
        %v4065 = vunpack.c.l.s4 1983009808
        %v4066 = vunpack.c.0.s8 %v4065
        %v4067 = vlaneseq
        %v4068 = vshrl.u32 %v4067, 7
        %v4069 = vsub.s32 %v4066, %v4068
        %v4070 = vrot.slane %v4063, %v4069
        %v4071 = vcombine.low %v4046, %v4054
        %v4072 = vcombine.high %v4046, %v4054
        %v4074 = vunpack.c.l.s4 1934713408
        %v4075 = vunpack.c.0.s8 %v4074
        %v4076 = vlaneseq
        %v4077 = vshrl.u32 %v4076, 7
        %v4078 = vsub.s32 %v4075, %v4077
        %v4079 = vrot.slane %v4071, %v4078
        %v4081 = vunpack.c.l.s4 1934713408
        %v4082 = vunpack.c.0.s8 %v4081
        %v4083 = vlaneseq
        %v4084 = vshrl.u32 %v4083, 7
        %v4085 = vsub.s32 %v4082, %v4084
        %v4086 = vrot.slane %v4072, %v4085
        %v4087 = vcombine.low %v4062, %v4070
        %v4088 = vcombine.high %v4062, %v4070
        %v4090 = vunpack.c.l.s4 1934713408
        %v4091 = vunpack.c.0.s8 %v4090
        %v4092 = vlaneseq
        %v4093 = vshrl.u32 %v4092, 7
        %v4094 = vsub.s32 %v4091, %v4093
        %v4095 = vrot.slane %v4087, %v4094
        %v4097 = vunpack.c.l.s4 1934713408
        %v4098 = vunpack.c.0.s8 %v4097
        %v4099 = vlaneseq
        %v4100 = vshrl.u32 %v4099, 7
        %v4101 = vsub.s32 %v4098, %v4100
        %v4102 = vrot.slane %v4088, %v4101
        %v4103 = vcombine.low %v4079, %v4095
        %v4104 = vcombine.high %v4079, %v4095
        %v4105 = vcombine.low %v4086, %v4102
        %v4106 = vcombine.high %v4086, %v4102
        %4108 = vrot.lane.b32.xlu0 %v4104, 8
        %v4109 = vpop.permute.xlu0 %4108
        %4112 = vrot.lane.b32.xlu0 %v4105, 16
        %v4113 = vpop.permute.xlu0 %4112
        %4116 = vrot.lane.b32.xlu0 %v4106, 24
        %v4117 = vpop.permute.xlu0 %4116
        %v4119 = vsel %vm2021, %v4103, %v4109
        %v4120 = vsel %vm2598, %v4119, %v4113
        %v4121 = vsel %vm2600, %v4120, %v4117
        %v4122 = vpack.c.bf16 %v4121, %v4121
        %v4123 = vld [vmem:[#allocation23] sm:$0xf]
        %v4124 = vld [vmem:[#allocation23 + $0x4] sm:$0xf]
        %v4125 = vld [vmem:[#allocation23 + $0x8] sm:$0xf]
        %v4126 = vld [vmem:[#allocation23 + $0xc] sm:$0xf]
        %v4127 = vld [vmem:[#allocation25] sm:$0x1]
        %v4129 = vlaneseq
        %v4130 = vshrl.u32 %v4129, 7
        %v4131 = vsub.s32 0, %v4130
        %v4132 = vrot.slane %v4127, %v4131
        %v4138 = vunpack.c.l.b16 %v4123
        %v4139 = vunpack.c.l.b16 %v4124
        %v4140 = vunpack.c.l.b16 %v4125
        %v4141 = vunpack.c.l.b16 %v4126
        %v4142 = vpack.c.b16 %v4139, %v4138
        %v4143 = vpack.c.b16 %v4141, %v4140
        %v4147 = vsel %vm1414, %v4122, 0
        %4149 = vmatprep.subr.bf16.mxu0 0
        %4150 = vmatpush1.bf16.msra.mxu0 %v4142
        %4151 = vmatprep.subr.bf16.mxu0 0
        %4152 = vmatpush1.bf16.msra.mxu0 %v4143
        %4153 = vmatprep.subr.bf16.mxu0 0
        %4154 = vmatpush1.bf16.msra.mxu0 0
        %4155 = vmatprep.subr.bf16.mxu0 0
        %4156 = vmatpush1.bf16.msra.mxu0 0
        %4157 = vmatprep.subr.bf16.mxu0 0
        %4158 = vmatpush1.bf16.msra.mxu0 0
        %4159 = vmatprep.subr.bf16.mxu0 0
        %4160 = vmatpush1.bf16.msra.mxu0 0
        %4161 = vmatprep.subr.bf16.mxu0 0
        %4162 = vmatpush1.bf16.msra.mxu0 0
        %4163 = vmatprep.subr.bf16.mxu0 0
        %4164 = vmatpush1.bf16.msra.mxu0 0
        %4165 = vmatprep.subr.bf16.mxu0 0
        %4166 = vmatpush1.bf16.msra.mxu0 0
        %4167 = vmatprep.subr.bf16.mxu0 0
        %4168 = vmatpush1.bf16.msra.mxu0 0
        %4169 = vmatprep.subr.bf16.mxu0 0
        %4170 = vmatpush1.bf16.msra.mxu0 0
        %4171 = vmatprep.subr.bf16.mxu0 0
        %4172 = vmatpush1.bf16.msra.mxu0 0
        %4173 = vmatprep.subr.bf16.mxu0 0
        %4174 = vmatpush1.bf16.msra.mxu0 0
        %4175 = vmatprep.subr.bf16.mxu0 0
        %4176 = vmatpush1.bf16.msra.mxu0 0
        %4177 = vmatprep.subr.bf16.mxu0 0
        %4178 = vmatpush1.bf16.msra.mxu0 0
        %4179 = vmatprep.subr.bf16.mxu0 0
        %4180 = vmatpush1.bf16.msra.mxu0 0
        %4181 = vmatprep.mubr.bf16.mxu0 0
        %4182 = vmatmul.mubr.bf16.gmra.mrb[0].mxu0 %v4147
        %v4183 = vpop.f32.mrb[0].mxu0
        %v4184 = vadd.f32 %v4132, %v4183
        %v4185 = vpop.f32.mrb[0].mxu0
        %v4186 = vpop.f32.mrb[0].mxu0
        %v4187 = vpop.f32.mrb[0].mxu0
        %4188 = vdwg.mxu0
        %v4189 = vadd.f32 %v4184, %v2669
        %v4190 = vld [vmem:[#allocation16] sm:$0x1]
        %v4191 = vld [vmem:[#allocation17] sm:$0x1]
        %v4192 = vsel %vm1414, %v4189, 0.0
        %4193 = vadd.xlane.f32.xlu0 %v4192
        %v4194 = vpop.xlane.xlu0 %4193
        %v4195 = vmul.f32 %v4194, %v1418
        %v4196 = vsub.f32 %v4189, %v4195
        %v4197 = vmul.f32 %v4196, %v4196
        %v4198 = vsel %vm1414, %v4197, 0.0
        %4199 = vadd.xlane.f32.xlu0 %v4198
        %v4200 = vpop.xlane.xlu0 %4199
        %v4201 = vmul.f32 %v4200, %v1418
        %v4202 = vadd.f32 %v4201, 1e-06
        %v4203 = vrsqrt.pop %v4202
        %v4204 = vmul.f32 %v4196, %v4203
        %v4206 = vlaneseq
        %v4207 = vshrl.u32 %v4206, 7
        %v4208 = vsub.s32 0, %v4207
        %v4209 = vrot.slane %v4190, %v4208
        %v4211 = vmul.f32 %v4204, %v4209
        %v4213 = vlaneseq
        %v4214 = vshrl.u32 %v4213, 7
        %v4215 = vsub.s32 0, %v4214
        %v4216 = vrot.slane %v4191, %v4215
        %v4218 = vadd.f32 %v4211, %v4216
        %v4219 = vpack.c.bf16 %v4218, %v4218
        %v4220 = vld [vmem:[%s1203] sm:$0xf]
        %v4221 = vld [vmem:[%s1227] sm:$0x1]
        %vm4222 = vcmp.gt.f32.partialorder %v4221, 0.5
        %v4223 = vld [vmem:[%s45] sm:$0xf]
        %v4224 = vld [vmem:[%s45 + $0x4] sm:$0xf]
        %v4225 = vld [vmem:[%s45 + $0x8] sm:$0xf]
        %v4226 = vld [vmem:[%s45 + $0xc] sm:$0xf]
        %v4227 = vld [vmem:[#allocation26] sm:$0x1]
        %v4229 = vlaneseq
        %v4230 = vshrl.u32 %v4229, 7
        %v4231 = vsub.s32 0, %v4230
        %v4232 = vrot.slane %v4227, %v4231
        %v4238 = vunpack.c.l.b16 %v4223
        %v4239 = vunpack.c.l.b16 %v4224
        %v4240 = vunpack.c.l.b16 %v4225
        %v4241 = vunpack.c.l.b16 %v4226
        %v4242 = vpack.c.b16 %v4239, %v4238
        %v4243 = vpack.c.b16 %v4241, %v4240
        %v4247 = vsel %vm1414, %v4219, 0
        %4249 = vmatprep.subr.bf16.mxu0 0
        %4250 = vmatpush1.bf16.msra.mxu0 %v4242
        %4251 = vmatprep.subr.bf16.mxu0 0
        %4252 = vmatpush1.bf16.msra.mxu0 %v4243
        %4253 = vmatprep.subr.bf16.mxu0 0
        %4254 = vmatpush1.bf16.msra.mxu0 0
        %4255 = vmatprep.subr.bf16.mxu0 0
        %4256 = vmatpush1.bf16.msra.mxu0 0
        %4257 = vmatprep.subr.bf16.mxu0 0
        %4258 = vmatpush1.bf16.msra.mxu0 0
        %4259 = vmatprep.subr.bf16.mxu0 0
        %4260 = vmatpush1.bf16.msra.mxu0 0
        %4261 = vmatprep.subr.bf16.mxu0 0
        %4262 = vmatpush1.bf16.msra.mxu0 0
        %4263 = vmatprep.subr.bf16.mxu0 0
        %4264 = vmatpush1.bf16.msra.mxu0 0
        %4265 = vmatprep.subr.bf16.mxu0 0
        %4266 = vmatpush1.bf16.msra.mxu0 0
        %4267 = vmatprep.subr.bf16.mxu0 0
        %4268 = vmatpush1.bf16.msra.mxu0 0
        %4269 = vmatprep.subr.bf16.mxu0 0
        %4270 = vmatpush1.bf16.msra.mxu0 0
        %4271 = vmatprep.subr.bf16.mxu0 0
        %4272 = vmatpush1.bf16.msra.mxu0 0
        %4273 = vmatprep.subr.bf16.mxu0 0
        %4274 = vmatpush1.bf16.msra.mxu0 0
        %4275 = vmatprep.subr.bf16.mxu0 0
        %4276 = vmatpush1.bf16.msra.mxu0 0
        %4277 = vmatprep.subr.bf16.mxu0 0
        %4278 = vmatpush1.bf16.msra.mxu0 0
        %4279 = vmatprep.subr.bf16.mxu0 0
        %4280 = vmatpush1.bf16.msra.mxu0 0
        %4281 = vmatprep.mubr.bf16.mxu0 0
        %4282 = vmatmul.mubr.bf16.gmra.mrb[0].mxu0 %v4247
        %v4283 = vpop.f32.mrb[0].mxu0
        %v4284 = vadd.f32 %v4232, %v4283
        %v4285 = vpop.f32.mrb[0].mxu0
        %v4286 = vpop.f32.mrb[0].mxu0
        %v4287 = vpop.f32.mrb[0].mxu0
        %4288 = vdwg.mxu0
        %v4289 = vpack.c.bf16 %v4284, %v4284
        %v4290 = vld [vmem:[#allocation28] sm:$0xf]
        %v4291 = vld [vmem:[#allocation28 + $0x4] sm:$0xf]
        %v4292 = vld [vmem:[#allocation28 + $0x8] sm:$0xf]
        %v4293 = vld [vmem:[#allocation28 + $0xc] sm:$0xf]
        %v4294 = vld [vmem:[#allocation29] sm:$0x1]
        %v4296 = vlaneseq
        %v4297 = vshrl.u32 %v4296, 7
        %v4298 = vsub.s32 0, %v4297
        %v4299 = vrot.slane %v4294, %v4298
        %v4305 = vunpack.c.l.b16 %v4290
        %v4306 = vunpack.c.l.b16 %v4291
        %v4307 = vunpack.c.l.b16 %v4292
        %v4308 = vunpack.c.l.b16 %v4293
        %v4309 = vpack.c.b16 %v4306, %v4305
        %v4310 = vpack.c.b16 %v4308, %v4307
        %v4314 = vsel %vm1414, %v4220, 0
        %4316 = vmatprep.subr.bf16.mxu0 0
        %4317 = vmatpush1.bf16.msra.mxu0 %v4309
        %4318 = vmatprep.subr.bf16.mxu0 0
        %4319 = vmatpush1.bf16.msra.mxu0 %v4310
        %4320 = vmatprep.subr.bf16.mxu0 0
        %4321 = vmatpush1.bf16.msra.mxu0 0
        %4322 = vmatprep.subr.bf16.mxu0 0
        %4323 = vmatpush1.bf16.msra.mxu0 0
        %4324 = vmatprep.subr.bf16.mxu0 0
        %4325 = vmatpush1.bf16.msra.mxu0 0
        %4326 = vmatprep.subr.bf16.mxu0 0
        %4327 = vmatpush1.bf16.msra.mxu0 0
        %4328 = vmatprep.subr.bf16.mxu0 0
        %4329 = vmatpush1.bf16.msra.mxu0 0
        %4330 = vmatprep.subr.bf16.mxu0 0
        %4331 = vmatpush1.bf16.msra.mxu0 0
        %4332 = vmatprep.subr.bf16.mxu0 0
        %4333 = vmatpush1.bf16.msra.mxu0 0
        %4334 = vmatprep.subr.bf16.mxu0 0
        %4335 = vmatpush1.bf16.msra.mxu0 0
        %4336 = vmatprep.subr.bf16.mxu0 0
        %4337 = vmatpush1.bf16.msra.mxu0 0
        %4338 = vmatprep.subr.bf16.mxu0 0
        %4339 = vmatpush1.bf16.msra.mxu0 0
        %4340 = vmatprep.subr.bf16.mxu0 0
        %4341 = vmatpush1.bf16.msra.mxu0 0
        %4342 = vmatprep.subr.bf16.mxu0 0
        %4343 = vmatpush1.bf16.msra.mxu0 0
        %4344 = vmatprep.subr.bf16.mxu0 0
        %4345 = vmatpush1.bf16.msra.mxu0 0
        %4346 = vmatprep.subr.bf16.mxu0 0
        %4347 = vmatpush1.bf16.msra.mxu0 0
        %4348 = vmatprep.mubr.bf16.mxu0 0
        %4349 = vmatmul.mubr.bf16.gmra.mrb[0].mxu0 %v4314
        %v4350 = vpop.f32.mrb[0].mxu0
        %v4351 = vadd.f32 %v4299, %v4350
        %v4352 = vpop.f32.mrb[0].mxu0
        %v4353 = vpop.f32.mrb[0].mxu0
        %v4354 = vpop.f32.mrb[0].mxu0
        %4355 = vdwg.mxu0
        %v4356 = vpack.c.bf16 %v4351, %v4351
        %4358 = vrot.lane.b32.xlu0 %v4289, 120
        %v4359 = vpop.permute.xlu0 %4358
        %4360 = vrot.lane.b32.xlu0 %v4289, 112
        %v4361 = vpop.permute.xlu0 %4360
        %4362 = vrot.lane.b32.xlu0 %v4289, 104
        %v4363 = vpop.permute.xlu0 %4362
        %v4365 = vunpack.c.l.s4 1983009808
        %v4366 = vunpack.c.0.s8 %v4365
        %v4367 = vlaneseq
        %v4368 = vshrl.u32 %v4367, 7
        %v4369 = vsub.s32 %v4366, %v4368
        %v4370 = vrot.slane %v4289, %v4369
        %v4373 = vunpack.c.l.s4 1983009808
        %v4374 = vunpack.c.0.s8 %v4373
        %v4375 = vlaneseq
        %v4376 = vshrl.u32 %v4375, 7
        %v4377 = vsub.s32 %v4374, %v4376
        %v4378 = vrot.slane %v4361, %v4377
        %v4379 = vcombine.low %v4370, %v4378
        %v4380 = vcombine.high %v4370, %v4378
        %v4382 = vunpack.c.l.s4 1934713408
        %v4383 = vunpack.c.0.s8 %v4382
        %v4384 = vlaneseq
        %v4385 = vshrl.u32 %v4384, 7
        %v4386 = vsub.s32 %v4383, %v4385
        %v4387 = vrot.slane %v4379, %v4386
        %v4389 = vunpack.c.l.s4 1934713408
        %v4390 = vunpack.c.0.s8 %v4389
        %v4391 = vlaneseq
        %v4392 = vshrl.u32 %v4391, 7
        %v4393 = vsub.s32 %v4390, %v4392
        %v4394 = vrot.slane %v4380, %v4393
        %v4395 = vcombine.high %v4387, 0
        %v4396 = vcombine.high %v4394, 0
        %v4399 = vunpack.c.l.s4 1983009808
        %v4400 = vunpack.c.0.s8 %v4399
        %v4401 = vlaneseq
        %v4402 = vshrl.u32 %v4401, 7
        %v4403 = vsub.s32 %v4400, %v4402
        %v4404 = vrot.slane %v4359, %v4403
        %v4407 = vunpack.c.l.s4 1983009808
        %v4408 = vunpack.c.0.s8 %v4407
        %v4409 = vlaneseq
        %v4410 = vshrl.u32 %v4409, 7
        %v4411 = vsub.s32 %v4408, %v4410
        %v4412 = vrot.slane %v4363, %v4411
        %v4413 = vcombine.low %v4404, %v4412
        %v4414 = vcombine.high %v4404, %v4412
        %v4416 = vunpack.c.l.s4 1934713408
        %v4417 = vunpack.c.0.s8 %v4416
        %v4418 = vlaneseq
        %v4419 = vshrl.u32 %v4418, 7
        %v4420 = vsub.s32 %v4417, %v4419
        %v4421 = vrot.slane %v4413, %v4420
        %v4423 = vunpack.c.l.s4 1934713408
        %v4424 = vunpack.c.0.s8 %v4423
        %v4425 = vlaneseq
        %v4426 = vshrl.u32 %v4425, 7
        %v4427 = vsub.s32 %v4424, %v4426
        %v4428 = vrot.slane %v4414, %v4427
        %v4429 = vcombine.high %v4421, 0
        %v4430 = vcombine.high %v4428, 0
        %v4433 = vpack.i.b16 %v4421, %v4387
        %v4435 = vshrl.u32 %v4387, 16
        %v4436 = vshrl.u32 %v4421, 16
        %v4437 = vpack.i.b16 %v4436, %v4435
        %v4441 = vpack.i.b16 %v4429, %v4395
        %v4443 = vshrl.u32 %v4395, 16
        %v4444 = vshrl.u32 %v4429, 16
        %v4445 = vpack.i.b16 %v4444, %v4443
        %v4449 = vpack.i.b16 %v4428, %v4394
        %v4451 = vshrl.u32 %v4394, 16
        %v4452 = vshrl.u32 %v4428, 16
        %v4453 = vpack.i.b16 %v4452, %v4451
        %v4457 = vpack.i.b16 %v4430, %v4396
        %v4459 = vshrl.u32 %v4396, 16
        %v4460 = vshrl.u32 %v4430, 16
        %v4461 = vpack.i.b16 %v4460, %v4459
        %v4463 = vcombine.low %v4433, %v4449
        %v4465 = vunpack.c.l.s4 1983009808
        %v4466 = vunpack.c.0.s8 %v4465
        %v4467 = vlaneseq
        %v4468 = vshrl.u32 %v4467, 7
        %v4469 = vsub.s32 %v4466, %v4468
        %v4470 = vrot.slane %v4463, %v4469
        %v4471 = vcombine.low %v4441, %v4457
        %v4473 = vunpack.c.l.s4 1983009808
        %v4474 = vunpack.c.0.s8 %v4473
        %v4475 = vlaneseq
        %v4476 = vshrl.u32 %v4475, 7
        %v4477 = vsub.s32 %v4474, %v4476
        %v4478 = vrot.slane %v4471, %v4477
        %v4479 = vcombine.low %v4470, %v4478
        %v4481 = vunpack.c.l.s4 1934713408
        %v4482 = vunpack.c.0.s8 %v4481
        %v4483 = vlaneseq
        %v4484 = vshrl.u32 %v4483, 7
        %v4485 = vsub.s32 %v4482, %v4484
        %v4486 = vrot.slane %v4479, %v4485
        %v4487 = vcombine.high %v4486, 0
        %v4488 = vcombine.low %v4437, %v4453
        %v4490 = vunpack.c.l.s4 1983009808
        %v4491 = vunpack.c.0.s8 %v4490
        %v4492 = vlaneseq
        %v4493 = vshrl.u32 %v4492, 7
        %v4494 = vsub.s32 %v4491, %v4493
        %v4495 = vrot.slane %v4488, %v4494
        %v4496 = vcombine.low %v4445, %v4461
        %v4498 = vunpack.c.l.s4 1983009808
        %v4499 = vunpack.c.0.s8 %v4498
        %v4500 = vlaneseq
        %v4501 = vshrl.u32 %v4500, 7
        %v4502 = vsub.s32 %v4499, %v4501
        %v4503 = vrot.slane %v4496, %v4502
        %v4504 = vcombine.low %v4495, %v4503
        %v4506 = vunpack.c.l.s4 1934713408
        %v4507 = vunpack.c.0.s8 %v4506
        %v4508 = vlaneseq
        %v4509 = vshrl.u32 %v4508, 7
        %v4510 = vsub.s32 %v4507, %v4509
        %v4511 = vrot.slane %v4504, %v4510
        %v4512 = vcombine.high %v4511, 0
        %v4515 = vpack.i.b16 %v4511, %v4486
        %v4516 = vshrl.u32 %v4486, 16
        %v4517 = vshrl.u32 %v4511, 16
        %v4518 = vpack.i.b16 %v4517, %v4516
        %v4521 = vpack.i.b16 %v4512, %v4487
        %v4522 = vshrl.u32 %v4487, 16
        %v4523 = vshrl.u32 %v4512, 16
        %v4524 = vpack.i.b16 %v4523, %v4522
        %4526 = vrot.lane.b32.xlu0 %v4356, 120
        %v4527 = vpop.permute.xlu0 %4526
        %4528 = vrot.lane.b32.xlu0 %v4356, 112
        %v4529 = vpop.permute.xlu0 %4528
        %4530 = vrot.lane.b32.xlu0 %v4356, 104
        %v4531 = vpop.permute.xlu0 %4530
        %v4533 = vunpack.c.l.s4 1983009808
        %v4534 = vunpack.c.0.s8 %v4533
        %v4535 = vlaneseq
        %v4536 = vshrl.u32 %v4535, 7
        %v4537 = vsub.s32 %v4534, %v4536
        %v4538 = vrot.slane %v4356, %v4537
        %v4541 = vunpack.c.l.s4 1983009808
        %v4542 = vunpack.c.0.s8 %v4541
        %v4543 = vlaneseq
        %v4544 = vshrl.u32 %v4543, 7
        %v4545 = vsub.s32 %v4542, %v4544
        %v4546 = vrot.slane %v4529, %v4545
        %v4547 = vcombine.low %v4538, %v4546
        %v4548 = vcombine.high %v4538, %v4546
        %v4550 = vunpack.c.l.s4 1934713408
        %v4551 = vunpack.c.0.s8 %v4550
        %v4552 = vlaneseq
        %v4553 = vshrl.u32 %v4552, 7
        %v4554 = vsub.s32 %v4551, %v4553
        %v4555 = vrot.slane %v4547, %v4554
        %v4557 = vunpack.c.l.s4 1934713408
        %v4558 = vunpack.c.0.s8 %v4557
        %v4559 = vlaneseq
        %v4560 = vshrl.u32 %v4559, 7
        %v4561 = vsub.s32 %v4558, %v4560
        %v4562 = vrot.slane %v4548, %v4561
        %v4563 = vcombine.high %v4555, 0
        %v4564 = vcombine.high %v4562, 0
        %v4567 = vunpack.c.l.s4 1983009808
        %v4568 = vunpack.c.0.s8 %v4567
        %v4569 = vlaneseq
        %v4570 = vshrl.u32 %v4569, 7
        %v4571 = vsub.s32 %v4568, %v4570
        %v4572 = vrot.slane %v4527, %v4571
        %v4575 = vunpack.c.l.s4 1983009808
        %v4576 = vunpack.c.0.s8 %v4575
        %v4577 = vlaneseq
        %v4578 = vshrl.u32 %v4577, 7
        %v4579 = vsub.s32 %v4576, %v4578
        %v4580 = vrot.slane %v4531, %v4579
        %v4581 = vcombine.low %v4572, %v4580
        %v4582 = vcombine.high %v4572, %v4580
        %v4584 = vunpack.c.l.s4 1934713408
        %v4585 = vunpack.c.0.s8 %v4584
        %v4586 = vlaneseq
        %v4587 = vshrl.u32 %v4586, 7
        %v4588 = vsub.s32 %v4585, %v4587
        %v4589 = vrot.slane %v4581, %v4588
        %v4591 = vunpack.c.l.s4 1934713408
        %v4592 = vunpack.c.0.s8 %v4591
        %v4593 = vlaneseq
        %v4594 = vshrl.u32 %v4593, 7
        %v4595 = vsub.s32 %v4592, %v4594
        %v4596 = vrot.slane %v4582, %v4595
        %v4597 = vcombine.high %v4589, 0
        %v4598 = vcombine.high %v4596, 0
        %v4601 = vpack.i.b16 %v4589, %v4555
        %v4603 = vshrl.u32 %v4555, 16
        %v4604 = vshrl.u32 %v4589, 16
        %v4605 = vpack.i.b16 %v4604, %v4603
        %v4609 = vpack.i.b16 %v4597, %v4563
        %v4611 = vshrl.u32 %v4563, 16
        %v4612 = vshrl.u32 %v4597, 16
        %v4613 = vpack.i.b16 %v4612, %v4611
        %v4617 = vpack.i.b16 %v4596, %v4562
        %v4619 = vshrl.u32 %v4562, 16
        %v4620 = vshrl.u32 %v4596, 16
        %v4621 = vpack.i.b16 %v4620, %v4619
        %v4625 = vpack.i.b16 %v4598, %v4564
        %v4627 = vshrl.u32 %v4564, 16
        %v4628 = vshrl.u32 %v4598, 16
        %v4629 = vpack.i.b16 %v4628, %v4627
        %v4631 = vcombine.low %v4601, %v4617
        %v4633 = vunpack.c.l.s4 1983009808
        %v4634 = vunpack.c.0.s8 %v4633
        %v4635 = vlaneseq
        %v4636 = vshrl.u32 %v4635, 7
        %v4637 = vsub.s32 %v4634, %v4636
        %v4638 = vrot.slane %v4631, %v4637
        %v4639 = vcombine.low %v4609, %v4625
        %v4641 = vunpack.c.l.s4 1983009808
        %v4642 = vunpack.c.0.s8 %v4641
        %v4643 = vlaneseq
        %v4644 = vshrl.u32 %v4643, 7
        %v4645 = vsub.s32 %v4642, %v4644
        %v4646 = vrot.slane %v4639, %v4645
        %v4647 = vcombine.low %v4638, %v4646
        %v4649 = vunpack.c.l.s4 1934713408
        %v4650 = vunpack.c.0.s8 %v4649
        %v4651 = vlaneseq
        %v4652 = vshrl.u32 %v4651, 7
        %v4653 = vsub.s32 %v4650, %v4652
        %v4654 = vrot.slane %v4647, %v4653
        %v4655 = vcombine.high %v4654, 0
        %v4656 = vcombine.low %v4605, %v4621
        %v4658 = vunpack.c.l.s4 1983009808
        %v4659 = vunpack.c.0.s8 %v4658
        %v4660 = vlaneseq
        %v4661 = vshrl.u32 %v4660, 7
        %v4662 = vsub.s32 %v4659, %v4661
        %v4663 = vrot.slane %v4656, %v4662
        %v4664 = vcombine.low %v4613, %v4629
        %v4666 = vunpack.c.l.s4 1983009808
        %v4667 = vunpack.c.0.s8 %v4666
        %v4668 = vlaneseq
        %v4669 = vshrl.u32 %v4668, 7
        %v4670 = vsub.s32 %v4667, %v4669
        %v4671 = vrot.slane %v4664, %v4670
        %v4672 = vcombine.low %v4663, %v4671
        %v4674 = vunpack.c.l.s4 1934713408
        %v4675 = vunpack.c.0.s8 %v4674
        %v4676 = vlaneseq
        %v4677 = vshrl.u32 %v4676, 7
        %v4678 = vsub.s32 %v4675, %v4677
        %v4679 = vrot.slane %v4672, %v4678
        %v4680 = vcombine.high %v4679, 0
        %v4683 = vpack.i.b16 %v4679, %v4654
        %v4684 = vshrl.u32 %v4654, 16
        %v4685 = vshrl.u32 %v4679, 16
        %v4686 = vpack.i.b16 %v4685, %v4684
        %v4689 = vpack.i.b16 %v4680, %v4655
        %v4690 = vshrl.u32 %v4655, 16
        %v4691 = vshrl.u32 %v4680, 16
        %v4692 = vpack.i.b16 %v4691, %v4690
        %4693 = vrot.lane.b32.xlu0 %v4356, 96
        %v4694 = vpop.permute.xlu0 %4693
        %4695 = vrot.lane.b32.xlu0 %v4527, 96
        %v4696 = vpop.permute.xlu0 %4695
        %4697 = vrot.lane.b32.xlu0 %v4529, 96
        %v4698 = vpop.permute.xlu0 %4697
        %4699 = vrot.lane.b32.xlu0 %v4531, 96
        %v4700 = vpop.permute.xlu0 %4699
        %v4703 = vunpack.c.l.s4 1983009808
        %v4704 = vunpack.c.0.s8 %v4703
        %v4705 = vlaneseq
        %v4706 = vshrl.u32 %v4705, 7
        %v4707 = vsub.s32 %v4704, %v4706
        %v4708 = vrot.slane %v4694, %v4707
        %v4711 = vunpack.c.l.s4 1983009808
        %v4712 = vunpack.c.0.s8 %v4711
        %v4713 = vlaneseq
        %v4714 = vshrl.u32 %v4713, 7
        %v4715 = vsub.s32 %v4712, %v4714
        %v4716 = vrot.slane %v4698, %v4715
        %v4717 = vcombine.low %v4708, %v4716
        %v4718 = vcombine.high %v4708, %v4716
        %v4720 = vunpack.c.l.s4 1934713408
        %v4721 = vunpack.c.0.s8 %v4720
        %v4722 = vlaneseq
        %v4723 = vshrl.u32 %v4722, 7
        %v4724 = vsub.s32 %v4721, %v4723
        %v4725 = vrot.slane %v4717, %v4724
        %v4727 = vunpack.c.l.s4 1934713408
        %v4728 = vunpack.c.0.s8 %v4727
        %v4729 = vlaneseq
        %v4730 = vshrl.u32 %v4729, 7
        %v4731 = vsub.s32 %v4728, %v4730
        %v4732 = vrot.slane %v4718, %v4731
        %v4733 = vcombine.high %v4725, 0
        %v4734 = vcombine.high %v4732, 0
        %v4737 = vunpack.c.l.s4 1983009808
        %v4738 = vunpack.c.0.s8 %v4737
        %v4739 = vlaneseq
        %v4740 = vshrl.u32 %v4739, 7
        %v4741 = vsub.s32 %v4738, %v4740
        %v4742 = vrot.slane %v4696, %v4741
        %v4745 = vunpack.c.l.s4 1983009808
        %v4746 = vunpack.c.0.s8 %v4745
        %v4747 = vlaneseq
        %v4748 = vshrl.u32 %v4747, 7
        %v4749 = vsub.s32 %v4746, %v4748
        %v4750 = vrot.slane %v4700, %v4749
        %v4751 = vcombine.low %v4742, %v4750
        %v4752 = vcombine.high %v4742, %v4750
        %v4754 = vunpack.c.l.s4 1934713408
        %v4755 = vunpack.c.0.s8 %v4754
        %v4756 = vlaneseq
        %v4757 = vshrl.u32 %v4756, 7
        %v4758 = vsub.s32 %v4755, %v4757
        %v4759 = vrot.slane %v4751, %v4758
        %v4761 = vunpack.c.l.s4 1934713408
        %v4762 = vunpack.c.0.s8 %v4761
        %v4763 = vlaneseq
        %v4764 = vshrl.u32 %v4763, 7
        %v4765 = vsub.s32 %v4762, %v4764
        %v4766 = vrot.slane %v4752, %v4765
        %v4767 = vcombine.high %v4759, 0
        %v4768 = vcombine.high %v4766, 0
        %v4771 = vpack.i.b16 %v4759, %v4725
        %v4773 = vshrl.u32 %v4725, 16
        %v4774 = vshrl.u32 %v4759, 16
        %v4775 = vpack.i.b16 %v4774, %v4773
        %v4779 = vpack.i.b16 %v4767, %v4733
        %v4781 = vshrl.u32 %v4733, 16
        %v4782 = vshrl.u32 %v4767, 16
        %v4783 = vpack.i.b16 %v4782, %v4781
        %v4787 = vpack.i.b16 %v4766, %v4732
        %v4789 = vshrl.u32 %v4732, 16
        %v4790 = vshrl.u32 %v4766, 16
        %v4791 = vpack.i.b16 %v4790, %v4789
        %v4795 = vpack.i.b16 %v4768, %v4734
        %v4797 = vshrl.u32 %v4734, 16
        %v4798 = vshrl.u32 %v4768, 16
        %v4799 = vpack.i.b16 %v4798, %v4797
        %v4801 = vcombine.low %v4771, %v4787
        %v4803 = vunpack.c.l.s4 1983009808
        %v4804 = vunpack.c.0.s8 %v4803
        %v4805 = vlaneseq
        %v4806 = vshrl.u32 %v4805, 7
        %v4807 = vsub.s32 %v4804, %v4806
        %v4808 = vrot.slane %v4801, %v4807
        %v4809 = vcombine.low %v4779, %v4795
        %v4811 = vunpack.c.l.s4 1983009808
        %v4812 = vunpack.c.0.s8 %v4811
        %v4813 = vlaneseq
        %v4814 = vshrl.u32 %v4813, 7
        %v4815 = vsub.s32 %v4812, %v4814
        %v4816 = vrot.slane %v4809, %v4815
        %v4817 = vcombine.low %v4808, %v4816
        %v4819 = vunpack.c.l.s4 1934713408
        %v4820 = vunpack.c.0.s8 %v4819
        %v4821 = vlaneseq
        %v4822 = vshrl.u32 %v4821, 7
        %v4823 = vsub.s32 %v4820, %v4822
        %v4824 = vrot.slane %v4817, %v4823
        %v4825 = vcombine.high %v4824, 0
        %v4826 = vcombine.low %v4775, %v4791
        %v4828 = vunpack.c.l.s4 1983009808
        %v4829 = vunpack.c.0.s8 %v4828
        %v4830 = vlaneseq
        %v4831 = vshrl.u32 %v4830, 7
        %v4832 = vsub.s32 %v4829, %v4831
        %v4833 = vrot.slane %v4826, %v4832
        %v4834 = vcombine.low %v4783, %v4799
        %v4836 = vunpack.c.l.s4 1983009808
        %v4837 = vunpack.c.0.s8 %v4836
        %v4838 = vlaneseq
        %v4839 = vshrl.u32 %v4838, 7
        %v4840 = vsub.s32 %v4837, %v4839
        %v4841 = vrot.slane %v4834, %v4840
        %v4842 = vcombine.low %v4833, %v4841
        %v4844 = vunpack.c.l.s4 1934713408
        %v4845 = vunpack.c.0.s8 %v4844
        %v4846 = vlaneseq
        %v4847 = vshrl.u32 %v4846, 7
        %v4848 = vsub.s32 %v4845, %v4847
        %v4849 = vrot.slane %v4842, %v4848
        %v4850 = vcombine.high %v4849, 0
        %v4853 = vpack.i.b16 %v4849, %v4824
        %v4854 = vshrl.u32 %v4824, 16
        %v4855 = vshrl.u32 %v4849, 16
        %v4856 = vpack.i.b16 %v4855, %v4854
        %v4859 = vpack.i.b16 %v4850, %v4825
        %v4860 = vshrl.u32 %v4825, 16
        %v4861 = vshrl.u32 %v4850, 16
        %v4862 = vpack.i.b16 %v4861, %v4860
        %v4864 = vsel %vm2021, %v4515, 0
        %v4867 = vsel %vm2021, %v4683, 0
        %4869 = vmatprep.subr.bf16.mxu0 0
        %4870 = vmatpush1.bf16.xpose.msra.mxu0 %v4867
        %4871 = vmatprep.subr.bf16.mxu0 0
        %4872 = vmatpush1.bf16.xpose.msra.mxu0 0
        %4873 = vmatprep.subr.bf16.mxu0 0
        %4874 = vmatpush1.bf16.xpose.msra.mxu0 0
        %4875 = vmatprep.subr.bf16.mxu0 0
        %4876 = vmatpush1.bf16.xpose.msra.mxu0 0
        %4877 = vmatprep.subr.bf16.mxu0 0
        %4878 = vmatpush1.bf16.xpose.msra.mxu0 0
        %4879 = vmatprep.subr.bf16.mxu0 0
        %4880 = vmatpush1.bf16.xpose.msra.mxu0 0
        %4881 = vmatprep.subr.bf16.mxu0 0
        %4882 = vmatpush1.bf16.xpose.msra.mxu0 0
        %4883 = vmatprep.subr.bf16.mxu0 0
        %4884 = vmatpush1.bf16.xpose.msra.mxu0 0
        %4885 = vmatprep.subr.bf16.mxu0 0
        %4886 = vmatpush1.bf16.xpose.msra.mxu0 0
        %4887 = vmatprep.subr.bf16.mxu0 0
        %4888 = vmatpush1.bf16.xpose.msra.mxu0 0
        %4889 = vmatprep.subr.bf16.mxu0 0
        %4890 = vmatpush1.bf16.xpose.msra.mxu0 0
        %4891 = vmatprep.subr.bf16.mxu0 0
        %4892 = vmatpush1.bf16.xpose.msra.mxu0 0
        %4893 = vmatprep.subr.bf16.mxu0 0
        %4894 = vmatpush1.bf16.xpose.msra.mxu0 0
        %4895 = vmatprep.subr.bf16.mxu0 0
        %4896 = vmatpush1.bf16.xpose.msra.mxu0 0
        %4897 = vmatprep.subr.bf16.mxu0 0
        %4898 = vmatpush1.bf16.xpose.msra.mxu0 0
        %4899 = vmatprep.subr.bf16.mxu0 0
        %4900 = vmatpush1.bf16.xpose.msra.mxu0 0
        %4901 = vmatprep.mubr.bf16.mxu0 0
        %4902 = vmatmul.mubr.bf16.gmra.mrb[0].mxu0 %v4864
        %v4903 = vpop.f32.mrb[0].mxu0
        %v4904 = vadd.f32 0.0, %v4903
        %v4905 = vpop.f32.mrb[0].mxu0
        %v4906 = vpop.f32.mrb[0].mxu0
        %v4907 = vpop.f32.mrb[0].mxu0
        %4908 = vdwg.mxu0
        %v4910 = vsel %vm2021, %v4518, 0
        %v4913 = vsel %vm2021, %v4686, 0
        %4915 = vmatprep.subr.bf16.mxu0 0
        %4916 = vmatpush1.bf16.xpose.msra.mxu0 %v4913
        %4917 = vmatprep.subr.bf16.mxu0 0
        %4918 = vmatpush1.bf16.xpose.msra.mxu0 0
        %4919 = vmatprep.subr.bf16.mxu0 0
        %4920 = vmatpush1.bf16.xpose.msra.mxu0 0
        %4921 = vmatprep.subr.bf16.mxu0 0
        %4922 = vmatpush1.bf16.xpose.msra.mxu0 0
        %4923 = vmatprep.subr.bf16.mxu0 0
        %4924 = vmatpush1.bf16.xpose.msra.mxu0 0
        %4925 = vmatprep.subr.bf16.mxu0 0
        %4926 = vmatpush1.bf16.xpose.msra.mxu0 0
        %4927 = vmatprep.subr.bf16.mxu0 0
        %4928 = vmatpush1.bf16.xpose.msra.mxu0 0
        %4929 = vmatprep.subr.bf16.mxu0 0
        %4930 = vmatpush1.bf16.xpose.msra.mxu0 0
        %4931 = vmatprep.subr.bf16.mxu0 0
        %4932 = vmatpush1.bf16.xpose.msra.mxu0 0
        %4933 = vmatprep.subr.bf16.mxu0 0
        %4934 = vmatpush1.bf16.xpose.msra.mxu0 0
        %4935 = vmatprep.subr.bf16.mxu0 0
        %4936 = vmatpush1.bf16.xpose.msra.mxu0 0
        %4937 = vmatprep.subr.bf16.mxu0 0
        %4938 = vmatpush1.bf16.xpose.msra.mxu0 0
        %4939 = vmatprep.subr.bf16.mxu0 0
        %4940 = vmatpush1.bf16.xpose.msra.mxu0 0
        %4941 = vmatprep.subr.bf16.mxu0 0
        %4942 = vmatpush1.bf16.xpose.msra.mxu0 0
        %4943 = vmatprep.subr.bf16.mxu0 0
        %4944 = vmatpush1.bf16.xpose.msra.mxu0 0
        %4945 = vmatprep.subr.bf16.mxu0 0
        %4946 = vmatpush1.bf16.xpose.msra.mxu0 0
        %4947 = vmatprep.mubr.bf16.mxu0 0
        %4948 = vmatmul.mubr.bf16.gmra.mrb[0].mxu0 %v4910
        %v4949 = vpop.f32.mrb[0].mxu0
        %v4950 = vadd.f32 0.0, %v4949
        %v4951 = vpop.f32.mrb[0].mxu0
        %v4952 = vpop.f32.mrb[0].mxu0
        %v4953 = vpop.f32.mrb[0].mxu0
        %4954 = vdwg.mxu0
        %v4956 = vsel %vm2021, %v4521, 0
        %v4959 = vsel %vm2021, %v4689, 0
        %4961 = vmatprep.subr.bf16.mxu0 0
        %4962 = vmatpush1.bf16.xpose.msra.mxu0 %v4959
        %4963 = vmatprep.subr.bf16.mxu0 0
        %4964 = vmatpush1.bf16.xpose.msra.mxu0 0
        %4965 = vmatprep.subr.bf16.mxu0 0
        %4966 = vmatpush1.bf16.xpose.msra.mxu0 0
        %4967 = vmatprep.subr.bf16.mxu0 0
        %4968 = vmatpush1.bf16.xpose.msra.mxu0 0
        %4969 = vmatprep.subr.bf16.mxu0 0
        %4970 = vmatpush1.bf16.xpose.msra.mxu0 0
        %4971 = vmatprep.subr.bf16.mxu0 0
        %4972 = vmatpush1.bf16.xpose.msra.mxu0 0
        %4973 = vmatprep.subr.bf16.mxu0 0
        %4974 = vmatpush1.bf16.xpose.msra.mxu0 0
        %4975 = vmatprep.subr.bf16.mxu0 0
        %4976 = vmatpush1.bf16.xpose.msra.mxu0 0
        %4977 = vmatprep.subr.bf16.mxu0 0
        %4978 = vmatpush1.bf16.xpose.msra.mxu0 0
        %4979 = vmatprep.subr.bf16.mxu0 0
        %4980 = vmatpush1.bf16.xpose.msra.mxu0 0
        %4981 = vmatprep.subr.bf16.mxu0 0
        %4982 = vmatpush1.bf16.xpose.msra.mxu0 0
        %4983 = vmatprep.subr.bf16.mxu0 0
        %4984 = vmatpush1.bf16.xpose.msra.mxu0 0
        %4985 = vmatprep.subr.bf16.mxu0 0
        %4986 = vmatpush1.bf16.xpose.msra.mxu0 0
        %4987 = vmatprep.subr.bf16.mxu0 0
        %4988 = vmatpush1.bf16.xpose.msra.mxu0 0
        %4989 = vmatprep.subr.bf16.mxu0 0
        %4990 = vmatpush1.bf16.xpose.msra.mxu0 0
        %4991 = vmatprep.subr.bf16.mxu0 0
        %4992 = vmatpush1.bf16.xpose.msra.mxu0 0
        %4993 = vmatprep.mubr.bf16.mxu0 0
        %4994 = vmatmul.mubr.bf16.gmra.mrb[0].mxu0 %v4956
        %v4995 = vpop.f32.mrb[0].mxu0
        %v4996 = vadd.f32 0.0, %v4995
        %v4997 = vpop.f32.mrb[0].mxu0
        %v4998 = vpop.f32.mrb[0].mxu0
        %v4999 = vpop.f32.mrb[0].mxu0
        %5000 = vdwg.mxu0
        %v5002 = vsel %vm2021, %v4524, 0
        %v5005 = vsel %vm2021, %v4692, 0
        %5007 = vmatprep.subr.bf16.mxu0 0
        %5008 = vmatpush1.bf16.xpose.msra.mxu0 %v5005
        %5009 = vmatprep.subr.bf16.mxu0 0
        %5010 = vmatpush1.bf16.xpose.msra.mxu0 0
        %5011 = vmatprep.subr.bf16.mxu0 0
        %5012 = vmatpush1.bf16.xpose.msra.mxu0 0
        %5013 = vmatprep.subr.bf16.mxu0 0
        %5014 = vmatpush1.bf16.xpose.msra.mxu0 0
        %5015 = vmatprep.subr.bf16.mxu0 0
        %5016 = vmatpush1.bf16.xpose.msra.mxu0 0
        %5017 = vmatprep.subr.bf16.mxu0 0
        %5018 = vmatpush1.bf16.xpose.msra.mxu0 0
        %5019 = vmatprep.subr.bf16.mxu0 0
        %5020 = vmatpush1.bf16.xpose.msra.mxu0 0
        %5021 = vmatprep.subr.bf16.mxu0 0
        %5022 = vmatpush1.bf16.xpose.msra.mxu0 0
        %5023 = vmatprep.subr.bf16.mxu0 0
        %5024 = vmatpush1.bf16.xpose.msra.mxu0 0
        %5025 = vmatprep.subr.bf16.mxu0 0
        %5026 = vmatpush1.bf16.xpose.msra.mxu0 0
        %5027 = vmatprep.subr.bf16.mxu0 0
        %5028 = vmatpush1.bf16.xpose.msra.mxu0 0
        %5029 = vmatprep.subr.bf16.mxu0 0
        %5030 = vmatpush1.bf16.xpose.msra.mxu0 0
        %5031 = vmatprep.subr.bf16.mxu0 0
        %5032 = vmatpush1.bf16.xpose.msra.mxu0 0
        %5033 = vmatprep.subr.bf16.mxu0 0
        %5034 = vmatpush1.bf16.xpose.msra.mxu0 0
        %5035 = vmatprep.subr.bf16.mxu0 0
        %5036 = vmatpush1.bf16.xpose.msra.mxu0 0
        %5037 = vmatprep.subr.bf16.mxu0 0
        %5038 = vmatpush1.bf16.xpose.msra.mxu0 0
        %5039 = vmatprep.mubr.bf16.mxu0 0
        %5040 = vmatmul.mubr.bf16.gmra.mrb[0].mxu0 %v5002
        %v5041 = vpop.f32.mrb[0].mxu0
        %v5042 = vadd.f32 0.0, %v5041
        %v5043 = vpop.f32.mrb[0].mxu0
        %v5044 = vpop.f32.mrb[0].mxu0
        %v5045 = vpop.f32.mrb[0].mxu0
        %5046 = vdwg.mxu0
        %v5047 = vsel %vm4222, 1, 0
        %v5048 = vlaneseq
        %v5049 = vshrl.u32 %v5048, 7
        %v5050 = vsub.s32 0, %v5049
        %v5051 = vrot.slane %v5047, %v5050
        %vm5052 = vcmp.eq.s32.totalorder %v5051, 1
        %v5053 = vsel %vm5052, -1e+18, %v4904
        %v5054 = vsel %vm5052, -1e+18, %v4950
        %v5055 = vsel %vm5052, -1e+18, %v4996
        %v5056 = vsel %vm5052, -1e+18, %v5042
        %v5057 = vsel %vm2021, %v5053, -inf
        %5058 = vmax.xlane.f32.xlu0 %v5057
        %v5059 = vpop.xlane.xlu0 %5058
        %v5060 = vsel %vm2021, %v5054, -inf
        %5061 = vmax.xlane.f32.xlu0 %v5060
        %v5062 = vpop.xlane.xlu0 %5061
        %v5063 = vsel %vm2021, %v5055, -inf
        %5064 = vmax.xlane.f32.xlu0 %v5063
        %v5065 = vpop.xlane.xlu0 %5064
        %v5066 = vsel %vm2021, %v5056, -inf
        %5067 = vmax.xlane.f32.xlu0 %v5066
        %v5068 = vpop.xlane.xlu0 %5067
        %v5069 = vsub.f32 %v5053, %v5059
        %v5070 = vsub.f32 %v5054, %v5062
        %v5071 = vsub.f32 %v5055, %v5065
        %v5072 = vsub.f32 %v5056, %v5068
        %v5073 = vmul.f32 %v5069, 1.442695
        %v5074 = vpow.pop %v5073
        %v5075 = vmul.f32 %v5070, 1.442695
        %v5076 = vpow.pop %v5075
        %v5077 = vmul.f32 %v5071, 1.442695
        %v5078 = vpow.pop %v5077
        %v5079 = vmul.f32 %v5072, 1.442695
        %v5080 = vpow.pop %v5079
        %v5081 = vsel %vm2021, %v5074, 0.0
        %5082 = vadd.xlane.f32.xlu0 %v5081
        %v5083 = vpop.xlane.xlu0 %5082
        %v5084 = vsel %vm2021, %v5076, 0.0
        %5085 = vadd.xlane.f32.xlu0 %v5084
        %v5086 = vpop.xlane.xlu0 %5085
        %v5087 = vsel %vm2021, %v5078, 0.0
        %5088 = vadd.xlane.f32.xlu0 %v5087
        %v5089 = vpop.xlane.xlu0 %5088
        %v5090 = vsel %vm2021, %v5080, 0.0
        %5091 = vadd.xlane.f32.xlu0 %v5090
        %v5092 = vpop.xlane.xlu0 %5091
        %v5093 = vrcp.pop %v5083
        %v5094 = vrcp.pop %v5086
        %v5095 = vrcp.pop %v5089
        %v5096 = vrcp.pop %v5092
        %v5097 = vmul.f32 %v5074, %v5093
        %v5098 = vmul.f32 %v5076, %v5094
        %v5099 = vmul.f32 %v5078, %v5095
        %v5100 = vmul.f32 %v5080, %v5096
        %v5101 = vpack.c.bf16 %v5097, %v5097
        %v5102 = vpack.c.bf16 %v5098, %v5098
        %v5103 = vpack.c.bf16 %v5099, %v5099
        %v5104 = vpack.c.bf16 %v5100, %v5100
        %v5106 = vsel %vm2021, %v5101, 0
        %v5109 = vsel %vm2267, %v4853, 0
        %5111 = vmatprep.subr.bf16.mxu0 0
        %5112 = vmatpush1.bf16.msra.mxu0 %v5109
        %5113 = vmatprep.subr.bf16.mxu0 0
        %5114 = vmatpush1.bf16.msra.mxu0 0
        %5115 = vmatprep.subr.bf16.mxu0 0
        %5116 = vmatpush1.bf16.msra.mxu0 0
        %5117 = vmatprep.subr.bf16.mxu0 0
        %5118 = vmatpush1.bf16.msra.mxu0 0
        %5119 = vmatprep.subr.bf16.mxu0 0
        %5120 = vmatpush1.bf16.msra.mxu0 0
        %5121 = vmatprep.subr.bf16.mxu0 0
        %5122 = vmatpush1.bf16.msra.mxu0 0
        %5123 = vmatprep.subr.bf16.mxu0 0
        %5124 = vmatpush1.bf16.msra.mxu0 0
        %5125 = vmatprep.subr.bf16.mxu0 0
        %5126 = vmatpush1.bf16.msra.mxu0 0
        %5127 = vmatprep.subr.bf16.mxu0 0
        %5128 = vmatpush1.bf16.msra.mxu0 0
        %5129 = vmatprep.subr.bf16.mxu0 0
        %5130 = vmatpush1.bf16.msra.mxu0 0
        %5131 = vmatprep.subr.bf16.mxu0 0
        %5132 = vmatpush1.bf16.msra.mxu0 0
        %5133 = vmatprep.subr.bf16.mxu0 0
        %5134 = vmatpush1.bf16.msra.mxu0 0
        %5135 = vmatprep.subr.bf16.mxu0 0
        %5136 = vmatpush1.bf16.msra.mxu0 0
        %5137 = vmatprep.subr.bf16.mxu0 0
        %5138 = vmatpush1.bf16.msra.mxu0 0
        %5139 = vmatprep.subr.bf16.mxu0 0
        %5140 = vmatpush1.bf16.msra.mxu0 0
        %5141 = vmatprep.subr.bf16.mxu0 0
        %5142 = vmatpush1.bf16.msra.mxu0 0
        %5143 = vmatprep.mubr.bf16.mxu0 0
        %5144 = vmatmul.mubr.bf16.gmra.mrb[0].mxu0 %v5106
        %v5145 = vpop.f32.mrb[0].mxu0
        %v5146 = vadd.f32 0.0, %v5145
        %v5147 = vpop.f32.mrb[0].mxu0
        %v5148 = vpop.f32.mrb[0].mxu0
        %v5149 = vpop.f32.mrb[0].mxu0
        %5150 = vdwg.mxu0
        %v5152 = vsel %vm2021, %v5102, 0
        %v5155 = vsel %vm2267, %v4856, 0
        %5157 = vmatprep.subr.bf16.mxu0 0
        %5158 = vmatpush1.bf16.msra.mxu0 %v5155
        %5159 = vmatprep.subr.bf16.mxu0 0
        %5160 = vmatpush1.bf16.msra.mxu0 0
        %5161 = vmatprep.subr.bf16.mxu0 0
        %5162 = vmatpush1.bf16.msra.mxu0 0
        %5163 = vmatprep.subr.bf16.mxu0 0
        %5164 = vmatpush1.bf16.msra.mxu0 0
        %5165 = vmatprep.subr.bf16.mxu0 0
        %5166 = vmatpush1.bf16.msra.mxu0 0
        %5167 = vmatprep.subr.bf16.mxu0 0
        %5168 = vmatpush1.bf16.msra.mxu0 0
        %5169 = vmatprep.subr.bf16.mxu0 0
        %5170 = vmatpush1.bf16.msra.mxu0 0
        %5171 = vmatprep.subr.bf16.mxu0 0
        %5172 = vmatpush1.bf16.msra.mxu0 0
        %5173 = vmatprep.subr.bf16.mxu0 0
        %5174 = vmatpush1.bf16.msra.mxu0 0
        %5175 = vmatprep.subr.bf16.mxu0 0
        %5176 = vmatpush1.bf16.msra.mxu0 0
        %5177 = vmatprep.subr.bf16.mxu0 0
        %5178 = vmatpush1.bf16.msra.mxu0 0
        %5179 = vmatprep.subr.bf16.mxu0 0
        %5180 = vmatpush1.bf16.msra.mxu0 0
        %5181 = vmatprep.subr.bf16.mxu0 0
        %5182 = vmatpush1.bf16.msra.mxu0 0
        %5183 = vmatprep.subr.bf16.mxu0 0
        %5184 = vmatpush1.bf16.msra.mxu0 0
        %5185 = vmatprep.subr.bf16.mxu0 0
        %5186 = vmatpush1.bf16.msra.mxu0 0
        %5187 = vmatprep.subr.bf16.mxu0 0
        %5188 = vmatpush1.bf16.msra.mxu0 0
        %5189 = vmatprep.mubr.bf16.mxu0 0
        %5190 = vmatmul.mubr.bf16.gmra.mrb[0].mxu0 %v5152
        %v5191 = vpop.f32.mrb[0].mxu0
        %v5192 = vadd.f32 0.0, %v5191
        %v5193 = vpop.f32.mrb[0].mxu0
        %v5194 = vpop.f32.mrb[0].mxu0
        %v5195 = vpop.f32.mrb[0].mxu0
        %5196 = vdwg.mxu0
        %v5198 = vsel %vm2021, %v5103, 0
        %v5201 = vsel %vm2267, %v4859, 0
        %5203 = vmatprep.subr.bf16.mxu0 0
        %5204 = vmatpush1.bf16.msra.mxu0 %v5201
        %5205 = vmatprep.subr.bf16.mxu0 0
        %5206 = vmatpush1.bf16.msra.mxu0 0
        %5207 = vmatprep.subr.bf16.mxu0 0
        %5208 = vmatpush1.bf16.msra.mxu0 0
        %5209 = vmatprep.subr.bf16.mxu0 0
        %5210 = vmatpush1.bf16.msra.mxu0 0
        %5211 = vmatprep.subr.bf16.mxu0 0
        %5212 = vmatpush1.bf16.msra.mxu0 0
        %5213 = vmatprep.subr.bf16.mxu0 0
        %5214 = vmatpush1.bf16.msra.mxu0 0
        %5215 = vmatprep.subr.bf16.mxu0 0
        %5216 = vmatpush1.bf16.msra.mxu0 0
        %5217 = vmatprep.subr.bf16.mxu0 0
        %5218 = vmatpush1.bf16.msra.mxu0 0
        %5219 = vmatprep.subr.bf16.mxu0 0
        %5220 = vmatpush1.bf16.msra.mxu0 0
        %5221 = vmatprep.subr.bf16.mxu0 0
        %5222 = vmatpush1.bf16.msra.mxu0 0
        %5223 = vmatprep.subr.bf16.mxu0 0
        %5224 = vmatpush1.bf16.msra.mxu0 0
        %5225 = vmatprep.subr.bf16.mxu0 0
        %5226 = vmatpush1.bf16.msra.mxu0 0
        %5227 = vmatprep.subr.bf16.mxu0 0
        %5228 = vmatpush1.bf16.msra.mxu0 0
        %5229 = vmatprep.subr.bf16.mxu0 0
        %5230 = vmatpush1.bf16.msra.mxu0 0
        %5231 = vmatprep.subr.bf16.mxu0 0
        %5232 = vmatpush1.bf16.msra.mxu0 0
        %5233 = vmatprep.subr.bf16.mxu0 0
        %5234 = vmatpush1.bf16.msra.mxu0 0
        %5235 = vmatprep.mubr.bf16.mxu0 0
        %5236 = vmatmul.mubr.bf16.gmra.mrb[0].mxu0 %v5198
        %v5237 = vpop.f32.mrb[0].mxu0
        %v5238 = vadd.f32 0.0, %v5237
        %v5239 = vpop.f32.mrb[0].mxu0
        %v5240 = vpop.f32.mrb[0].mxu0
        %v5241 = vpop.f32.mrb[0].mxu0
        %5242 = vdwg.mxu0
        %v5244 = vsel %vm2021, %v5104, 0
        %v5247 = vsel %vm2267, %v4862, 0
        %5249 = vmatprep.subr.bf16.mxu0 0
        %5250 = vmatpush1.bf16.msra.mxu0 %v5247
        %5251 = vmatprep.subr.bf16.mxu0 0
        %5252 = vmatpush1.bf16.msra.mxu0 0
        %5253 = vmatprep.subr.bf16.mxu0 0
        %5254 = vmatpush1.bf16.msra.mxu0 0
        %5255 = vmatprep.subr.bf16.mxu0 0
        %5256 = vmatpush1.bf16.msra.mxu0 0
        %5257 = vmatprep.subr.bf16.mxu0 0
        %5258 = vmatpush1.bf16.msra.mxu0 0
        %5259 = vmatprep.subr.bf16.mxu0 0
        %5260 = vmatpush1.bf16.msra.mxu0 0
        %5261 = vmatprep.subr.bf16.mxu0 0
        %5262 = vmatpush1.bf16.msra.mxu0 0
        %5263 = vmatprep.subr.bf16.mxu0 0
        %5264 = vmatpush1.bf16.msra.mxu0 0
        %5265 = vmatprep.subr.bf16.mxu0 0
        %5266 = vmatpush1.bf16.msra.mxu0 0
        %5267 = vmatprep.subr.bf16.mxu0 0
        %5268 = vmatpush1.bf16.msra.mxu0 0
        %5269 = vmatprep.subr.bf16.mxu0 0
        %5270 = vmatpush1.bf16.msra.mxu0 0
        %5271 = vmatprep.subr.bf16.mxu0 0
        %5272 = vmatpush1.bf16.msra.mxu0 0
        %5273 = vmatprep.subr.bf16.mxu0 0
        %5274 = vmatpush1.bf16.msra.mxu0 0
        %5275 = vmatprep.subr.bf16.mxu0 0
        %5276 = vmatpush1.bf16.msra.mxu0 0
        %5277 = vmatprep.subr.bf16.mxu0 0
        %5278 = vmatpush1.bf16.msra.mxu0 0
        %5279 = vmatprep.subr.bf16.mxu0 0
        %5280 = vmatpush1.bf16.msra.mxu0 0
        %5281 = vmatprep.mubr.bf16.mxu0 0
        %5282 = vmatmul.mubr.bf16.gmra.mrb[0].mxu0 %v5244
        %v5283 = vpop.f32.mrb[0].mxu0
        %v5284 = vadd.f32 0.0, %v5283
        %v5285 = vpop.f32.mrb[0].mxu0
        %v5286 = vpop.f32.mrb[0].mxu0
        %v5287 = vpop.f32.mrb[0].mxu0
        %5288 = vdwg.mxu0
        %v5289 = vcombine.low %v5146, %v5238
        %v5290 = vcombine.high %v5146, %v5238
        %v5292 = vunpack.c.l.s4 1983009808
        %v5293 = vunpack.c.0.s8 %v5292
        %v5294 = vlaneseq
        %v5295 = vshrl.u32 %v5294, 7
        %v5296 = vsub.s32 %v5293, %v5295
        %v5297 = vrot.slane %v5289, %v5296
        %v5299 = vunpack.c.l.s4 1983009808
        %v5300 = vunpack.c.0.s8 %v5299
        %v5301 = vlaneseq
        %v5302 = vshrl.u32 %v5301, 7
        %v5303 = vsub.s32 %v5300, %v5302
        %v5304 = vrot.slane %v5290, %v5303
        %v5305 = vcombine.low %v5192, %v5284
        %v5306 = vcombine.high %v5192, %v5284
        %v5308 = vunpack.c.l.s4 1983009808
        %v5309 = vunpack.c.0.s8 %v5308
        %v5310 = vlaneseq
        %v5311 = vshrl.u32 %v5310, 7
        %v5312 = vsub.s32 %v5309, %v5311
        %v5313 = vrot.slane %v5305, %v5312
        %v5315 = vunpack.c.l.s4 1983009808
        %v5316 = vunpack.c.0.s8 %v5315
        %v5317 = vlaneseq
        %v5318 = vshrl.u32 %v5317, 7
        %v5319 = vsub.s32 %v5316, %v5318
        %v5320 = vrot.slane %v5306, %v5319
        %v5321 = vcombine.low %v5297, %v5313
        %v5322 = vcombine.high %v5297, %v5313
        %v5324 = vunpack.c.l.s4 1934713408
        %v5325 = vunpack.c.0.s8 %v5324
        %v5326 = vlaneseq
        %v5327 = vshrl.u32 %v5326, 7
        %v5328 = vsub.s32 %v5325, %v5327
        %v5329 = vrot.slane %v5321, %v5328
        %v5331 = vunpack.c.l.s4 1934713408
        %v5332 = vunpack.c.0.s8 %v5331
        %v5333 = vlaneseq
        %v5334 = vshrl.u32 %v5333, 7
        %v5335 = vsub.s32 %v5332, %v5334
        %v5336 = vrot.slane %v5322, %v5335
        %v5337 = vcombine.low %v5304, %v5320
        %v5338 = vcombine.high %v5304, %v5320
        %v5340 = vunpack.c.l.s4 1934713408
        %v5341 = vunpack.c.0.s8 %v5340
        %v5342 = vlaneseq
        %v5343 = vshrl.u32 %v5342, 7
        %v5344 = vsub.s32 %v5341, %v5343
        %v5345 = vrot.slane %v5337, %v5344
        %v5347 = vunpack.c.l.s4 1934713408
        %v5348 = vunpack.c.0.s8 %v5347
        %v5349 = vlaneseq
        %v5350 = vshrl.u32 %v5349, 7
        %v5351 = vsub.s32 %v5348, %v5350
        %v5352 = vrot.slane %v5338, %v5351
        %v5353 = vcombine.high %v5329, 0.0
        %v5354 = vcombine.high %v5336, 0.0
        %v5355 = vcombine.high %v5345, 0.0
        %v5356 = vcombine.high %v5352, 0.0
        %v5357 = vcombine.low %v5329, %v5336
        %v5359 = vunpack.c.l.s4 1983009808
        %v5360 = vunpack.c.0.s8 %v5359
        %v5361 = vlaneseq
        %v5362 = vshrl.u32 %v5361, 7
        %v5363 = vsub.s32 %v5360, %v5362
        %v5364 = vrot.slane %v5357, %v5363
        %v5365 = vcombine.low %v5353, %v5354
        %v5367 = vunpack.c.l.s4 1983009808
        %v5368 = vunpack.c.0.s8 %v5367
        %v5369 = vlaneseq
        %v5370 = vshrl.u32 %v5369, 7
        %v5371 = vsub.s32 %v5368, %v5370
        %v5372 = vrot.slane %v5365, %v5371
        %v5373 = vcombine.low %v5345, %v5352
        %v5375 = vunpack.c.l.s4 1983009808
        %v5376 = vunpack.c.0.s8 %v5375
        %v5377 = vlaneseq
        %v5378 = vshrl.u32 %v5377, 7
        %v5379 = vsub.s32 %v5376, %v5378
        %v5380 = vrot.slane %v5373, %v5379
        %v5381 = vcombine.low %v5355, %v5356
        %v5383 = vunpack.c.l.s4 1983009808
        %v5384 = vunpack.c.0.s8 %v5383
        %v5385 = vlaneseq
        %v5386 = vshrl.u32 %v5385, 7
        %v5387 = vsub.s32 %v5384, %v5386
        %v5388 = vrot.slane %v5381, %v5387
        %v5389 = vcombine.low %v5364, %v5372
        %v5390 = vcombine.high %v5364, %v5372
        %v5392 = vunpack.c.l.s4 1934713408
        %v5393 = vunpack.c.0.s8 %v5392
        %v5394 = vlaneseq
        %v5395 = vshrl.u32 %v5394, 7
        %v5396 = vsub.s32 %v5393, %v5395
        %v5397 = vrot.slane %v5389, %v5396
        %v5399 = vunpack.c.l.s4 1934713408
        %v5400 = vunpack.c.0.s8 %v5399
        %v5401 = vlaneseq
        %v5402 = vshrl.u32 %v5401, 7
        %v5403 = vsub.s32 %v5400, %v5402
        %v5404 = vrot.slane %v5390, %v5403
        %v5405 = vcombine.low %v5380, %v5388
        %v5406 = vcombine.high %v5380, %v5388
        %v5408 = vunpack.c.l.s4 1934713408
        %v5409 = vunpack.c.0.s8 %v5408
        %v5410 = vlaneseq
        %v5411 = vshrl.u32 %v5410, 7
        %v5412 = vsub.s32 %v5409, %v5411
        %v5413 = vrot.slane %v5405, %v5412
        %v5415 = vunpack.c.l.s4 1934713408
        %v5416 = vunpack.c.0.s8 %v5415
        %v5417 = vlaneseq
        %v5418 = vshrl.u32 %v5417, 7
        %v5419 = vsub.s32 %v5416, %v5418
        %v5420 = vrot.slane %v5406, %v5419
        %v5421 = vcombine.low %v5397, %v5413
        %v5422 = vcombine.high %v5397, %v5413
        %v5423 = vcombine.low %v5404, %v5420
        %v5424 = vcombine.high %v5404, %v5420
        %5426 = vrot.lane.b32.xlu0 %v5422, 8
        %v5427 = vpop.permute.xlu0 %5426
        %5430 = vrot.lane.b32.xlu0 %v5423, 16
        %v5431 = vpop.permute.xlu0 %5430
        %5434 = vrot.lane.b32.xlu0 %v5424, 24
        %v5435 = vpop.permute.xlu0 %5434
        %v5437 = vsel %vm2021, %v5421, %v5427
        %v5438 = vsel %vm2598, %v5437, %v5431
        %v5439 = vsel %vm2600, %v5438, %v5435
        %v5440 = vpack.c.bf16 %v5439, %v5439
        %v5441 = vld [vmem:[%s53] sm:$0xf]
        %v5442 = vld [vmem:[%s53 + $0x4] sm:$0xf]
        %v5443 = vld [vmem:[%s53 + $0x8] sm:$0xf]
        %v5444 = vld [vmem:[%s53 + $0xc] sm:$0xf]
        %v5445 = vld [vmem:[#allocation31] sm:$0x1]
        %v5447 = vlaneseq
        %v5448 = vshrl.u32 %v5447, 7
        %v5449 = vsub.s32 0, %v5448
        %v5450 = vrot.slane %v5445, %v5449
        %v5456 = vunpack.c.l.b16 %v5441
        %v5457 = vunpack.c.l.b16 %v5442
        %v5458 = vunpack.c.l.b16 %v5443
        %v5459 = vunpack.c.l.b16 %v5444
        %v5460 = vpack.c.b16 %v5457, %v5456
        %v5461 = vpack.c.b16 %v5459, %v5458
        %v5465 = vsel %vm1414, %v5440, 0
        %5467 = vmatprep.subr.bf16.mxu0 0
        %5468 = vmatpush1.bf16.msra.mxu0 %v5460
        %5469 = vmatprep.subr.bf16.mxu0 0
        %5470 = vmatpush1.bf16.msra.mxu0 %v5461
        %5471 = vmatprep.subr.bf16.mxu0 0
        %5472 = vmatpush1.bf16.msra.mxu0 0
        %5473 = vmatprep.subr.bf16.mxu0 0
        %5474 = vmatpush1.bf16.msra.mxu0 0
        %5475 = vmatprep.subr.bf16.mxu0 0
        %5476 = vmatpush1.bf16.msra.mxu0 0
        %5477 = vmatprep.subr.bf16.mxu0 0
        %5478 = vmatpush1.bf16.msra.mxu0 0
        %5479 = vmatprep.subr.bf16.mxu0 0
        %5480 = vmatpush1.bf16.msra.mxu0 0
        %5481 = vmatprep.subr.bf16.mxu0 0
        %5482 = vmatpush1.bf16.msra.mxu0 0
        %5483 = vmatprep.subr.bf16.mxu0 0
        %5484 = vmatpush1.bf16.msra.mxu0 0
        %5485 = vmatprep.subr.bf16.mxu0 0
        %5486 = vmatpush1.bf16.msra.mxu0 0
        %5487 = vmatprep.subr.bf16.mxu0 0
        %5488 = vmatpush1.bf16.msra.mxu0 0
        %5489 = vmatprep.subr.bf16.mxu0 0
        %5490 = vmatpush1.bf16.msra.mxu0 0
        %5491 = vmatprep.subr.bf16.mxu0 0
        %5492 = vmatpush1.bf16.msra.mxu0 0
        %5493 = vmatprep.subr.bf16.mxu0 0
        %5494 = vmatpush1.bf16.msra.mxu0 0
        %5495 = vmatprep.subr.bf16.mxu0 0
        %5496 = vmatpush1.bf16.msra.mxu0 0
        %5497 = vmatprep.subr.bf16.mxu0 0
        %5498 = vmatpush1.bf16.msra.mxu0 0
        %5499 = vmatprep.mubr.bf16.mxu0 0
        %5500 = vmatmul.mubr.bf16.gmra.mrb[0].mxu0 %v5465
        %v5501 = vpop.f32.mrb[0].mxu0
        %v5502 = vadd.f32 %v5450, %v5501
        %v5503 = vpop.f32.mrb[0].mxu0
        %v5504 = vpop.f32.mrb[0].mxu0
        %v5505 = vpop.f32.mrb[0].mxu0
        %5506 = vdwg.mxu0
        %v5507 = vadd.f32 %v5502, %v4189
        %v5508 = vld [vmem:[#allocation32] sm:$0x1]
        %v5509 = vld [vmem:[#allocation34] sm:$0x1]
        %v5510 = vsel %vm1414, %v5507, 0.0
        %5511 = vadd.xlane.f32.xlu0 %v5510
        %v5512 = vpop.xlane.xlu0 %5511
        %v5513 = vmul.f32 %v5512, %v1418
        %v5514 = vsub.f32 %v5507, %v5513
        %v5515 = vmul.f32 %v5514, %v5514
        %v5516 = vsel %vm1414, %v5515, 0.0
        %5517 = vadd.xlane.f32.xlu0 %v5516
        %v5518 = vpop.xlane.xlu0 %5517
        %v5519 = vmul.f32 %v5518, %v1418
        %v5520 = vadd.f32 %v5519, 1e-06
        %v5521 = vrsqrt.pop %v5520
        %v5522 = vmul.f32 %v5514, %v5521
        %v5524 = vlaneseq
        %v5525 = vshrl.u32 %v5524, 7
        %v5526 = vsub.s32 0, %v5525
        %v5527 = vrot.slane %v5508, %v5526
        %v5529 = vmul.f32 %v5522, %v5527
        %v5531 = vlaneseq
        %v5532 = vshrl.u32 %v5531, 7
        %v5533 = vsub.s32 0, %v5532
        %v5534 = vrot.slane %v5509, %v5533
        %v5536 = vadd.f32 %v5529, %v5534
        %v5537 = vpack.c.bf16 %v5536, %v5536
        %v5538 = vld [vmem:[%s61] sm:$0xf]
        %v5539 = vld [vmem:[%s61 + $0x4] sm:$0xf]
        %v5540 = vld [vmem:[%s61 + $0x8] sm:$0xf]
        %v5541 = vld [vmem:[%s61 + $0xc] sm:$0xf]
        %v5542 = vld [vmem:[%s63] sm:$0x1]
        %v5544 = vlaneseq
        %v5545 = vshrl.u32 %v5544, 7
        %v5546 = vsub.s32 0, %v5545
        %v5547 = vrot.slane %v5542, %v5546
        %v5553 = vunpack.c.l.b16 %v5538
        %v5554 = vunpack.c.l.b16 %v5539
        %v5555 = vunpack.c.l.b16 %v5540
        %v5556 = vunpack.c.l.b16 %v5541
        %v5557 = vpack.c.b16 %v5554, %v5553
        %v5558 = vpack.c.b16 %v5556, %v5555
        %v5562 = vsel %vm1414, %v5537, 0
        %5564 = vmatprep.subr.bf16.mxu0 0
        %5565 = vmatpush1.bf16.msra.mxu0 %v5557
        %5566 = vmatprep.subr.bf16.mxu0 0
        %5567 = vmatpush1.bf16.msra.mxu0 %v5558
        %5568 = vmatprep.subr.bf16.mxu0 0
        %5569 = vmatpush1.bf16.msra.mxu0 0
        %5570 = vmatprep.subr.bf16.mxu0 0
        %5571 = vmatpush1.bf16.msra.mxu0 0
        %5572 = vmatprep.subr.bf16.mxu0 0
        %5573 = vmatpush1.bf16.msra.mxu0 0
        %5574 = vmatprep.subr.bf16.mxu0 0
        %5575 = vmatpush1.bf16.msra.mxu0 0
        %5576 = vmatprep.subr.bf16.mxu0 0
        %5577 = vmatpush1.bf16.msra.mxu0 0
        %5578 = vmatprep.subr.bf16.mxu0 0
        %5579 = vmatpush1.bf16.msra.mxu0 0
        %5580 = vmatprep.subr.bf16.mxu0 0
        %5581 = vmatpush1.bf16.msra.mxu0 0
        %5582 = vmatprep.subr.bf16.mxu0 0
        %5583 = vmatpush1.bf16.msra.mxu0 0
        %5584 = vmatprep.subr.bf16.mxu0 0
        %5585 = vmatpush1.bf16.msra.mxu0 0
        %5586 = vmatprep.subr.bf16.mxu0 0
        %5587 = vmatpush1.bf16.msra.mxu0 0
        %5588 = vmatprep.subr.bf16.mxu0 0
        %5589 = vmatpush1.bf16.msra.mxu0 0
        %5590 = vmatprep.subr.bf16.mxu0 0
        %5591 = vmatpush1.bf16.msra.mxu0 0
        %5592 = vmatprep.subr.bf16.mxu0 0
        %5593 = vmatpush1.bf16.msra.mxu0 0
        %5594 = vmatprep.subr.bf16.mxu0 0
        %5595 = vmatpush1.bf16.msra.mxu0 0
        %5596 = vmatprep.mubr.bf16.mxu0 0
        %5597 = vmatmul.mubr.bf16.gmra.mrb[0].mxu0 %v5562
        %v5598 = vpop.f32.mrb[0].mxu0
        %v5599 = vadd.f32 %v5547, %v5598
        %v5600 = vpop.f32.mrb[0].mxu0
        %v5601 = vpop.f32.mrb[0].mxu0
        %v5602 = vpop.f32.mrb[0].mxu0
        %5603 = vdwg.mxu0
        %v5604 = vmax.f32 %v5599, 0.0
        %v5605 = vpack.c.bf16 %v5604, %v5604
        %v5606 = vld [vmem:[%s65] sm:$0xf]
        %v5607 = vld [vmem:[%s65 + $0x4] sm:$0xf]
        %v5608 = vld [vmem:[%s65 + $0x8] sm:$0xf]
        %v5609 = vld [vmem:[%s65 + $0xc] sm:$0xf]
        %v5610 = vld [vmem:[%s65 + $0x10] sm:$0xf]
        %v5611 = vld [vmem:[%s65 + $0x14] sm:$0xf]
        %v5612 = vld [vmem:[%s65 + $0x18] sm:$0xf]
        %v5613 = vld [vmem:[%s65 + $0x1c] sm:$0xf]
        %v5614 = vld [vmem:[%s67] sm:$0x1]
        %v5616 = vlaneseq
        %v5617 = vshrl.u32 %v5616, 7
        %v5618 = vsub.s32 0, %v5617
        %v5619 = vrot.slane %v5614, %v5618
        %v5629 = vunpack.c.l.b16 %v5606
        %v5630 = vunpack.c.l.b16 %v5607
        %v5631 = vunpack.c.l.b16 %v5608
        %v5632 = vunpack.c.l.b16 %v5609
        %v5633 = vunpack.c.l.b16 %v5610
        %v5634 = vunpack.c.l.b16 %v5611
        %v5635 = vunpack.c.l.b16 %v5612
        %v5636 = vunpack.c.l.b16 %v5613
        %v5637 = vpack.c.b16 %v5630, %v5629
        %v5638 = vpack.c.b16 %v5632, %v5631
        %v5639 = vpack.c.b16 %v5634, %v5633
        %v5640 = vpack.c.b16 %v5636, %v5635
        %vm5645 = vcmask 523264
        %v5647 = vsel %vm5645, %v5605, 0
        %5649 = vmatprep.subr.bf16.mxu0 0
        %5650 = vmatpush1.bf16.msra.mxu0 %v5637
        %5651 = vmatprep.subr.bf16.mxu0 0
        %5652 = vmatpush1.bf16.msra.mxu0 %v5638
        %5653 = vmatprep.subr.bf16.mxu0 0
        %5654 = vmatpush1.bf16.msra.mxu0 %v5639
        %5655 = vmatprep.subr.bf16.mxu0 0
        %5656 = vmatpush1.bf16.msra.mxu0 %v5640
        %5657 = vmatprep.subr.bf16.mxu0 0
        %5658 = vmatpush1.bf16.msra.mxu0 0
        %5659 = vmatprep.subr.bf16.mxu0 0
        %5660 = vmatpush1.bf16.msra.mxu0 0
        %5661 = vmatprep.subr.bf16.mxu0 0
        %5662 = vmatpush1.bf16.msra.mxu0 0
        %5663 = vmatprep.subr.bf16.mxu0 0
        %5664 = vmatpush1.bf16.msra.mxu0 0
        %5665 = vmatprep.subr.bf16.mxu0 0
        %5666 = vmatpush1.bf16.msra.mxu0 0
        %5667 = vmatprep.subr.bf16.mxu0 0
        %5668 = vmatpush1.bf16.msra.mxu0 0
        %5669 = vmatprep.subr.bf16.mxu0 0
        %5670 = vmatpush1.bf16.msra.mxu0 0
        %5671 = vmatprep.subr.bf16.mxu0 0
        %5672 = vmatpush1.bf16.msra.mxu0 0
        %5673 = vmatprep.subr.bf16.mxu0 0
        %5674 = vmatpush1.bf16.msra.mxu0 0
        %5675 = vmatprep.subr.bf16.mxu0 0
        %5676 = vmatpush1.bf16.msra.mxu0 0
        %5677 = vmatprep.subr.bf16.mxu0 0
        %5678 = vmatpush1.bf16.msra.mxu0 0
        %5679 = vmatprep.subr.bf16.mxu0 0
        %5680 = vmatpush1.bf16.msra.mxu0 0
        %5681 = vmatprep.mubr.bf16.mxu0 0
        %5682 = vmatmul.mubr.bf16.gmra.mrb[0].mxu0 %v5647
        %v5683 = vpop.f32.mrb[0].mxu0
        %v5684 = vadd.f32 %v5619, %v5683
        %v5685 = vpop.f32.mrb[0].mxu0
        %v5686 = vpop.f32.mrb[0].mxu0
        %v5687 = vpop.f32.mrb[0].mxu0
        %5688 = vdwg.mxu0
        %v5689 = vadd.f32 %v5684, %v5507
        %5690 = vst.msk [vmem:[%s1400] sm:$0xff] %vm1414, %v5689
        %s5691 = sand.u32 %s852, 1
        %s5692 = scalar_lea.sflag [#allocation4], %s5691
        %s5693 = sand.u32 %s852, 1
        %s5694 = smul.addr %s5693, 8
        %s5695 = scalar_lea.vmem [#allocation35], %s5694
        // Predicated region
        $region241: #{tpu_custom_call.1} parent=155 // pred_check
          %p5696 = pneg %p862
        $region242: #{tpu_custom_call.1} parent=155 // pred_check_branch
          %5698 = sbr.rel (%p5696) target = $region244
        $region243: #{tpu_custom_call.1} parent=155 // pred_region
          %s5700 = ssub.s32 128, 128
          %5701 = vsyncadd %s5692, %s5700
          %s5702 = smul.addr %s100, 128
          %s5703 = scalar_lea.hbm %s69, %s5702
          %s5705 = sshll.u32 %s5695, 4
          %s5706 = int_to_ptr.vmem [resolvable:$true] %s5705
          %5708 = dma.vmem_to_hbm [thread:$0]  %s5706, 128, %s5703, %s5692
        $region244: #{tpu_custom_call.1} parent=155 // pred_fallthru
          _
      $region156: #{tpu_custom_call.1} parent=5 // pred_fallthru
        _
      %p5709 = scmp.le.s32.totalorder 2, %s95
      // Predicated region
      $region245: #{tpu_custom_call.1} parent=5 // pred_check
        %p5710 = pneg %p5709
      $region246: #{tpu_custom_call.1} parent=5 // pred_check_branch
        %5712 = sbr.rel (%p5710) target = $region248
      $region247: #{tpu_custom_call.1} parent=5 // pred_region
        %s5713 = ssub.s32 %s95, 2
        // Predicated region
        $region249: #{tpu_custom_call.1} parent=247 // pred_check
          %p5714 = pneg %p868
        $region250: #{tpu_custom_call.1} parent=247 // pred_check_branch
          %5716 = sbr.rel (%p5714) target = $region252
        $region251: #{tpu_custom_call.1} parent=247 // pred_region
          %s5717 = sand.u32 %s853, 1
          %s5718 = scalar_lea.sflag [#allocation4], %s5717
          %s5719 = sand.u32 %s853, 1
          %s5720 = smul.addr %s5719, 8
          %s5721 = scalar_lea.vmem [#allocation35], %s5720
          %5722 = dma.done %s5718, 128
        $region252: #{tpu_custom_call.1} parent=247 // pred_fallthru
          _
      $region248: #{tpu_custom_call.1} parent=5 // pred_fallthru
        _
    $region6: #{tpu_custom_call.1} parent=1 // loop_footer
      %s99 = sadd.s32 1, %s95
    $region7: #{tpu_custom_call.1} parent=1 // loop_footer_branch
      %94 = sbr.rel target = $region3
    $region8: #{tpu_custom_call.1} parent=1 // loop_exit
      _
    %5723 = vsyncpa [#allocation3], 1
    %s5724 = scalar_lea.sflag [#allocation3], 1
    %5725 = vsyncpa %s5724, 1
    %5726 = vsyncpa [#allocation6], 1
    %s5727 = scalar_lea.sflag [#allocation6], 1
    %5728 = vsyncpa %s5727, 1
    %5729 = vsyncpa [#allocation9], 1
    %s5730 = scalar_lea.sflag [#allocation9], 1
    %5731 = vsyncpa %s5730, 1
    %5732 = vsyncpa [#allocation12], 1
    %5733 = vsyncpa [#allocation15], 1
    %5734 = vsyncpa [#allocation18], 1
    %5735 = vsyncpa [#allocation21], 1
    %5736 = vsyncpa [#allocation24], 1
    %5737 = vsyncpa [#allocation27], 1
    %5738 = vsyncpa [#allocation30], 1
    %5739 = vsyncpa [#allocation33], 1
    %5740 = vsyncpa [#allocation4], 1
    %s5741 = scalar_lea.sflag [#allocation4], 1
    %5742 = vsyncpa %s5741, 1

</llo_original>
